<compile_context>
chip_gen: v6e
topology: v6e:2x2x1
jax: 0.10.0
libtpu: 0.0.40
codegen_flags: <defaults>
</compile_context>

<pallas_src>
import math

import jax
import jax.numpy as jnp
from jax.experimental import pallas as pl
from jax.experimental.pallas import tpu as pltpu

# ----- model hyper-params (small, lane-friendly, consistent with the module) -----
B, N, D = 2, 16, 128         # batch, seq len, d_model (D multiple of 128 -> lane dense)
H = 4                        # n_heads
DH = D // H                  # head dim = 32
HIDDEN = 4 * D               # MLP hidden dim = 512
CAUSAL = False               # config.causal
LN_EPS = 1e-5                # torch nn.LayerNorm default eps
RMS_EPS = 1e-6               # QKNorm rms-norm eps


def transformer_kernel(x_ref, wqkv_ref, wout_ref, wfc1_ref, wfc2_ref, vec_ref, o_ref):
    f32 = jnp.float32
    bf16 = jnp.bfloat16

    x = x_ref[0]                                            # (N, D) f32

    # ---------------- packed per-channel params ----------------
    g1 = vec_ref[0:1, 0 * D:1 * D]                          # (1, D)
    b1 = vec_ref[0:1, 1 * D:2 * D]
    g2 = vec_ref[0:1, 2 * D:3 * D]
    b2 = vec_ref[0:1, 3 * D:4 * D]
    bfc2 = vec_ref[1:2, 0:D]                                # (1, D)
    qg = vec_ref[1:2, D:D + DH].reshape(1, 1, DH)           # (1, 1, DH)
    kg = vec_ref[1:2, 2 * D:2 * D + DH].reshape(1, 1, DH)
    bfc1 = vec_ref[2:3, 0:HIDDEN]                           # (1, HIDDEN)

    # ---------------- norm1 (LayerNorm) ----------------
    mu = jnp.mean(x, axis=-1, keepdims=True)
    var = jnp.mean((x - mu) ** 2, axis=-1, keepdims=True)
    xn = (x - mu) * jax.lax.rsqrt(var + LN_EPS) * g1 + b1

    # ---------------- attention (all heads at once) ----------------
    # One fused QKV matmul; q/k/v slices land at lane offsets 0/128/256 (vreg aligned).
    qkv = jnp.dot(xn.astype(bf16), wqkv_ref[...],
                  preferred_element_type=f32)               # (N, 3D) f32
    # rearrange 'n (three h d)': three outermost, then head-major columns.
    q3 = jnp.transpose(qkv[:, 0 * D:1 * D].reshape(N, H, DH), (1, 0, 2))  # (H, N, DH)
    k3 = jnp.transpose(qkv[:, 1 * D:2 * D].reshape(N, H, DH), (1, 0, 2))
    v3 = jnp.transpose(qkv[:, 2 * D:3 * D].reshape(N, H, DH), (1, 0, 2))

    # QKNorm: RMSNorm over head dim with shared learned scale (batched over heads).
    q3 = q3 * jax.lax.rsqrt(jnp.mean(q3 * q3, -1, keepdims=True) + RMS_EPS) * qg
    k3 = k3 * jax.lax.rsqrt(jnp.mean(k3 * k3, -1, keepdims=True) + RMS_EPS) * kg

    scale = 1.0 / math.sqrt(DH)
    s = jnp.einsum('hqd,hkd->hqk', q3.astype(bf16), k3.astype(bf16),
                   preferred_element_type=f32) * scale      # (H, N, N)
    if CAUSAL:
        row = jax.lax.broadcasted_iota(jnp.int32, (H, N, N), 1)
        col = jax.lax.broadcasted_iota(jnp.int32, (H, N, N), 2)
        s = jnp.where(col <= row, s, -jnp.inf)

    m = jnp.max(s, axis=-1, keepdims=True)
    p = jnp.exp(s - m)                                      # unnormalized probs
    l = jnp.sum(p, axis=-1, keepdims=True)                  # (H, N, 1)
    o = jnp.einsum('hqk,hkd->hqd', p.astype(bf16), v3.astype(bf16),
                   preferred_element_type=f32)              # (H, N, DH)
    # fold the softmax denominator into the (much smaller) output via EUP reciprocal
    o = o * pl.reciprocal(l, approx=True)

    attn = jnp.transpose(o, (1, 0, 2)).reshape(N, D)        # 'b h n d -> b n (h d)'
    attn = jnp.dot(attn.astype(bf16), wout_ref[...], preferred_element_type=f32)

    x1 = x + attn                                           # residual 1

    # ---------------- norm2 + MLP ----------------
    mu2 = jnp.mean(x1, axis=-1, keepdims=True)
    var2 = jnp.mean((x1 - mu2) ** 2, axis=-1, keepdims=True)
    x2n = (x1 - mu2) * jax.lax.rsqrt(var2 + LN_EPS) * g2 + b2

    hid = jnp.dot(x2n.astype(bf16), wfc1_ref[...], preferred_element_type=f32) + bfc1
    hid = jax.nn.gelu(hid, approximate=True)
    y = jnp.dot(hid.astype(bf16), wfc2_ref[...], preferred_element_type=f32) + bfc2

    o_ref[0] = x1 + y                                       # residual 2


def pack_params(params):
    """Cast matmul weights to bf16 and pack all small vectors into one buffer."""
    (wqkv, wout, qg, kg, g1, b1, g2, b2, wfc1, bfc1, wfc2, bfc2) = params
    vec = jnp.zeros((3, HIDDEN), jnp.float32)
    vec = vec.at[0, 0 * D:1 * D].set(g1[0])
    vec = vec.at[0, 1 * D:2 * D].set(b1[0])
    vec = vec.at[0, 2 * D:3 * D].set(g2[0])
    vec = vec.at[0, 3 * D:4 * D].set(b2[0])
    vec = vec.at[1, 0:D].set(bfc2[0])
    vec = vec.at[1, D:D + DH].set(qg[0])
    vec = vec.at[1, 2 * D:2 * D + DH].set(kg[0])
    vec = vec.at[2, 0:HIDDEN].set(bfc1[0])
    bf16 = jnp.bfloat16
    return (wqkv.astype(bf16), wout.astype(bf16),
            wfc1.astype(bf16), wfc2.astype(bf16), vec)


def transformer_forward(x, params):
    wqkv_bf, wout_bf, wfc1_bf, wfc2_bf, vec = pack_params(params)
    return pl.pallas_call(
        transformer_kernel,
        out_shape=jax.ShapeDtypeStruct((B, N, D), jnp.float32),
        grid=(B,),
        in_specs=[
            pl.BlockSpec((1, N, D), lambda b: (b, 0, 0)),     # x
            pl.BlockSpec((D, 3 * D), lambda b: (0, 0)),       # qkv weight (bf16)
            pl.BlockSpec((D, D), lambda b: (0, 0)),           # out weight (bf16)
            pl.BlockSpec((D, HIDDEN), lambda b: (0, 0)),      # fc1 weight (bf16)
            pl.BlockSpec((HIDDEN, D), lambda b: (0, 0)),      # fc2 weight (bf16)
            pl.BlockSpec((3, HIDDEN), lambda b: (0, 0)),      # packed small params (f32)
        ],
        out_specs=pl.BlockSpec((1, N, D), lambda b: (b, 0, 0)),
        compiler_params=pltpu.CompilerParams(
            dimension_semantics=("parallel",)),               # one batch per TC on v7x
    )(x, wqkv_bf, wout_bf, wfc1_bf, wfc2_bf, vec)


# ---------------- pure-JAX reference (for sanity check) ----------------
# Mirrors the kernel's precision choices (bf16 matmul operands, f32 accumulate,
# unnormalized-softmax-then-rescale) so the comparison isolates implementation
# correctness rather than precision policy.
def reference(x, params):
    (wqkv, wout, qg, kg, g1, b1, g2, b2, wfc1, bfc1, wfc2, bfc2) = params
    bf16 = jnp.bfloat16

    def mm(a, w):
        return jnp.dot(a.astype(bf16), w.astype(bf16),
                       preferred_element_type=jnp.float32)

    def ln(t, g, b):
        mu = jnp.mean(t, -1, keepdims=True)
        var = jnp.mean((t - mu) ** 2, -1, keepdims=True)
        return (t - mu) * jax.lax.rsqrt(var + LN_EPS) * g + b

    def rms(t, g):
        return t * jax.lax.rsqrt(jnp.mean(t * t, -1, keepdims=True) + RMS_EPS) * g

    xn = ln(x, g1, b1)
    qkv = mm(xn, wqkv).reshape(B, N, 3, H, DH)
    q = jnp.transpose(qkv[:, :, 0], (0, 2, 1, 3))           # (B, H, N, DH)
    k = jnp.transpose(qkv[:, :, 1], (0, 2, 1, 3))
    v = jnp.transpose(qkv[:, :, 2], (0, 2, 1, 3))
    q, k = rms(q, qg[0]), rms(k, kg[0])
    s = jnp.einsum('bhqd,bhkd->bhqk', q.astype(bf16), k.astype(bf16),
                   preferred_element_type=jnp.float32) / math.sqrt(DH)
    if CAUSAL:
        mask = jnp.tril(jnp.ones((N, N), bool))
        s = jnp.where(mask, s, -jnp.inf)
    m = jnp.max(s, -1, keepdims=True)
    p = jnp.exp(s - m)
    l = jnp.sum(p, -1, keepdims=True)
    o = jnp.einsum('bhqk,bhkd->bhqd', p.astype(bf16), v.astype(bf16),
                   preferred_element_type=jnp.float32) / l
    o = jnp.transpose(o, (0, 2, 1, 3)).reshape(B, N, D)
    x1 = x + mm(o, wout)
    x2n = ln(x1, g2, b2)
    hdn = jax.nn.gelu(mm(x2n, wfc1) + bfc1, approximate=True)
    return x1 + mm(hdn, wfc2) + bfc2


if __name__ == "__main__":
    key = jax.random.PRNGKey(0)
    ks = jax.random.split(key, 16)
    f32 = jnp.float32

    x = jax.random.normal(ks[0], (B, N, D), f32)

    params = (
        jax.random.normal(ks[1], (D, 3 * D), f32) * (1.0 / math.sqrt(D)),   # qkv weight (bias=False)
        jax.random.normal(ks[2], (D, D), f32) * (1.0 / math.sqrt(D)),       # out weight (bias=False)
        1.0 + 0.1 * jax.random.normal(ks[3], (1, DH), f32),                 # qk_norm q scale
        1.0 + 0.1 * jax.random.normal(ks[4], (1, DH), f32),                 # qk_norm k scale
        1.0 + 0.1 * jax.random.normal(ks[5], (1, D), f32),                  # norm1 gamma
        0.1 * jax.random.normal(ks[6], (1, D), f32),                        # norm1 beta
        1.0 + 0.1 * jax.random.normal(ks[7], (1, D), f32),                  # norm2 gamma
        0.1 * jax.random.normal(ks[8], (1, D), f32),                        # norm2 beta
        jax.random.normal(ks[9], (D, HIDDEN), f32) * (1.0 / math.sqrt(D)),  # mlp fc1 weight
        0.1 * jax.random.normal(ks[10], (1, HIDDEN), f32),                  # mlp fc1 bias
        jax.random.normal(ks[11], (HIDDEN, D), f32) * (1.0 / math.sqrt(HIDDEN)),  # mlp fc2 weight
        0.1 * jax.random.normal(ks[12], (1, D), f32),                       # mlp fc2 bias
    )

    out = transformer_forward(x, params)
    out = jax.block_until_ready(out)

    ref = jax.block_until_ready(reference(x, params))
    assert out.shape == (B, N, D)
    err = jnp.max(jnp.abs(out - ref))
    assert jnp.allclose(out, ref, rtol=1e-2, atol=1e-2), f"max abs diff {err}"

    print("KERNEL_OK")
</pallas_src>

<mosaic_0001>
module attributes {stable_mosaic.version = 11 : i64} {
  func.func @transformer_kernel(%arg0: i32, %arg1: memref<1x16x128xf32, #tpu.memory_space<vmem>>, %arg2: memref<128x384xbf16, #tpu.memory_space<vmem>>, %arg3: memref<128x128xbf16, #tpu.memory_space<vmem>>, %arg4: memref<128x512xbf16, #tpu.memory_space<vmem>>, %arg5: memref<512x128xbf16, #tpu.memory_space<vmem>>, %arg6: memref<3x512xf32, #tpu.memory_space<vmem>>, %arg7: memref<1x16x128xf32, #tpu.memory_space<vmem>>) attributes {dimension_semantics = [#tpu.dimension_semantics<parallel>], iteration_bounds = array<i64: 2>, scalar_prefetch = 0 : i64, scratch_operands = 0 : i64, tpu.core_type = #tpu.core_type<tc>, window_params = [{transform_indices = @transform_0, window_bounds = array<i64: 1, 16, 128>}, {pipeline_mode = #tpu.pipeline_mode<synchronous>, transform_indices = @transform_1, window_bounds = array<i64: 128, 384>}, {pipeline_mode = #tpu.pipeline_mode<synchronous>, transform_indices = @transform_2, window_bounds = array<i64: 128, 128>}, {pipeline_mode = #tpu.pipeline_mode<synchronous>, transform_indices = @transform_3, window_bounds = array<i64: 128, 512>}, {pipeline_mode = #tpu.pipeline_mode<synchronous>, transform_indices = @transform_4, window_bounds = array<i64: 512, 128>}, {pipeline_mode = #tpu.pipeline_mode<synchronous>, transform_indices = @transform_5, window_bounds = array<i64: 3, 512>}, {transform_indices = @transform_6, window_bounds = array<i64: 1, 16, 128>}]} {
    %c0 = arith.constant 0 : index
    %c0_0 = arith.constant 0 : index
    %c0_1 = arith.constant 0 : index
    %0 = vector.load %arg1[%c0, %c0_0, %c0_1] : memref<1x16x128xf32, #tpu.memory_space<vmem>>, vector<1x16x128xf32>
    %1 = vector.shape_cast %0 : vector<1x16x128xf32> to vector<16x128xf32>
    %c0_2 = arith.constant 0 : index
    %c0_3 = arith.constant 0 : index
    %2 = vector.load %arg6[%c0_2, %c0_3] : memref<3x512xf32, #tpu.memory_space<vmem>>, vector<1x128xf32>
    %c0_4 = arith.constant 0 : index
    %c128 = arith.constant 128 : index
    %3 = vector.load %arg6[%c0_4, %c128] : memref<3x512xf32, #tpu.memory_space<vmem>>, vector<1x128xf32>
    %c0_5 = arith.constant 0 : index
    %c256 = arith.constant 256 : index
    %4 = vector.load %arg6[%c0_5, %c256] : memref<3x512xf32, #tpu.memory_space<vmem>>, vector<1x128xf32>
    %c0_6 = arith.constant 0 : index
    %c384 = arith.constant 384 : index
    %5 = vector.load %arg6[%c0_6, %c384] : memref<3x512xf32, #tpu.memory_space<vmem>>, vector<1x128xf32>
    %c1 = arith.constant 1 : index
    %c0_7 = arith.constant 0 : index
    %6 = vector.load %arg6[%c1, %c0_7] : memref<3x512xf32, #tpu.memory_space<vmem>>, vector<1x128xf32>
    %c1_8 = arith.constant 1 : index
    %c128_9 = arith.constant 128 : index
    %7 = vector.load %arg6[%c1_8, %c128_9] : memref<3x512xf32, #tpu.memory_space<vmem>>, vector<1x32xf32>
    %8 = vector.shape_cast %7 : vector<1x32xf32> to vector<1x1x32xf32>
    %c1_10 = arith.constant 1 : index
    %c256_11 = arith.constant 256 : index
    %9 = vector.load %arg6[%c1_10, %c256_11] : memref<3x512xf32, #tpu.memory_space<vmem>>, vector<1x32xf32>
    %10 = vector.shape_cast %9 : vector<1x32xf32> to vector<1x1x32xf32>
    %c2 = arith.constant 2 : index
    %c0_12 = arith.constant 0 : index
    %11 = vector.load %arg6[%c2, %c0_12] : memref<3x512xf32, #tpu.memory_space<vmem>>, vector<1x512xf32>
    %cst = arith.constant dense<0.000000e+00> : vector<16xf32>
    %12 = vector.multi_reduction <add>, %1, %cst [1] : vector<16x128xf32> to vector<16xf32>
    %13 = vector.shape_cast %12 : vector<16xf32> to vector<16x1xf32>
    %cst_13 = arith.constant 1.280000e+02 : f32
    %14 = vector.broadcast %cst_13 : f32 to vector<16x1xf32>
    %15 = arith.divf %13, %14 : vector<16x1xf32>
    %16 = vector.broadcast %15 : vector<16x1xf32> to vector<16x128xf32>
    %17 = arith.subf %1, %16 : vector<16x128xf32>
    %18 = arith.mulf %17, %17 : vector<16x128xf32>
    %cst_14 = arith.constant dense<0.000000e+00> : vector<16xf32>
    %19 = vector.multi_reduction <add>, %18, %cst_14 [1] : vector<16x128xf32> to vector<16xf32>
    %20 = vector.shape_cast %19 : vector<16xf32> to vector<16x1xf32>
    %cst_15 = arith.constant 1.280000e+02 : f32
    %21 = vector.broadcast %cst_15 : f32 to vector<16x1xf32>
    %22 = arith.divf %20, %21 : vector<16x1xf32>
    %23 = vector.broadcast %15 : vector<16x1xf32> to vector<16x128xf32>
    %24 = arith.subf %1, %23 : vector<16x128xf32>
    %cst_16 = arith.constant 9.99999974E-6 : f32
    %25 = vector.broadcast %cst_16 : f32 to vector<16x1xf32>
    %26 = arith.addf %22, %25 : vector<16x1xf32>
    %27 = math.rsqrt %26 : vector<16x1xf32>
    %28 = vector.broadcast %27 : vector<16x1xf32> to vector<16x128xf32>
    %29 = arith.mulf %24, %28 : vector<16x128xf32>
    %30 = vector.broadcast %2 : vector<1x128xf32> to vector<16x128xf32>
    %31 = arith.mulf %29, %30 : vector<16x128xf32>
    %32 = vector.broadcast %3 : vector<1x128xf32> to vector<16x128xf32>
    %33 = arith.addf %31, %32 : vector<16x128xf32>
    %34 = arith.truncf %33 : vector<16x128xf32> to vector<16x128xbf16>
    %c0_17 = arith.constant 0 : index
    %c0_18 = arith.constant 0 : index
    %35 = vector.load %arg2[%c0_17, %c0_18] : memref<128x384xbf16, #tpu.memory_space<vmem>>, vector<128x384xbf16>
    %cst_19 = arith.constant dense<0.000000e+00> : vector<16x384xf32>
    %36 = tpu.matmul %34, %35, %cst_19 {dimension_numbers = #tpu.dot_dimension_numbers<[1], [0], [0], [1], [0, 0, 1, 1], [], []>} : vector<16x128xbf16>, vector<128x384xbf16>, vector<16x384xf32> -> vector<16x384xf32>
    %37 = vector.extract_strided_slice %36 {offsets = [0, 0], sizes = [16, 128], strides = [1, 1]} : vector<16x384xf32> to vector<16x128xf32>
    %38 = vector.shape_cast %37 : vector<16x128xf32> to vector<16x4x32xf32>
    %39 = tpu.transpose %38, [1, 0, 2] : vector<16x4x32xf32> -> vector<4x16x32xf32>
    %40 = vector.extract_strided_slice %36 {offsets = [0, 128], sizes = [16, 128], strides = [1, 1]} : vector<16x384xf32> to vector<16x128xf32>
    %41 = vector.shape_cast %40 : vector<16x128xf32> to vector<16x4x32xf32>
    %42 = tpu.transpose %41, [1, 0, 2] : vector<16x4x32xf32> -> vector<4x16x32xf32>
    %43 = vector.extract_strided_slice %36 {offsets = [0, 256], sizes = [16, 128], strides = [1, 1]} : vector<16x384xf32> to vector<16x128xf32>
    %44 = vector.shape_cast %43 : vector<16x128xf32> to vector<16x4x32xf32>
    %45 = tpu.transpose %44, [1, 0, 2] : vector<16x4x32xf32> -> vector<4x16x32xf32>
    %46 = arith.mulf %39, %39 : vector<4x16x32xf32>
    %cst_20 = arith.constant dense<0.000000e+00> : vector<4x16xf32>
    %47 = vector.multi_reduction <add>, %46, %cst_20 [2] : vector<4x16x32xf32> to vector<4x16xf32>
    %48 = vector.shape_cast %47 : vector<4x16xf32> to vector<4x16x1xf32>
    %cst_21 = arith.constant 3.200000e+01 : f32
    %49 = vector.broadcast %cst_21 : f32 to vector<4x16x1xf32>
    %50 = arith.divf %48, %49 : vector<4x16x1xf32>
    %cst_22 = arith.constant 9.99999997E-7 : f32
    %51 = vector.broadcast %cst_22 : f32 to vector<4x16x1xf32>
    %52 = arith.addf %50, %51 : vector<4x16x1xf32>
    %53 = math.rsqrt %52 : vector<4x16x1xf32>
    %54 = vector.broadcast %53 : vector<4x16x1xf32> to vector<4x16x32xf32>
    %55 = arith.mulf %39, %54 : vector<4x16x32xf32>
    %56 = vector.broadcast %8 : vector<1x1x32xf32> to vector<4x16x32xf32>
    %57 = arith.mulf %55, %56 : vector<4x16x32xf32>
    %58 = arith.mulf %42, %42 : vector<4x16x32xf32>
    %cst_23 = arith.constant dense<0.000000e+00> : vector<4x16xf32>
    %59 = vector.multi_reduction <add>, %58, %cst_23 [2] : vector<4x16x32xf32> to vector<4x16xf32>
    %60 = vector.shape_cast %59 : vector<4x16xf32> to vector<4x16x1xf32>
    %cst_24 = arith.constant 3.200000e+01 : f32
    %61 = vector.broadcast %cst_24 : f32 to vector<4x16x1xf32>
    %62 = arith.divf %60, %61 : vector<4x16x1xf32>
    %cst_25 = arith.constant 9.99999997E-7 : f32
    %63 = vector.broadcast %cst_25 : f32 to vector<4x16x1xf32>
    %64 = arith.addf %62, %63 : vector<4x16x1xf32>
    %65 = math.rsqrt %64 : vector<4x16x1xf32>
    %66 = vector.broadcast %65 : vector<4x16x1xf32> to vector<4x16x32xf32>
    %67 = arith.mulf %42, %66 : vector<4x16x32xf32>
    %68 = vector.broadcast %10 : vector<1x1x32xf32> to vector<4x16x32xf32>
    %69 = arith.mulf %67, %68 : vector<4x16x32xf32>
    %70 = arith.truncf %57 : vector<4x16x32xf32> to vector<4x16x32xbf16>
    %71 = arith.truncf %69 : vector<4x16x32xf32> to vector<4x16x32xbf16>
    "tpu.trace_start"() <{level = 10 : i32, message = "hqd,hkd->hqk"}> : () -> ()
    %cst_26 = arith.constant dense<0.000000e+00> : vector<4x16x16xf32>
    %72 = tpu.matmul %70, %71, %cst_26 {dimension_numbers = #tpu.dot_dimension_numbers<[2], [2], [1], [1], [0, 0, 0, 1, 1, 1], [0], [0]>} : vector<4x16x32xbf16>, vector<4x16x32xbf16>, vector<4x16x16xf32> -> vector<4x16x16xf32>
    "tpu.trace_stop"() : () -> ()
    %cst_27 = arith.constant 0.176776692 : f32
    %73 = vector.broadcast %cst_27 : f32 to vector<4x16x16xf32>
    %74 = arith.mulf %72, %73 : vector<4x16x16xf32>
    %cst_28 = arith.constant dense<0xFF800000> : vector<4x16xf32>
    %75 = vector.multi_reduction <maximumf>, %74, %cst_28 [2] : vector<4x16x16xf32> to vector<4x16xf32>
    %76 = vector.shape_cast %75 : vector<4x16xf32> to vector<4x16x1xf32>
    %77 = vector.broadcast %76 : vector<4x16x1xf32> to vector<4x16x16xf32>
    %78 = arith.subf %74, %77 : vector<4x16x16xf32>
    %79 = math.exp %78 : vector<4x16x16xf32>
    %cst_29 = arith.constant dense<0.000000e+00> : vector<4x16xf32>
    %80 = vector.multi_reduction <add>, %79, %cst_29 [2] : vector<4x16x16xf32> to vector<4x16xf32>
    %81 = vector.shape_cast %80 : vector<4x16xf32> to vector<4x16x1xf32>
    %82 = arith.truncf %79 : vector<4x16x16xf32> to vector<4x16x16xbf16>
    %83 = arith.truncf %45 : vector<4x16x32xf32> to vector<4x16x32xbf16>
    "tpu.trace_start"() <{level = 10 : i32, message = "hqk,hkd->hqd"}> : () -> ()
    %cst_30 = arith.constant dense<0.000000e+00> : vector<4x16x32xf32>
    %84 = tpu.matmul %82, %83, %cst_30 {dimension_numbers = #tpu.dot_dimension_numbers<[2], [1], [1], [2], [0, 0, 0, 1, 1, 2], [0], [0]>} : vector<4x16x16xbf16>, vector<4x16x32xbf16>, vector<4x16x32xf32> -> vector<4x16x32xf32>
    "tpu.trace_stop"() : () -> ()
    %85 = tpu.reciprocal %81 {approx = true} : vector<4x16x1xf32> -> vector<4x16x1xf32>
    %86 = vector.broadcast %85 : vector<4x16x1xf32> to vector<4x16x32xf32>
    %87 = arith.mulf %84, %86 : vector<4x16x32xf32>
    %88 = tpu.transpose %87, [1, 0, 2] : vector<4x16x32xf32> -> vector<16x4x32xf32>
    %89 = vector.shape_cast %88 : vector<16x4x32xf32> to vector<16x128xf32>
    %90 = arith.truncf %89 : vector<16x128xf32> to vector<16x128xbf16>
    %c0_31 = arith.constant 0 : index
    %c0_32 = arith.constant 0 : index
    %91 = vector.load %arg3[%c0_31, %c0_32] : memref<128x128xbf16, #tpu.memory_space<vmem>>, vector<128x128xbf16>
    %cst_33 = arith.constant dense<0.000000e+00> : vector<16x128xf32>
    %92 = tpu.matmul %90, %91, %cst_33 {dimension_numbers = #tpu.dot_dimension_numbers<[1], [0], [0], [1], [0, 0, 1, 1], [], []>} : vector<16x128xbf16>, vector<128x128xbf16>, vector<16x128xf32> -> vector<16x128xf32>
    %93 = arith.addf %1, %92 : vector<16x128xf32>
    %cst_34 = arith.constant dense<0.000000e+00> : vector<16xf32>
    %94 = vector.multi_reduction <add>, %93, %cst_34 [1] : vector<16x128xf32> to vector<16xf32>
    %95 = vector.shape_cast %94 : vector<16xf32> to vector<16x1xf32>
    %cst_35 = arith.constant 1.280000e+02 : f32
    %96 = vector.broadcast %cst_35 : f32 to vector<16x1xf32>
    %97 = arith.divf %95, %96 : vector<16x1xf32>
    %98 = vector.broadcast %97 : vector<16x1xf32> to vector<16x128xf32>
    %99 = arith.subf %93, %98 : vector<16x128xf32>
    %100 = arith.mulf %99, %99 : vector<16x128xf32>
    %cst_36 = arith.constant dense<0.000000e+00> : vector<16xf32>
    %101 = vector.multi_reduction <add>, %100, %cst_36 [1] : vector<16x128xf32> to vector<16xf32>
    %102 = vector.shape_cast %101 : vector<16xf32> to vector<16x1xf32>
    %cst_37 = arith.constant 1.280000e+02 : f32
    %103 = vector.broadcast %cst_37 : f32 to vector<16x1xf32>
    %104 = arith.divf %102, %103 : vector<16x1xf32>
    %105 = vector.broadcast %97 : vector<16x1xf32> to vector<16x128xf32>
    %106 = arith.subf %93, %105 : vector<16x128xf32>
    %cst_38 = arith.constant 9.99999974E-6 : f32
    %107 = vector.broadcast %cst_38 : f32 to vector<16x1xf32>
    %108 = arith.addf %104, %107 : vector<16x1xf32>
    %109 = math.rsqrt %108 : vector<16x1xf32>
    %110 = vector.broadcast %109 : vector<16x1xf32> to vector<16x128xf32>
    %111 = arith.mulf %106, %110 : vector<16x128xf32>
    %112 = vector.broadcast %4 : vector<1x128xf32> to vector<16x128xf32>
    %113 = arith.mulf %111, %112 : vector<16x128xf32>
    %114 = vector.broadcast %5 : vector<1x128xf32> to vector<16x128xf32>
    %115 = arith.addf %113, %114 : vector<16x128xf32>
    %116 = arith.truncf %115 : vector<16x128xf32> to vector<16x128xbf16>
    %c0_39 = arith.constant 0 : index
    %c0_40 = arith.constant 0 : index
    %117 = vector.load %arg4[%c0_39, %c0_40] : memref<128x512xbf16, #tpu.memory_space<vmem>>, vector<128x512xbf16>
    %cst_41 = arith.constant dense<0.000000e+00> : vector<16x512xf32>
    %118 = tpu.matmul %116, %117, %cst_41 {dimension_numbers = #tpu.dot_dimension_numbers<[1], [0], [0], [1], [0, 0, 1, 1], [], []>} : vector<16x128xbf16>, vector<128x512xbf16>, vector<16x512xf32> -> vector<16x512xf32>
    %119 = vector.broadcast %11 : vector<1x512xf32> to vector<16x512xf32>
    %120 = arith.addf %118, %119 : vector<16x512xf32>
    %121 = arith.mulf %120, %120 : vector<16x512xf32>
    %122 = arith.mulf %120, %121 : vector<16x512xf32>
    %cst_42 = arith.constant 4.471500e-02 : f32
    %123 = vector.broadcast %cst_42 : f32 to vector<16x512xf32>
    %124 = arith.mulf %123, %122 : vector<16x512xf32>
    %125 = arith.addf %120, %124 : vector<16x512xf32>
    %cst_43 = arith.constant 0.797884583 : f32
    %126 = vector.broadcast %cst_43 : f32 to vector<16x512xf32>
    %127 = arith.mulf %126, %125 : vector<16x512xf32>
    %128 = math.tanh %127 : vector<16x512xf32>
    %cst_44 = arith.constant 1.000000e+00 : f32
    %129 = vector.broadcast %cst_44 : f32 to vector<16x512xf32>
    %130 = arith.addf %129, %128 : vector<16x512xf32>
    %cst_45 = arith.constant 5.000000e-01 : f32
    %131 = vector.broadcast %cst_45 : f32 to vector<16x512xf32>
    %132 = arith.mulf %131, %130 : vector<16x512xf32>
    %133 = arith.mulf %120, %132 : vector<16x512xf32>
    %134 = arith.truncf %133 : vector<16x512xf32> to vector<16x512xbf16>
    %c0_46 = arith.constant 0 : index
    %c0_47 = arith.constant 0 : index
    %135 = vector.load %arg5[%c0_46, %c0_47] : memref<512x128xbf16, #tpu.memory_space<vmem>>, vector<512x128xbf16>
    %cst_48 = arith.constant dense<0.000000e+00> : vector<16x128xf32>
    %136 = tpu.matmul %134, %135, %cst_48 {dimension_numbers = #tpu.dot_dimension_numbers<[1], [0], [0], [1], [0, 0, 1, 1], [], []>} : vector<16x512xbf16>, vector<512x128xbf16>, vector<16x128xf32> -> vector<16x128xf32>
    %137 = vector.broadcast %6 : vector<1x128xf32> to vector<16x128xf32>
    %138 = arith.addf %136, %137 : vector<16x128xf32>
    %139 = arith.addf %93, %138 : vector<16x128xf32>
    %c0_49 = arith.constant 0 : index
    %c0_50 = arith.constant 0 : index
    %c0_51 = arith.constant 0 : index
    %140 = vector.load %arg7[%c0_49, %c0_50, %c0_51] : memref<1x16x128xf32, #tpu.memory_space<vmem>>, vector<1x16x128xf32>
    %141 = vector.shape_cast %140 : vector<1x16x128xf32> to vector<16x128xf32>
    %142 = vector.shape_cast %139 : vector<16x128xf32> to vector<1x16x128xf32>
    tpu.vector_store %arg7[%c0_49, %c0_50, %c0_51], %142 {strides = array<i32>} : memref<1x16x128xf32, #tpu.memory_space<vmem>>, vector<1x16x128xf32>,
    return
  }
  func.func @transform_0(%arg0: i32) -> (i32, i32, i32) {
    %c0_i32 = arith.constant 0 : i32
    %c0_i32_0 = arith.constant 0 : i32
    %c0_i32_1 = arith.constant 0 : i32
    return %arg0, %c0_i32, %c0_i32_0 : i32, i32, i32
  }
  func.func @transform_1(%arg0: i32) -> (i32, i32) {
    %c0_i32 = arith.constant 0 : i32
    %c0_i32_0 = arith.constant 0 : i32
    %c0_i32_1 = arith.constant 0 : i32
    return %c0_i32, %c0_i32_0 : i32, i32
  }
  func.func @transform_2(%arg0: i32) -> (i32, i32) {
    %c0_i32 = arith.constant 0 : i32
    %c0_i32_0 = arith.constant 0 : i32
    %c0_i32_1 = arith.constant 0 : i32
    return %c0_i32, %c0_i32_0 : i32, i32
  }
  func.func @transform_3(%arg0: i32) -> (i32, i32) {
    %c0_i32 = arith.constant 0 : i32
    %c0_i32_0 = arith.constant 0 : i32
    %c0_i32_1 = arith.constant 0 : i32
    return %c0_i32, %c0_i32_0 : i32, i32
  }
  func.func @transform_4(%arg0: i32) -> (i32, i32) {
    %c0_i32 = arith.constant 0 : i32
    %c0_i32_0 = arith.constant 0 : i32
    %c0_i32_1 = arith.constant 0 : i32
    return %c0_i32, %c0_i32_0 : i32, i32
  }
  func.func @transform_5(%arg0: i32) -> (i32, i32) {
    %c0_i32 = arith.constant 0 : i32
    %c0_i32_0 = arith.constant 0 : i32
    %c0_i32_1 = arith.constant 0 : i32
    return %c0_i32, %c0_i32_0 : i32, i32
  }
  func.func @transform_6(%arg0: i32) -> (i32, i32, i32) {
    %c0_i32 = arith.constant 0 : i32
    %c0_i32_0 = arith.constant 0 : i32
    %c0_i32_1 = arith.constant 0 : i32
    return %arg0, %c0_i32, %c0_i32_0 : i32, i32, i32
  }
}

</mosaic_0001>

<llo_original>
// kernel: tpu_custom_call.1
$region0: #{tpu_custom_call.1}
  #allocation0 [shape = 'u32[]', space=smem, size = 0x4, offset = 0x4, fixed_abs, tag = 'smem constant byte address 0x4 - core index']
  #allocation1 [shape = 'u32[144,128]{1,0:T(1,128)}', space=vmem, size = 0x12000, scoped, tag = 'internal scratch']
  %s0 = inlined_call_operand.hbm [shape: f32[2,16,128], index: 0, kind: input, shape index: {}]
  %s1 = inlined_call_operand.hbm [shape: bf16[128,384], index: 1, kind: input, shape index: {}]
  %s2 = inlined_call_operand.hbm [shape: bf16[128,128], index: 2, kind: input, shape index: {}]
  %s3 = inlined_call_operand.hbm [shape: bf16[128,512], index: 3, kind: input, shape index: {}]
  %s4 = inlined_call_operand.hbm [shape: bf16[512,128], index: 4, kind: input, shape index: {}]
  %s5 = inlined_call_operand.hbm [shape: f32[3,512], index: 5, kind: input, shape index: {}]
  %s6 = inlined_call_operand.hbm [shape: f32[2,16,128], index: 6, kind: output, shape index: {}]
  %s7 = sld [smem:[#allocation0]]
  $region81: #{tpu_custom_call.1} parent=0
    _
  %s9 = ssub.s32 1, %s7
  %s10 = scalar_select 0, %s9, %s7
  $region1: #{tpu_custom_call.1} parent=0
    #allocation2 [shape = 'u8[16384]{0}', space=vmem, size = 0x4000, scoped, tag = 'input window, operand 0']
    #allocation3 [shape = 's32[2]{0}', space=sflag, size = 0x8, scoped, tag = 'scoped memory for tpu_custom_call.1']
    #allocation4 [shape = 's32[2]{0}', space=sflag, size = 0x8, scoped, tag = 'scoped memory for tpu_custom_call.1']
    #allocation5 [shape = 'u8[98304]{0}', space=vmem, size = 0x18000, scoped, tag = 'input window, operand 1, single buffered']
    #allocation6 [shape = 's32[1]{0}', space=sflag, size = 0x4, scoped, tag = 'scoped memory for tpu_custom_call.1']
    #allocation7 [shape = 'u8[32768]{0}', space=vmem, size = 0x8000, scoped, tag = 'input window, operand 2, single buffered']
    #allocation8 [shape = 'u8[131072]{0}', space=vmem, size = 0x20000, scoped, tag = 'input window, operand 3, single buffered']
    #allocation9 [shape = 's32[1]{0}', space=sflag, size = 0x4, scoped, tag = 'scoped memory for tpu_custom_call.1']
    #allocation10 [shape = 'u8[131072]{0}', space=vmem, size = 0x20000, scoped, tag = 'input window, operand 4, single buffered']
    #allocation11 [shape = 'u8[8192]{0}', space=vmem, size = 0x2000, scoped, tag = 'input window, operand 5, single buffered']
    #allocation12 [shape = 's32[1]{0}', space=sflag, size = 0x4, scoped, tag = 'scoped memory for tpu_custom_call.1']
    #allocation13 [shape = 'u8[16384]{0}', space=vmem, size = 0x4000, scoped, tag = 'output window, operand 0']
    %11 = vsyncpa [#allocation3], 0
    %s12 = scalar_lea.sflag [#allocation3], 1
    %13 = vsyncpa %s12, 0
    %14 = vsyncpa [#allocation6], 0
    %15 = vsyncpa [#allocation9], 0
    %16 = vsyncpa [#allocation12], 0
    %17 = vsyncpa [#allocation4], 0
    %s18 = scalar_lea.sflag [#allocation4], 1
    %19 = vsyncpa %s18, 0
    loop: start=0, step=1, limit=4
    $region2: #{tpu_custom_call.1} parent=1 // loop_pre_header
      _
    $region3: #{tpu_custom_call.1} parent=1 // loop_header
      %s21 = sphi 0, %s25
      %p22 = scmp.ge.s32.totalorder %s21, 4
      %s31 = sphi 0, %s33
      %s34 = sphi 0, %s31
      %s35 = sphi 0, %s34
      %s51 = sphi 0, %s35
      %s55 = sphi 0, %s55
      %s57 = sphi 0, %s55
      %s58 = sphi 0, %s57
      %s72 = sphi 0, %s58
      %s76 = sphi 0, %s76
      %s78 = sphi 0, %s76
      %s79 = sphi 0, %s78
      %s93 = sphi 0, %s79
      %s97 = sphi 0, %s97
      %s99 = sphi 0, %s97
      %s100 = sphi 0, %s99
      %s114 = sphi 0, %s100
      %s118 = sphi 0, %s118
      %s120 = sphi 0, %s118
      %s121 = sphi 0, %s120
      %s135 = sphi 0, %s121
      %s139 = sphi 0, %s139
      %s141 = sphi 0, %s139
      %s142 = sphi 0, %s141
      %s156 = sphi 0, %s142
      %s162 = sphi 0, %s164
      %s165 = sphi 0, %s162
      %s166 = sphi 0, %s165
      %s182 = sphi 0, %s166
    $region4: #{tpu_custom_call.1} parent=1 // loop_header_branch
      %24 = sbr.rel (%p22) target = $region8
    $region5: #{tpu_custom_call.1} parent=1 // loop_body
      %s26 = ssub.s32 %s21, 1
      %s27 = ssub.s32 %s21, 2
      %s28 = sadd.s32 %s21, 1
      %s29 = ssub.s32 %s21, %s28
      %p30 = scmp.eq.s32.totalorder %s29, 0
      %s32 = sadd.s32 %s31, 1
      %s33 = scalar_select %p30, %s31, %s32
      %p36 = pneg %p30
      %p37 = scmp.eq.s32.totalorder %s21, 1
      %p38 = por %p36, %p37
      %p39 = scmp.ne.s32.totalorder %s31, %s34
      %p40 = scmp.eq.s32.totalorder %s21, 0
      %p41 = por %p39, %p40
      %p42 = scmp.ne.s32.totalorder %s31, %s34
      %p43 = scmp.eq.s32.totalorder %s26, 1
      %p44 = por %p42, %p43
      %p45 = scmp.ne.s32.totalorder %s34, %s35
      %p46 = scmp.eq.s32.totalorder %s26, 0
      %p47 = por %p45, %p46
      %p48 = scmp.ne.s32.totalorder %s34, %s35
      %p49 = scmp.eq.s32.totalorder %s27, 1
      %p50 = por %p48, %p49
      %p52 = scmp.ne.s32.totalorder %s35, %s51
      %p53 = scmp.eq.s32.totalorder %s27, 0
      %p54 = por %p52, %p53
      %s56 = sadd.s32 %s55, 1
      %p59 = scmp.eq.s32.totalorder %s21, 1
      %p60 = scmp.ne.s32.totalorder %s55, %s57
      %p61 = scmp.eq.s32.totalorder %s21, 0
      %p62 = por %p60, %p61
      %p63 = scmp.ne.s32.totalorder %s55, %s57
      %p64 = scmp.eq.s32.totalorder %s26, 1
      %p65 = por %p63, %p64
      %p66 = scmp.ne.s32.totalorder %s57, %s58
      %p67 = scmp.eq.s32.totalorder %s26, 0
      %p68 = por %p66, %p67
      %p69 = scmp.ne.s32.totalorder %s57, %s58
      %p70 = scmp.eq.s32.totalorder %s27, 1
      %p71 = por %p69, %p70
      %p73 = scmp.ne.s32.totalorder %s58, %s72
      %p74 = scmp.eq.s32.totalorder %s27, 0
      %p75 = por %p73, %p74
      %s77 = sadd.s32 %s76, 1
      %p80 = scmp.eq.s32.totalorder %s21, 1
      %p81 = scmp.ne.s32.totalorder %s76, %s78
      %p82 = scmp.eq.s32.totalorder %s21, 0
      %p83 = por %p81, %p82
      %p84 = scmp.ne.s32.totalorder %s76, %s78
      %p85 = scmp.eq.s32.totalorder %s26, 1
      %p86 = por %p84, %p85
      %p87 = scmp.ne.s32.totalorder %s78, %s79
      %p88 = scmp.eq.s32.totalorder %s26, 0
      %p89 = por %p87, %p88
      %p90 = scmp.ne.s32.totalorder %s78, %s79
      %p91 = scmp.eq.s32.totalorder %s27, 1
      %p92 = por %p90, %p91
      %p94 = scmp.ne.s32.totalorder %s79, %s93
      %p95 = scmp.eq.s32.totalorder %s27, 0
      %p96 = por %p94, %p95
      %s98 = sadd.s32 %s97, 1
      %p101 = scmp.eq.s32.totalorder %s21, 1
      %p102 = scmp.ne.s32.totalorder %s97, %s99
      %p103 = scmp.eq.s32.totalorder %s21, 0
      %p104 = por %p102, %p103
      %p105 = scmp.ne.s32.totalorder %s97, %s99
      %p106 = scmp.eq.s32.totalorder %s26, 1
      %p107 = por %p105, %p106
      %p108 = scmp.ne.s32.totalorder %s99, %s100
      %p109 = scmp.eq.s32.totalorder %s26, 0
      %p110 = por %p108, %p109
      %p111 = scmp.ne.s32.totalorder %s99, %s100
      %p112 = scmp.eq.s32.totalorder %s27, 1
      %p113 = por %p111, %p112
      %p115 = scmp.ne.s32.totalorder %s100, %s114
      %p116 = scmp.eq.s32.totalorder %s27, 0
      %p117 = por %p115, %p116
      %s119 = sadd.s32 %s118, 1
      %p122 = scmp.eq.s32.totalorder %s21, 1
      %p123 = scmp.ne.s32.totalorder %s118, %s120
      %p124 = scmp.eq.s32.totalorder %s21, 0
      %p125 = por %p123, %p124
      %p126 = scmp.ne.s32.totalorder %s118, %s120
      %p127 = scmp.eq.s32.totalorder %s26, 1
      %p128 = por %p126, %p127
      %p129 = scmp.ne.s32.totalorder %s120, %s121
      %p130 = scmp.eq.s32.totalorder %s26, 0
      %p131 = por %p129, %p130
      %p132 = scmp.ne.s32.totalorder %s120, %s121
      %p133 = scmp.eq.s32.totalorder %s27, 1
      %p134 = por %p132, %p133
      %p136 = scmp.ne.s32.totalorder %s121, %s135
      %p137 = scmp.eq.s32.totalorder %s27, 0
      %p138 = por %p136, %p137
      %s140 = sadd.s32 %s139, 1
      %p143 = scmp.eq.s32.totalorder %s21, 1
      %p144 = scmp.ne.s32.totalorder %s139, %s141
      %p145 = scmp.eq.s32.totalorder %s21, 0
      %p146 = por %p144, %p145
      %p147 = scmp.ne.s32.totalorder %s139, %s141
      %p148 = scmp.eq.s32.totalorder %s26, 1
      %p149 = por %p147, %p148
      %p150 = scmp.ne.s32.totalorder %s141, %s142
      %p151 = scmp.eq.s32.totalorder %s26, 0
      %p152 = por %p150, %p151
      %p153 = scmp.ne.s32.totalorder %s141, %s142
      %p154 = scmp.eq.s32.totalorder %s27, 1
      %p155 = por %p153, %p154
      %p157 = scmp.ne.s32.totalorder %s142, %s156
      %p158 = scmp.eq.s32.totalorder %s27, 0
      %p159 = por %p157, %p158
      %s160 = ssub.s32 %s21, %s28
      %p161 = scmp.eq.s32.totalorder %s160, 0
      %s163 = sadd.s32 %s162, 1
      %s164 = scalar_select %p161, %s162, %s163
      %p167 = pneg %p161
      %p168 = scmp.eq.s32.totalorder %s21, 1
      %p169 = por %p167, %p168
      %p170 = scmp.ne.s32.totalorder %s162, %s165
      %p171 = scmp.eq.s32.totalorder %s21, 0
      %p172 = por %p170, %p171
      %p173 = scmp.ne.s32.totalorder %s162, %s165
      %p174 = scmp.eq.s32.totalorder %s26, 1
      %p175 = por %p173, %p174
      %p176 = scmp.ne.s32.totalorder %s165, %s166
      %p177 = scmp.eq.s32.totalorder %s26, 0
      %p178 = por %p176, %p177
      %p179 = scmp.ne.s32.totalorder %s165, %s166
      %p180 = scmp.eq.s32.totalorder %s27, 1
      %p181 = por %p179, %p180
      %p183 = scmp.ne.s32.totalorder %s166, %s182
      %p184 = scmp.eq.s32.totalorder %s27, 0
      %p185 = por %p183, %p184
      %p186 = scmp.le.s32.totalorder 1, %s21
      %p187 = scmp.lt.s32.totalorder %s21, 3
      %p188 = pnand %p186, %p187
      %p189 = pneg %p188
      // Predicated region
      $region9: #{tpu_custom_call.1} parent=5 // pred_check
        _
      $region10: #{tpu_custom_call.1} parent=5 // pred_check_branch
        %191 = sbr.rel (%p188) target = $region12
      $region11: #{tpu_custom_call.1} parent=5 // pred_region
        %s192 = ssub.s32 %s21, 1
        // Predicated region
        $region13: #{tpu_custom_call.1} parent=11 // pred_check
          %p193 = pneg %p68
        $region14: #{tpu_custom_call.1} parent=11 // pred_check_branch
          %195 = sbr.rel (%p193) target = $region16
        $region15: #{tpu_custom_call.1} parent=11 // pred_region
          %s197 = ssub.s32 3072, 3072
          %198 = vsyncadd [#allocation6], %s197
          %s199 = sshll.u32 [#allocation5], 4
          %s200 = int_to_ptr.vmem [resolvable:$true] %s199
          %205 = dma.hbm_to_vmem [thread:$0]  %s1, 3072, %s200, [#allocation6], 192, 192, 12
        $region16: #{tpu_custom_call.1} parent=11 // pred_fallthru
          _
        // Predicated region
        $region17: #{tpu_custom_call.1} parent=11 // pred_check
          %p206 = pneg %p89
        $region18: #{tpu_custom_call.1} parent=11 // pred_check_branch
          %208 = sbr.rel (%p206) target = $region20
        $region19: #{tpu_custom_call.1} parent=11 // pred_region
          %s210 = ssub.s32 1024, 1024
          %211 = vsyncadd [#allocation6], %s210
          %s212 = sshll.u32 [#allocation7], 4
          %s213 = int_to_ptr.vmem [resolvable:$true] %s212
          %218 = dma.hbm_to_vmem [thread:$0]  %s2, 1024, %s213, [#allocation6], 64, 64, 4
        $region20: #{tpu_custom_call.1} parent=11 // pred_fallthru
          _
        // Predicated region
        $region21: #{tpu_custom_call.1} parent=11 // pred_check
          %p219 = pneg %p110
        $region22: #{tpu_custom_call.1} parent=11 // pred_check_branch
          %221 = sbr.rel (%p219) target = $region24
        $region23: #{tpu_custom_call.1} parent=11 // pred_region
          %s223 = ssub.s32 4096, 4096
          %224 = vsyncadd [#allocation9], %s223
          %s225 = sshll.u32 [#allocation8], 4
          %s226 = int_to_ptr.vmem [resolvable:$true] %s225
          %231 = dma.hbm_to_vmem [thread:$0]  %s3, 4096, %s226, [#allocation9], 256, 256, 16
        $region24: #{tpu_custom_call.1} parent=11 // pred_fallthru
          _
        // Predicated region
        $region25: #{tpu_custom_call.1} parent=11 // pred_check
          %p232 = pneg %p131
        $region26: #{tpu_custom_call.1} parent=11 // pred_check_branch
          %234 = sbr.rel (%p232) target = $region28
        $region27: #{tpu_custom_call.1} parent=11 // pred_region
          %s236 = ssub.s32 4096, 4096
          %237 = vsyncadd [#allocation9], %s236
          %s238 = sshll.u32 [#allocation10], 4
          %s239 = int_to_ptr.vmem [resolvable:$true] %s238
          %244 = dma.hbm_to_vmem [thread:$0]  %s4, 4096, %s239, [#allocation9], 64, 64, 4
        $region28: #{tpu_custom_call.1} parent=11 // pred_fallthru
          _
        // Predicated region
        $region29: #{tpu_custom_call.1} parent=11 // pred_check
          %p245 = pneg %p152
        $region30: #{tpu_custom_call.1} parent=11 // pred_check_branch
          %247 = sbr.rel (%p245) target = $region32
        $region31: #{tpu_custom_call.1} parent=11 // pred_region
          %s249 = ssub.s32 256, 256
          %250 = vsyncadd [#allocation12], %s249
          %s252 = sshll.u32 [#allocation11], 4
          %s253 = int_to_ptr.vmem [resolvable:$true] %s252
          %255 = dma.hbm_to_vmem [thread:$0]  %s5, 256, %s253, [#allocation12]
        $region32: #{tpu_custom_call.1} parent=11 // pred_fallthru
          _
      $region12: #{tpu_custom_call.1} parent=5 // pred_fallthru
        _
      %p256 = scmp.lt.s32.totalorder %s21, 2
      // Predicated region
      $region33: #{tpu_custom_call.1} parent=5 // pred_check
        %p257 = pneg %p256
      $region34: #{tpu_custom_call.1} parent=5 // pred_check_branch
        %259 = sbr.rel (%p257) target = $region36
      $region35: #{tpu_custom_call.1} parent=5 // pred_region
        // Predicated region
        $region37: #{tpu_custom_call.1} parent=35 // pred_check
          %p260 = pneg %p41
        $region38: #{tpu_custom_call.1} parent=35 // pred_check_branch
          %262 = sbr.rel (%p260) target = $region40
        $region39: #{tpu_custom_call.1} parent=35 // pred_region
          %s263 = sand.u32 %s31, 1
          %s264 = scalar_lea.sflag [#allocation3], %s263
          %s265 = sand.u32 %s31, 1
          %s266 = smul.addr %s265, 16
          %s267 = scalar_lea.vmem [#allocation2], %s266
          %s269 = ssub.s32 256, 256
          %270 = vsyncadd %s264, %s269
          %s271 = smul.addr %s21, 2
          %s272 = smul.addr %s271, 128
          %s273 = scalar_lea.hbm %s0, %s272
          %s274 = sshll.u32 %s267, 4
          %s275 = int_to_ptr.vmem [resolvable:$true] %s274
          %280 = dma.hbm_to_vmem [thread:$0]  %s273, 256, %s275, %s264, 128, 128, 8
        $region40: #{tpu_custom_call.1} parent=35 // pred_fallthru
          _
      $region36: #{tpu_custom_call.1} parent=5 // pred_fallthru
        _
      %p281 = scmp.le.s32.totalorder 1, %s21
      %p282 = scmp.lt.s32.totalorder %s21, 3
      %p283 = pnand %p281, %p282
      %p284 = pneg %p283
      // Predicated region
      $region41: #{tpu_custom_call.1} parent=5 // pred_check
        _
      $region42: #{tpu_custom_call.1} parent=5 // pred_check_branch
        %286 = sbr.rel (%p283) target = $region44
      $region43: #{tpu_custom_call.1} parent=5 // pred_region
        %s287 = ssub.s32 %s21, 1
        %s288 = sand.u32 %s34, 1
        %s289 = scalar_lea.sflag [#allocation3], %s288
        %s290 = sand.u32 %s34, 1
        %s291 = smul.addr %s290, 16
        %s292 = scalar_lea.vmem [#allocation2], %s291
        // Predicated region
        $region45: #{tpu_custom_call.1} parent=43 // pred_check
          %p293 = pneg %p47
        $region46: #{tpu_custom_call.1} parent=43 // pred_check_branch
          %295 = sbr.rel (%p293) target = $region48
        $region47: #{tpu_custom_call.1} parent=43 // pred_region
          %296 = dma.done %s289, 256
        $region48: #{tpu_custom_call.1} parent=43 // pred_fallthru
          _
        // Predicated region
        $region49: #{tpu_custom_call.1} parent=43 // pred_check
          %p297 = pneg %p68
        $region50: #{tpu_custom_call.1} parent=43 // pred_check_branch
          %299 = sbr.rel (%p297) target = $region52
        $region51: #{tpu_custom_call.1} parent=43 // pred_region
          %300 = dma.done [#allocation6], 3072
        $region52: #{tpu_custom_call.1} parent=43 // pred_fallthru
          _
        // Predicated region
        $region53: #{tpu_custom_call.1} parent=43 // pred_check
          %p301 = pneg %p89
        $region54: #{tpu_custom_call.1} parent=43 // pred_check_branch
          %303 = sbr.rel (%p301) target = $region56
        $region55: #{tpu_custom_call.1} parent=43 // pred_region
          %304 = dma.done [#allocation6], 1024
        $region56: #{tpu_custom_call.1} parent=43 // pred_fallthru
          _
        // Predicated region
        $region57: #{tpu_custom_call.1} parent=43 // pred_check
          %p305 = pneg %p110
        $region58: #{tpu_custom_call.1} parent=43 // pred_check_branch
          %307 = sbr.rel (%p305) target = $region60
        $region59: #{tpu_custom_call.1} parent=43 // pred_region
          %308 = dma.done [#allocation9], 4096
        $region60: #{tpu_custom_call.1} parent=43 // pred_fallthru
          _
        // Predicated region
        $region61: #{tpu_custom_call.1} parent=43 // pred_check
          %p309 = pneg %p131
        $region62: #{tpu_custom_call.1} parent=43 // pred_check_branch
          %311 = sbr.rel (%p309) target = $region64
        $region63: #{tpu_custom_call.1} parent=43 // pred_region
          %312 = dma.done [#allocation9], 4096
        $region64: #{tpu_custom_call.1} parent=43 // pred_fallthru
          _
        // Predicated region
        $region65: #{tpu_custom_call.1} parent=43 // pred_check
          %p313 = pneg %p152
        $region66: #{tpu_custom_call.1} parent=43 // pred_check_branch
          %315 = sbr.rel (%p313) target = $region68
        $region67: #{tpu_custom_call.1} parent=43 // pred_region
          %316 = dma.done [#allocation12], 256
        $region68: #{tpu_custom_call.1} parent=43 // pred_fallthru
          _
        %s317 = sand.u32 %s34, 1
        %s318 = scalar_lea.sflag [#allocation3], %s317
        %s319 = sand.u32 %s34, 1
        %s320 = smul.addr %s319, 16
        %s321 = scalar_lea.vmem [#allocation2], %s320
        %p322 = pneg %p47
        %p323 = pneg %p44
        %p324 = pneg %p68
        %p325 = pneg %p65
        %p326 = pneg %p89
        %p327 = pneg %p86
        %p328 = pneg %p110
        %p329 = pneg %p107
        %p330 = pneg %p131
        %p331 = pneg %p128
        %p332 = pneg %p152
        %p333 = pneg %p149
        %p334 = pneg %p178
        %p335 = pneg %p175
        %s336 = sand.u32 %s165, 1
        %s337 = scalar_lea.sflag [#allocation4], %s336
        %s338 = sand.u32 %s165, 1
        %s339 = smul.addr %s338, 16
        %s340 = scalar_lea.vmem [#allocation13], %s339
        %v342 = vld [vmem:[%s292] sm:$0xff]
        %v343 = vld [vmem:[%s292 + $0x8] sm:$0xff]
        %v344 = vld [vmem:[#allocation11] sm:$0x1]
        %v345 = vld [vmem:[#allocation11 + $0x4] sm:$0x1]
        %v346 = vld [vmem:[#allocation11 + $0x8] sm:$0x1]
        %v347 = vld [vmem:[#allocation11 + $0xc] sm:$0x1]
        %v348 = vld [vmem:[#allocation11 + $0x1] sm:$0x1]
        %v349 = vld [vmem:[#allocation11 + $0x5] sm:$0x1]
        %v350 = vld [vmem:[#allocation11 + $0x9] sm:$0x1]
        %s351 = scalar_lea.vmem [#allocation11], 2
        %v352 = vld [vmem:[%s351] ss:$4 sm:$0xf]
        %353 = vadd.xlane.f32.xlu0 %v342
        %v354 = vpop.xlane.xlu0 %353
        %355 = vadd.xlane.f32.xlu0 %v343
        %v356 = vpop.xlane.xlu0 %355
        %v357 = vrcp.pop 128.0
        %v358 = vmul.f32 %v354, %v357
        %v359 = vmul.f32 %v356, %v357
        %v360 = vsub.f32 %v342, %v358
        %v361 = vsub.f32 %v343, %v359
        %v362 = vmul.f32 %v360, %v360
        %v363 = vmul.f32 %v361, %v361
        %364 = vadd.xlane.f32.xlu0 %v362
        %v365 = vpop.xlane.xlu0 %364
        %366 = vadd.xlane.f32.xlu0 %v363
        %v367 = vpop.xlane.xlu0 %366
        %v368 = vmul.f32 %v365, %v357
        %v369 = vmul.f32 %v367, %v357
        %v370 = vadd.f32 %v368, 1e-05
        %v371 = vadd.f32 %v369, 1e-05
        %v372 = vrsqrt.pop %v370
        %v373 = vrsqrt.pop %v371
        %v374 = vmul.f32 %v360, %v372
        %v375 = vmul.f32 %v361, %v373
        %v376 = vlaneseq
        %v377 = vshrl.u32 %v376, 7
        %v378 = vsub.s32 0, %v377
        %v379 = vrot.slane %v344, %v378
        %v380 = vmul.f32 %v374, %v379
        %v381 = vmul.f32 %v375, %v379
        %v382 = vlaneseq
        %v383 = vshrl.u32 %v382, 7
        %v384 = vsub.s32 0, %v383
        %v385 = vrot.slane %v345, %v384
        %v386 = vadd.f32 %v380, %v385
        %v387 = vadd.f32 %v381, %v385
        %v388 = vpack.c.bf16 %v387, %v386
        %v389 = vld [vmem:[#allocation5] sm:$0xff]
        %v390 = vld [vmem:[#allocation5 + $0x8] sm:$0xf]
        %v391 = vld [vmem:[#allocation5 + $0xc] sm:$0xff]
        %v392 = vld [vmem:[#allocation5 + $0x14] sm:$0xf]
        %v393 = vld [vmem:[#allocation5 + $0x18] sm:$0xff]
        %v394 = vld [vmem:[#allocation5 + $0x20] sm:$0xf]
        %v395 = vld [vmem:[#allocation5 + $0x24] sm:$0xff]
        %v396 = vld [vmem:[#allocation5 + $0x2c] sm:$0xf]
        %v397 = vld [vmem:[#allocation5 + $0x30] sm:$0xff]
        %v398 = vld [vmem:[#allocation5 + $0x38] sm:$0xf]
        %v399 = vld [vmem:[#allocation5 + $0x3c] sm:$0xff]
        %v400 = vld [vmem:[#allocation5 + $0x44] sm:$0xf]
        %v401 = vld [vmem:[#allocation5 + $0x48] sm:$0xff]
        %v402 = vld [vmem:[#allocation5 + $0x50] sm:$0xf]
        %v403 = vld [vmem:[#allocation5 + $0x54] sm:$0xff]
        %v404 = vld [vmem:[#allocation5 + $0x5c] sm:$0xf]
        %v405 = vld [vmem:[#allocation5 + $0x60] sm:$0xff]
        %v406 = vld [vmem:[#allocation5 + $0x68] sm:$0xf]
        %v407 = vld [vmem:[#allocation5 + $0x6c] sm:$0xff]
        %v408 = vld [vmem:[#allocation5 + $0x74] sm:$0xf]
        %v409 = vld [vmem:[#allocation5 + $0x78] sm:$0xff]
        %v410 = vld [vmem:[#allocation5 + $0x80] sm:$0xf]
        %v411 = vld [vmem:[#allocation5 + $0x84] sm:$0xff]
        %v412 = vld [vmem:[#allocation5 + $0x8c] sm:$0xf]
        %v413 = vld [vmem:[#allocation5 + $0x90] sm:$0xff]
        %v414 = vld [vmem:[#allocation5 + $0x98] sm:$0xf]
        %v415 = vld [vmem:[#allocation5 + $0x9c] sm:$0xff]
        %v416 = vld [vmem:[#allocation5 + $0xa4] sm:$0xf]
        %v417 = vld [vmem:[#allocation5 + $0xa8] sm:$0xff]
        %v418 = vld [vmem:[#allocation5 + $0xb0] sm:$0xf]
        %v419 = vld [vmem:[#allocation5 + $0xb4] sm:$0xff]
        %v420 = vld [vmem:[#allocation5 + $0xbc] sm:$0xf]
        %v453 = vunpack.c.l.b16 %v389
        %v454 = vunpack.c.h.b16 %v389
        %v455 = vunpack.c.l.b16 %v390
        %v456 = vunpack.c.l.b16 %v391
        %v457 = vunpack.c.h.b16 %v391
        %v458 = vunpack.c.l.b16 %v392
        %v459 = vunpack.c.l.b16 %v393
        %v460 = vunpack.c.h.b16 %v393
        %v461 = vunpack.c.l.b16 %v394
        %v462 = vunpack.c.l.b16 %v395
        %v463 = vunpack.c.h.b16 %v395
        %v464 = vunpack.c.l.b16 %v396
        %v465 = vunpack.c.l.b16 %v397
        %v466 = vunpack.c.h.b16 %v397
        %v467 = vunpack.c.l.b16 %v398
        %v468 = vunpack.c.l.b16 %v399
        %v469 = vunpack.c.h.b16 %v399
        %v470 = vunpack.c.l.b16 %v400
        %v471 = vunpack.c.l.b16 %v401
        %v472 = vunpack.c.h.b16 %v401
        %v473 = vunpack.c.l.b16 %v402
        %v474 = vunpack.c.l.b16 %v403
        %v475 = vunpack.c.h.b16 %v403
        %v476 = vunpack.c.l.b16 %v404
        %v477 = vunpack.c.l.b16 %v405
        %v478 = vunpack.c.h.b16 %v405
        %v479 = vunpack.c.l.b16 %v406
        %v480 = vunpack.c.l.b16 %v407
        %v481 = vunpack.c.h.b16 %v407
        %v482 = vunpack.c.l.b16 %v408
        %v483 = vunpack.c.l.b16 %v409
        %v484 = vunpack.c.h.b16 %v409
        %v485 = vunpack.c.l.b16 %v410
        %v486 = vunpack.c.l.b16 %v411
        %v487 = vunpack.c.h.b16 %v411
        %v488 = vunpack.c.l.b16 %v412
        %v489 = vunpack.c.l.b16 %v413
        %v490 = vunpack.c.h.b16 %v413
        %v491 = vunpack.c.l.b16 %v414
        %v492 = vunpack.c.l.b16 %v415
        %v493 = vunpack.c.h.b16 %v415
        %v494 = vunpack.c.l.b16 %v416
        %v495 = vunpack.c.l.b16 %v417
        %v496 = vunpack.c.h.b16 %v417
        %v497 = vunpack.c.l.b16 %v418
        %v498 = vunpack.c.l.b16 %v419
        %v499 = vunpack.c.h.b16 %v419
        %v500 = vunpack.c.l.b16 %v420
        %v501 = vpack.c.b16 %v456, %v453
        %v502 = vpack.c.b16 %v457, %v454
        %v503 = vpack.c.b16 %v458, %v455
        %v504 = vpack.c.b16 %v462, %v459
        %v505 = vpack.c.b16 %v463, %v460
        %v506 = vpack.c.b16 %v464, %v461
        %v507 = vpack.c.b16 %v468, %v465
        %v508 = vpack.c.b16 %v469, %v466
        %v509 = vpack.c.b16 %v470, %v467
        %v510 = vpack.c.b16 %v474, %v471
        %v511 = vpack.c.b16 %v475, %v472
        %v512 = vpack.c.b16 %v476, %v473
        %v513 = vpack.c.b16 %v480, %v477
        %v514 = vpack.c.b16 %v481, %v478
        %v515 = vpack.c.b16 %v482, %v479
        %v516 = vpack.c.b16 %v486, %v483
        %v517 = vpack.c.b16 %v487, %v484
        %v518 = vpack.c.b16 %v488, %v485
        %v519 = vpack.c.b16 %v492, %v489
        %v520 = vpack.c.b16 %v493, %v490
        %v521 = vpack.c.b16 %v494, %v491
        %v522 = vpack.c.b16 %v498, %v495
        %v523 = vpack.c.b16 %v499, %v496
        %v524 = vpack.c.b16 %v500, %v497
        %549 = vmatprep.subr.bf16.mxu0 %v523
        %550 = vmatpush1.bf16.msra.mxu0 %v522
        %551 = vmatprep.subr.bf16.mxu0 %v520
        %552 = vmatpush1.bf16.msra.mxu0 %v519
        %553 = vmatprep.subr.bf16.mxu0 %v517
        %554 = vmatpush1.bf16.msra.mxu0 %v516
        %555 = vmatprep.subr.bf16.mxu0 %v514
        %556 = vmatpush1.bf16.msra.mxu0 %v513
        %557 = vmatprep.subr.bf16.mxu0 %v511
        %558 = vmatpush1.bf16.msra.mxu0 %v510
        %559 = vmatprep.subr.bf16.mxu0 %v508
        %560 = vmatpush1.bf16.msra.mxu0 %v507
        %561 = vmatprep.subr.bf16.mxu0 %v505
        %562 = vmatpush1.bf16.msra.mxu0 %v504
        %563 = vmatprep.subr.bf16.mxu0 %v502
        %564 = vmatpush1.bf16.msra.mxu0 %v501
        %565 = vmatprep.subr.bf16.mxu0 0
        %566 = vmatpush2.bf16.msra.mxu0 0
        %567 = vmatprep.subr.bf16.mxu0 0
        %568 = vmatpush2.bf16.msra.mxu0 0
        %569 = vmatprep.subr.bf16.mxu0 0
        %570 = vmatpush2.bf16.msra.mxu0 0
        %571 = vmatprep.subr.bf16.mxu0 0
        %572 = vmatpush2.bf16.msra.mxu0 0
        %573 = vmatprep.subr.bf16.mxu0 0
        %574 = vmatpush2.bf16.msra.mxu0 0
        %575 = vmatprep.subr.bf16.mxu0 0
        %576 = vmatpush2.bf16.msra.mxu0 0
        %577 = vmatprep.subr.bf16.mxu0 0
        %578 = vmatpush2.bf16.msra.mxu0 0
        %579 = vmatprep.subr.bf16.mxu0 0
        %580 = vmatpush2.bf16.msra.mxu0 0
        %581 = vmatprep.mubr.bf16.mxu0 0
        %582 = vmatmul.mubr.bf16.gmra.mxu0 %v388
        %v583 = vpop.f32.mrf.mxu0
        %v584 = vadd.f32 0.0, %v583
        %v585 = vpop.f32.mrf.mxu0
        %v586 = vadd.f32 0.0, %v585
        %v587 = vpop.f32.mrf.mxu0
        %v588 = vadd.f32 0.0, %v587
        %v589 = vpop.f32.mrf.mxu0
        %v590 = vadd.f32 0.0, %v589
        %591 = vdwg.mxu0
        %592 = vmatprep.subr.bf16.mxu0 0
        %593 = vmatpush1.bf16.msra.mxu0 %v524
        %594 = vmatprep.subr.bf16.mxu0 0
        %595 = vmatpush1.bf16.msra.mxu0 %v521
        %596 = vmatprep.subr.bf16.mxu0 0
        %597 = vmatpush1.bf16.msra.mxu0 %v518
        %598 = vmatprep.subr.bf16.mxu0 0
        %599 = vmatpush1.bf16.msra.mxu0 %v515
        %600 = vmatprep.subr.bf16.mxu0 0
        %601 = vmatpush1.bf16.msra.mxu0 %v512
        %602 = vmatprep.subr.bf16.mxu0 0
        %603 = vmatpush1.bf16.msra.mxu0 %v509
        %604 = vmatprep.subr.bf16.mxu0 0
        %605 = vmatpush1.bf16.msra.mxu0 %v506
        %606 = vmatprep.subr.bf16.mxu0 0
        %607 = vmatpush1.bf16.msra.mxu0 %v503
        %608 = vmatprep.subr.bf16.mxu0 0
        %609 = vmatpush2.bf16.msra.mxu0 0
        %610 = vmatprep.subr.bf16.mxu0 0
        %611 = vmatpush2.bf16.msra.mxu0 0
        %612 = vmatprep.subr.bf16.mxu0 0
        %613 = vmatpush2.bf16.msra.mxu0 0
        %614 = vmatprep.subr.bf16.mxu0 0
        %615 = vmatpush2.bf16.msra.mxu0 0
        %616 = vmatprep.subr.bf16.mxu0 0
        %617 = vmatpush2.bf16.msra.mxu0 0
        %618 = vmatprep.subr.bf16.mxu0 0
        %619 = vmatpush2.bf16.msra.mxu0 0
        %620 = vmatprep.subr.bf16.mxu0 0
        %621 = vmatpush2.bf16.msra.mxu0 0
        %622 = vmatprep.subr.bf16.mxu0 0
        %623 = vmatpush2.bf16.msra.mxu0 0
        %624 = vmatprep.mubr.bf16.mxu0 0
        %625 = vmatmul.mubr.bf16.gmra.mxu0 %v388
        %v626 = vpop.f32.mrf.mxu0
        %v627 = vadd.f32 0.0, %v626
        %v628 = vpop.f32.mrf.mxu0
        %v629 = vpop.f32.mrf.mxu0
        %v630 = vadd.f32 0.0, %v629
        %v631 = vpop.f32.mrf.mxu0
        %632 = vdwg.mxu0
        %635 = vrot.lane.b32.xlu0 %v584, 96
        %v636 = vpop.permute.xlu0 %635
        %637 = vrot.lane.b32.xlu0 %v588, 96
        %v638 = vpop.permute.xlu0 %637
        %641 = vrot.lane.b32.xlu0 %v584, 64
        %v642 = vpop.permute.xlu0 %641
        %643 = vrot.lane.b32.xlu0 %v588, 64
        %v644 = vpop.permute.xlu0 %643
        %647 = vrot.lane.b32.xlu0 %v584, 32
        %v648 = vpop.permute.xlu0 %647
        %649 = vrot.lane.b32.xlu0 %v588, 32
        %v650 = vpop.permute.xlu0 %649
        %v653 = vcombine.low %v584, %v642
        %v654 = vcombine.high %v584, %v642
        %v656 = vunpack.c.l.s4 1983009808
        %v657 = vunpack.c.0.s8 %v656
        %v658 = vlaneseq
        %v659 = vshrl.u32 %v658, 7
        %v660 = vsub.s32 %v657, %v659
        %v661 = vrot.slane %v653, %v660
        %v663 = vunpack.c.l.s4 1983009808
        %v664 = vunpack.c.0.s8 %v663
        %v665 = vlaneseq
        %v666 = vshrl.u32 %v665, 7
        %v667 = vsub.s32 %v664, %v666
        %v668 = vrot.slane %v654, %v667
        %v669 = vcombine.low %v636, %v648
        %v670 = vcombine.high %v636, %v648
        %v672 = vunpack.c.l.s4 1983009808
        %v673 = vunpack.c.0.s8 %v672
        %v674 = vlaneseq
        %v675 = vshrl.u32 %v674, 7
        %v676 = vsub.s32 %v673, %v675
        %v677 = vrot.slane %v669, %v676
        %v679 = vunpack.c.l.s4 1983009808
        %v680 = vunpack.c.0.s8 %v679
        %v681 = vlaneseq
        %v682 = vshrl.u32 %v681, 7
        %v683 = vsub.s32 %v680, %v682
        %v684 = vrot.slane %v670, %v683
        %v685 = vcombine.low %v661, %v677
        %v686 = vcombine.high %v661, %v677
        %v688 = vunpack.c.l.s4 1934713408
        %v689 = vunpack.c.0.s8 %v688
        %v690 = vlaneseq
        %v691 = vshrl.u32 %v690, 7
        %v692 = vsub.s32 %v689, %v691
        %v693 = vrot.slane %v685, %v692
        %v695 = vunpack.c.l.s4 1934713408
        %v696 = vunpack.c.0.s8 %v695
        %v697 = vlaneseq
        %v698 = vshrl.u32 %v697, 7
        %v699 = vsub.s32 %v696, %v698
        %v700 = vrot.slane %v686, %v699
        %v701 = vcombine.low %v668, %v684
        %v702 = vcombine.high %v668, %v684
        %v704 = vunpack.c.l.s4 1934713408
        %v705 = vunpack.c.0.s8 %v704
        %v706 = vlaneseq
        %v707 = vshrl.u32 %v706, 7
        %v708 = vsub.s32 %v705, %v707
        %v709 = vrot.slane %v701, %v708
        %v711 = vunpack.c.l.s4 1934713408
        %v712 = vunpack.c.0.s8 %v711
        %v713 = vlaneseq
        %v714 = vshrl.u32 %v713, 7
        %v715 = vsub.s32 %v712, %v714
        %v716 = vrot.slane %v702, %v715
        %v717 = vcombine.high %v693, 0.0
        %v718 = vcombine.high %v700, 0.0
        %v719 = vcombine.high %v709, 0.0
        %v720 = vcombine.high %v716, 0.0
        %v721 = vcombine.low %v588, %v644
        %v722 = vcombine.high %v588, %v644
        %v724 = vunpack.c.l.s4 1983009808
        %v725 = vunpack.c.0.s8 %v724
        %v726 = vlaneseq
        %v727 = vshrl.u32 %v726, 7
        %v728 = vsub.s32 %v725, %v727
        %v729 = vrot.slane %v721, %v728
        %v731 = vunpack.c.l.s4 1983009808
        %v732 = vunpack.c.0.s8 %v731
        %v733 = vlaneseq
        %v734 = vshrl.u32 %v733, 7
        %v735 = vsub.s32 %v732, %v734
        %v736 = vrot.slane %v722, %v735
        %v737 = vcombine.low %v638, %v650
        %v738 = vcombine.high %v638, %v650
        %v740 = vunpack.c.l.s4 1983009808
        %v741 = vunpack.c.0.s8 %v740
        %v742 = vlaneseq
        %v743 = vshrl.u32 %v742, 7
        %v744 = vsub.s32 %v741, %v743
        %v745 = vrot.slane %v737, %v744
        %v747 = vunpack.c.l.s4 1983009808
        %v748 = vunpack.c.0.s8 %v747
        %v749 = vlaneseq
        %v750 = vshrl.u32 %v749, 7
        %v751 = vsub.s32 %v748, %v750
        %v752 = vrot.slane %v738, %v751
        %v753 = vcombine.low %v729, %v745
        %v754 = vcombine.high %v729, %v745
        %v756 = vunpack.c.l.s4 1934713408
        %v757 = vunpack.c.0.s8 %v756
        %v758 = vlaneseq
        %v759 = vshrl.u32 %v758, 7
        %v760 = vsub.s32 %v757, %v759
        %v761 = vrot.slane %v753, %v760
        %v763 = vunpack.c.l.s4 1934713408
        %v764 = vunpack.c.0.s8 %v763
        %v765 = vlaneseq
        %v766 = vshrl.u32 %v765, 7
        %v767 = vsub.s32 %v764, %v766
        %v768 = vrot.slane %v754, %v767
        %v769 = vcombine.low %v736, %v752
        %v770 = vcombine.high %v736, %v752
        %v772 = vunpack.c.l.s4 1934713408
        %v773 = vunpack.c.0.s8 %v772
        %v774 = vlaneseq
        %v775 = vshrl.u32 %v774, 7
        %v776 = vsub.s32 %v773, %v775
        %v777 = vrot.slane %v769, %v776
        %v779 = vunpack.c.l.s4 1934713408
        %v780 = vunpack.c.0.s8 %v779
        %v781 = vlaneseq
        %v782 = vshrl.u32 %v781, 7
        %v783 = vsub.s32 %v780, %v782
        %v784 = vrot.slane %v770, %v783
        %v785 = vcombine.high %v761, 0.0
        %v786 = vcombine.high %v768, 0.0
        %v787 = vcombine.high %v777, 0.0
        %v788 = vcombine.high %v784, 0.0
        %v789 = vcombine.low %v693, %v700
        %v791 = vunpack.c.l.s4 1983009808
        %v792 = vunpack.c.0.s8 %v791
        %v793 = vlaneseq
        %v794 = vshrl.u32 %v793, 7
        %v795 = vsub.s32 %v792, %v794
        %v796 = vrot.slane %v789, %v795
        %v797 = vcombine.low %v717, %v718
        %v799 = vunpack.c.l.s4 1983009808
        %v800 = vunpack.c.0.s8 %v799
        %v801 = vlaneseq
        %v802 = vshrl.u32 %v801, 7
        %v803 = vsub.s32 %v800, %v802
        %v804 = vrot.slane %v797, %v803
        %v805 = vcombine.low %v709, %v716
        %v807 = vunpack.c.l.s4 1983009808
        %v808 = vunpack.c.0.s8 %v807
        %v809 = vlaneseq
        %v810 = vshrl.u32 %v809, 7
        %v811 = vsub.s32 %v808, %v810
        %v812 = vrot.slane %v805, %v811
        %v813 = vcombine.low %v719, %v720
        %v815 = vunpack.c.l.s4 1983009808
        %v816 = vunpack.c.0.s8 %v815
        %v817 = vlaneseq
        %v818 = vshrl.u32 %v817, 7
        %v819 = vsub.s32 %v816, %v818
        %v820 = vrot.slane %v813, %v819
        %v821 = vcombine.low %v796, %v804
        %v822 = vcombine.high %v796, %v804
        %v824 = vunpack.c.l.s4 1934713408
        %v825 = vunpack.c.0.s8 %v824
        %v826 = vlaneseq
        %v827 = vshrl.u32 %v826, 7
        %v828 = vsub.s32 %v825, %v827
        %v829 = vrot.slane %v821, %v828
        %v831 = vunpack.c.l.s4 1934713408
        %v832 = vunpack.c.0.s8 %v831
        %v833 = vlaneseq
        %v834 = vshrl.u32 %v833, 7
        %v835 = vsub.s32 %v832, %v834
        %v836 = vrot.slane %v822, %v835
        %v837 = vcombine.low %v812, %v820
        %v838 = vcombine.high %v812, %v820
        %v840 = vunpack.c.l.s4 1934713408
        %v841 = vunpack.c.0.s8 %v840
        %v842 = vlaneseq
        %v843 = vshrl.u32 %v842, 7
        %v844 = vsub.s32 %v841, %v843
        %v845 = vrot.slane %v837, %v844
        %v847 = vunpack.c.l.s4 1934713408
        %v848 = vunpack.c.0.s8 %v847
        %v849 = vlaneseq
        %v850 = vshrl.u32 %v849, 7
        %v851 = vsub.s32 %v848, %v850
        %v852 = vrot.slane %v838, %v851
        %v853 = vcombine.low %v829, %v845
        %v854 = vcombine.high %v829, %v845
        %v855 = vcombine.low %v836, %v852
        %v856 = vcombine.high %v836, %v852
        %v857 = vcombine.low %v761, %v768
        %v859 = vunpack.c.l.s4 1983009808
        %v860 = vunpack.c.0.s8 %v859
        %v861 = vlaneseq
        %v862 = vshrl.u32 %v861, 7
        %v863 = vsub.s32 %v860, %v862
        %v864 = vrot.slane %v857, %v863
        %v865 = vcombine.low %v785, %v786
        %v867 = vunpack.c.l.s4 1983009808
        %v868 = vunpack.c.0.s8 %v867
        %v869 = vlaneseq
        %v870 = vshrl.u32 %v869, 7
        %v871 = vsub.s32 %v868, %v870
        %v872 = vrot.slane %v865, %v871
        %v873 = vcombine.low %v777, %v784
        %v875 = vunpack.c.l.s4 1983009808
        %v876 = vunpack.c.0.s8 %v875
        %v877 = vlaneseq
        %v878 = vshrl.u32 %v877, 7
        %v879 = vsub.s32 %v876, %v878
        %v880 = vrot.slane %v873, %v879
        %v881 = vcombine.low %v787, %v788
        %v883 = vunpack.c.l.s4 1983009808
        %v884 = vunpack.c.0.s8 %v883
        %v885 = vlaneseq
        %v886 = vshrl.u32 %v885, 7
        %v887 = vsub.s32 %v884, %v886
        %v888 = vrot.slane %v881, %v887
        %v889 = vcombine.low %v864, %v872
        %v890 = vcombine.high %v864, %v872
        %v892 = vunpack.c.l.s4 1934713408
        %v893 = vunpack.c.0.s8 %v892
        %v894 = vlaneseq
        %v895 = vshrl.u32 %v894, 7
        %v896 = vsub.s32 %v893, %v895
        %v897 = vrot.slane %v889, %v896
        %v899 = vunpack.c.l.s4 1934713408
        %v900 = vunpack.c.0.s8 %v899
        %v901 = vlaneseq
        %v902 = vshrl.u32 %v901, 7
        %v903 = vsub.s32 %v900, %v902
        %v904 = vrot.slane %v890, %v903
        %v905 = vcombine.low %v880, %v888
        %v906 = vcombine.high %v880, %v888
        %v908 = vunpack.c.l.s4 1934713408
        %v909 = vunpack.c.0.s8 %v908
        %v910 = vlaneseq
        %v911 = vshrl.u32 %v910, 7
        %v912 = vsub.s32 %v909, %v911
        %v913 = vrot.slane %v905, %v912
        %v915 = vunpack.c.l.s4 1934713408
        %v916 = vunpack.c.0.s8 %v915
        %v917 = vlaneseq
        %v918 = vshrl.u32 %v917, 7
        %v919 = vsub.s32 %v916, %v918
        %v920 = vrot.slane %v906, %v919
        %v921 = vcombine.low %v897, %v913
        %v922 = vcombine.high %v897, %v913
        %v923 = vcombine.low %v904, %v920
        %v924 = vcombine.high %v904, %v920
        %927 = vrot.lane.b32.xlu0 %v586, 96
        %v928 = vpop.permute.xlu0 %927
        %929 = vrot.lane.b32.xlu0 %v590, 96
        %v930 = vpop.permute.xlu0 %929
        %933 = vrot.lane.b32.xlu0 %v586, 64
        %v934 = vpop.permute.xlu0 %933
        %935 = vrot.lane.b32.xlu0 %v590, 64
        %v936 = vpop.permute.xlu0 %935
        %939 = vrot.lane.b32.xlu0 %v586, 32
        %v940 = vpop.permute.xlu0 %939
        %941 = vrot.lane.b32.xlu0 %v590, 32
        %v942 = vpop.permute.xlu0 %941
        %v945 = vcombine.low %v586, %v934
        %v946 = vcombine.high %v586, %v934
        %v948 = vunpack.c.l.s4 1983009808
        %v949 = vunpack.c.0.s8 %v948
        %v950 = vlaneseq
        %v951 = vshrl.u32 %v950, 7
        %v952 = vsub.s32 %v949, %v951
        %v953 = vrot.slane %v945, %v952
        %v955 = vunpack.c.l.s4 1983009808
        %v956 = vunpack.c.0.s8 %v955
        %v957 = vlaneseq
        %v958 = vshrl.u32 %v957, 7
        %v959 = vsub.s32 %v956, %v958
        %v960 = vrot.slane %v946, %v959
        %v961 = vcombine.low %v928, %v940
        %v962 = vcombine.high %v928, %v940
        %v964 = vunpack.c.l.s4 1983009808
        %v965 = vunpack.c.0.s8 %v964
        %v966 = vlaneseq
        %v967 = vshrl.u32 %v966, 7
        %v968 = vsub.s32 %v965, %v967
        %v969 = vrot.slane %v961, %v968
        %v971 = vunpack.c.l.s4 1983009808
        %v972 = vunpack.c.0.s8 %v971
        %v973 = vlaneseq
        %v974 = vshrl.u32 %v973, 7
        %v975 = vsub.s32 %v972, %v974
        %v976 = vrot.slane %v962, %v975
        %v977 = vcombine.low %v953, %v969
        %v978 = vcombine.high %v953, %v969
        %v980 = vunpack.c.l.s4 1934713408
        %v981 = vunpack.c.0.s8 %v980
        %v982 = vlaneseq
        %v983 = vshrl.u32 %v982, 7
        %v984 = vsub.s32 %v981, %v983
        %v985 = vrot.slane %v977, %v984
        %v987 = vunpack.c.l.s4 1934713408
        %v988 = vunpack.c.0.s8 %v987
        %v989 = vlaneseq
        %v990 = vshrl.u32 %v989, 7
        %v991 = vsub.s32 %v988, %v990
        %v992 = vrot.slane %v978, %v991
        %v993 = vcombine.low %v960, %v976
        %v994 = vcombine.high %v960, %v976
        %v996 = vunpack.c.l.s4 1934713408
        %v997 = vunpack.c.0.s8 %v996
        %v998 = vlaneseq
        %v999 = vshrl.u32 %v998, 7
        %v1000 = vsub.s32 %v997, %v999
        %v1001 = vrot.slane %v993, %v1000
        %v1003 = vunpack.c.l.s4 1934713408
        %v1004 = vunpack.c.0.s8 %v1003
        %v1005 = vlaneseq
        %v1006 = vshrl.u32 %v1005, 7
        %v1007 = vsub.s32 %v1004, %v1006
        %v1008 = vrot.slane %v994, %v1007
        %v1009 = vcombine.high %v985, 0.0
        %v1010 = vcombine.high %v992, 0.0
        %v1011 = vcombine.high %v1001, 0.0
        %v1012 = vcombine.high %v1008, 0.0
        %v1013 = vcombine.low %v590, %v936
        %v1014 = vcombine.high %v590, %v936
        %v1016 = vunpack.c.l.s4 1983009808
        %v1017 = vunpack.c.0.s8 %v1016
        %v1018 = vlaneseq
        %v1019 = vshrl.u32 %v1018, 7
        %v1020 = vsub.s32 %v1017, %v1019
        %v1021 = vrot.slane %v1013, %v1020
        %v1023 = vunpack.c.l.s4 1983009808
        %v1024 = vunpack.c.0.s8 %v1023
        %v1025 = vlaneseq
        %v1026 = vshrl.u32 %v1025, 7
        %v1027 = vsub.s32 %v1024, %v1026
        %v1028 = vrot.slane %v1014, %v1027
        %v1029 = vcombine.low %v930, %v942
        %v1030 = vcombine.high %v930, %v942
        %v1032 = vunpack.c.l.s4 1983009808
        %v1033 = vunpack.c.0.s8 %v1032
        %v1034 = vlaneseq
        %v1035 = vshrl.u32 %v1034, 7
        %v1036 = vsub.s32 %v1033, %v1035
        %v1037 = vrot.slane %v1029, %v1036
        %v1039 = vunpack.c.l.s4 1983009808
        %v1040 = vunpack.c.0.s8 %v1039
        %v1041 = vlaneseq
        %v1042 = vshrl.u32 %v1041, 7
        %v1043 = vsub.s32 %v1040, %v1042
        %v1044 = vrot.slane %v1030, %v1043
        %v1045 = vcombine.low %v1021, %v1037
        %v1046 = vcombine.high %v1021, %v1037
        %v1048 = vunpack.c.l.s4 1934713408
        %v1049 = vunpack.c.0.s8 %v1048
        %v1050 = vlaneseq
        %v1051 = vshrl.u32 %v1050, 7
        %v1052 = vsub.s32 %v1049, %v1051
        %v1053 = vrot.slane %v1045, %v1052
        %v1055 = vunpack.c.l.s4 1934713408
        %v1056 = vunpack.c.0.s8 %v1055
        %v1057 = vlaneseq
        %v1058 = vshrl.u32 %v1057, 7
        %v1059 = vsub.s32 %v1056, %v1058
        %v1060 = vrot.slane %v1046, %v1059
        %v1061 = vcombine.low %v1028, %v1044
        %v1062 = vcombine.high %v1028, %v1044
        %v1064 = vunpack.c.l.s4 1934713408
        %v1065 = vunpack.c.0.s8 %v1064
        %v1066 = vlaneseq
        %v1067 = vshrl.u32 %v1066, 7
        %v1068 = vsub.s32 %v1065, %v1067
        %v1069 = vrot.slane %v1061, %v1068
        %v1071 = vunpack.c.l.s4 1934713408
        %v1072 = vunpack.c.0.s8 %v1071
        %v1073 = vlaneseq
        %v1074 = vshrl.u32 %v1073, 7
        %v1075 = vsub.s32 %v1072, %v1074
        %v1076 = vrot.slane %v1062, %v1075
        %v1077 = vcombine.high %v1053, 0.0
        %v1078 = vcombine.high %v1060, 0.0
        %v1079 = vcombine.high %v1069, 0.0
        %v1080 = vcombine.high %v1076, 0.0
        %v1081 = vcombine.low %v985, %v992
        %v1083 = vunpack.c.l.s4 1983009808
        %v1084 = vunpack.c.0.s8 %v1083
        %v1085 = vlaneseq
        %v1086 = vshrl.u32 %v1085, 7
        %v1087 = vsub.s32 %v1084, %v1086
        %v1088 = vrot.slane %v1081, %v1087
        %v1089 = vcombine.low %v1009, %v1010
        %v1091 = vunpack.c.l.s4 1983009808
        %v1092 = vunpack.c.0.s8 %v1091
        %v1093 = vlaneseq
        %v1094 = vshrl.u32 %v1093, 7
        %v1095 = vsub.s32 %v1092, %v1094
        %v1096 = vrot.slane %v1089, %v1095
        %v1097 = vcombine.low %v1001, %v1008
        %v1099 = vunpack.c.l.s4 1983009808
        %v1100 = vunpack.c.0.s8 %v1099
        %v1101 = vlaneseq
        %v1102 = vshrl.u32 %v1101, 7
        %v1103 = vsub.s32 %v1100, %v1102
        %v1104 = vrot.slane %v1097, %v1103
        %v1105 = vcombine.low %v1011, %v1012
        %v1107 = vunpack.c.l.s4 1983009808
        %v1108 = vunpack.c.0.s8 %v1107
        %v1109 = vlaneseq
        %v1110 = vshrl.u32 %v1109, 7
        %v1111 = vsub.s32 %v1108, %v1110
        %v1112 = vrot.slane %v1105, %v1111
        %v1113 = vcombine.low %v1088, %v1096
        %v1114 = vcombine.high %v1088, %v1096
        %v1116 = vunpack.c.l.s4 1934713408
        %v1117 = vunpack.c.0.s8 %v1116
        %v1118 = vlaneseq
        %v1119 = vshrl.u32 %v1118, 7
        %v1120 = vsub.s32 %v1117, %v1119
        %v1121 = vrot.slane %v1113, %v1120
        %v1123 = vunpack.c.l.s4 1934713408
        %v1124 = vunpack.c.0.s8 %v1123
        %v1125 = vlaneseq
        %v1126 = vshrl.u32 %v1125, 7
        %v1127 = vsub.s32 %v1124, %v1126
        %v1128 = vrot.slane %v1114, %v1127
        %v1129 = vcombine.low %v1104, %v1112
        %v1130 = vcombine.high %v1104, %v1112
        %v1132 = vunpack.c.l.s4 1934713408
        %v1133 = vunpack.c.0.s8 %v1132
        %v1134 = vlaneseq
        %v1135 = vshrl.u32 %v1134, 7
        %v1136 = vsub.s32 %v1133, %v1135
        %v1137 = vrot.slane %v1129, %v1136
        %v1139 = vunpack.c.l.s4 1934713408
        %v1140 = vunpack.c.0.s8 %v1139
        %v1141 = vlaneseq
        %v1142 = vshrl.u32 %v1141, 7
        %v1143 = vsub.s32 %v1140, %v1142
        %v1144 = vrot.slane %v1130, %v1143
        %v1145 = vcombine.low %v1121, %v1137
        %v1146 = vcombine.high %v1121, %v1137
        %v1147 = vcombine.low %v1128, %v1144
        %v1148 = vcombine.high %v1128, %v1144
        %v1149 = vcombine.low %v1053, %v1060
        %v1151 = vunpack.c.l.s4 1983009808
        %v1152 = vunpack.c.0.s8 %v1151
        %v1153 = vlaneseq
        %v1154 = vshrl.u32 %v1153, 7
        %v1155 = vsub.s32 %v1152, %v1154
        %v1156 = vrot.slane %v1149, %v1155
        %v1157 = vcombine.low %v1077, %v1078
        %v1159 = vunpack.c.l.s4 1983009808
        %v1160 = vunpack.c.0.s8 %v1159
        %v1161 = vlaneseq
        %v1162 = vshrl.u32 %v1161, 7
        %v1163 = vsub.s32 %v1160, %v1162
        %v1164 = vrot.slane %v1157, %v1163
        %v1165 = vcombine.low %v1069, %v1076
        %v1167 = vunpack.c.l.s4 1983009808
        %v1168 = vunpack.c.0.s8 %v1167
        %v1169 = vlaneseq
        %v1170 = vshrl.u32 %v1169, 7
        %v1171 = vsub.s32 %v1168, %v1170
        %v1172 = vrot.slane %v1165, %v1171
        %v1173 = vcombine.low %v1079, %v1080
        %v1175 = vunpack.c.l.s4 1983009808
        %v1176 = vunpack.c.0.s8 %v1175
        %v1177 = vlaneseq
        %v1178 = vshrl.u32 %v1177, 7
        %v1179 = vsub.s32 %v1176, %v1178
        %v1180 = vrot.slane %v1173, %v1179
        %v1181 = vcombine.low %v1156, %v1164
        %v1182 = vcombine.high %v1156, %v1164
        %v1184 = vunpack.c.l.s4 1934713408
        %v1185 = vunpack.c.0.s8 %v1184
        %v1186 = vlaneseq
        %v1187 = vshrl.u32 %v1186, 7
        %v1188 = vsub.s32 %v1185, %v1187
        %v1189 = vrot.slane %v1181, %v1188
        %v1191 = vunpack.c.l.s4 1934713408
        %v1192 = vunpack.c.0.s8 %v1191
        %v1193 = vlaneseq
        %v1194 = vshrl.u32 %v1193, 7
        %v1195 = vsub.s32 %v1192, %v1194
        %v1196 = vrot.slane %v1182, %v1195
        %v1197 = vcombine.low %v1172, %v1180
        %v1198 = vcombine.high %v1172, %v1180
        %v1200 = vunpack.c.l.s4 1934713408
        %v1201 = vunpack.c.0.s8 %v1200
        %v1202 = vlaneseq
        %v1203 = vshrl.u32 %v1202, 7
        %v1204 = vsub.s32 %v1201, %v1203
        %v1205 = vrot.slane %v1197, %v1204
        %v1207 = vunpack.c.l.s4 1934713408
        %v1208 = vunpack.c.0.s8 %v1207
        %v1209 = vlaneseq
        %v1210 = vshrl.u32 %v1209, 7
        %v1211 = vsub.s32 %v1208, %v1210
        %v1212 = vrot.slane %v1198, %v1211
        %v1213 = vcombine.low %v1189, %v1205
        %v1214 = vcombine.high %v1189, %v1205
        %v1215 = vcombine.low %v1196, %v1212
        %v1216 = vcombine.high %v1196, %v1212
        %1219 = vrot.lane.b32.xlu0 %v627, 96
        %v1220 = vpop.permute.xlu0 %1219
        %1221 = vrot.lane.b32.xlu0 %v630, 96
        %v1222 = vpop.permute.xlu0 %1221
        %1225 = vrot.lane.b32.xlu0 %v627, 64
        %v1226 = vpop.permute.xlu0 %1225
        %1227 = vrot.lane.b32.xlu0 %v630, 64
        %v1228 = vpop.permute.xlu0 %1227
        %1231 = vrot.lane.b32.xlu0 %v627, 32
        %v1232 = vpop.permute.xlu0 %1231
        %1233 = vrot.lane.b32.xlu0 %v630, 32
        %v1234 = vpop.permute.xlu0 %1233
        %v1237 = vcombine.low %v627, %v1226
        %v1238 = vcombine.high %v627, %v1226
        %v1240 = vunpack.c.l.s4 1983009808
        %v1241 = vunpack.c.0.s8 %v1240
        %v1242 = vlaneseq
        %v1243 = vshrl.u32 %v1242, 7
        %v1244 = vsub.s32 %v1241, %v1243
        %v1245 = vrot.slane %v1237, %v1244
        %v1247 = vunpack.c.l.s4 1983009808
        %v1248 = vunpack.c.0.s8 %v1247
        %v1249 = vlaneseq
        %v1250 = vshrl.u32 %v1249, 7
        %v1251 = vsub.s32 %v1248, %v1250
        %v1252 = vrot.slane %v1238, %v1251
        %v1253 = vcombine.low %v1220, %v1232
        %v1254 = vcombine.high %v1220, %v1232
        %v1256 = vunpack.c.l.s4 1983009808
        %v1257 = vunpack.c.0.s8 %v1256
        %v1258 = vlaneseq
        %v1259 = vshrl.u32 %v1258, 7
        %v1260 = vsub.s32 %v1257, %v1259
        %v1261 = vrot.slane %v1253, %v1260
        %v1263 = vunpack.c.l.s4 1983009808
        %v1264 = vunpack.c.0.s8 %v1263
        %v1265 = vlaneseq
        %v1266 = vshrl.u32 %v1265, 7
        %v1267 = vsub.s32 %v1264, %v1266
        %v1268 = vrot.slane %v1254, %v1267
        %v1269 = vcombine.low %v1245, %v1261
        %v1270 = vcombine.high %v1245, %v1261
        %v1272 = vunpack.c.l.s4 1934713408
        %v1273 = vunpack.c.0.s8 %v1272
        %v1274 = vlaneseq
        %v1275 = vshrl.u32 %v1274, 7
        %v1276 = vsub.s32 %v1273, %v1275
        %v1277 = vrot.slane %v1269, %v1276
        %v1279 = vunpack.c.l.s4 1934713408
        %v1280 = vunpack.c.0.s8 %v1279
        %v1281 = vlaneseq
        %v1282 = vshrl.u32 %v1281, 7
        %v1283 = vsub.s32 %v1280, %v1282
        %v1284 = vrot.slane %v1270, %v1283
        %v1285 = vcombine.low %v1252, %v1268
        %v1286 = vcombine.high %v1252, %v1268
        %v1288 = vunpack.c.l.s4 1934713408
        %v1289 = vunpack.c.0.s8 %v1288
        %v1290 = vlaneseq
        %v1291 = vshrl.u32 %v1290, 7
        %v1292 = vsub.s32 %v1289, %v1291
        %v1293 = vrot.slane %v1285, %v1292
        %v1295 = vunpack.c.l.s4 1934713408
        %v1296 = vunpack.c.0.s8 %v1295
        %v1297 = vlaneseq
        %v1298 = vshrl.u32 %v1297, 7
        %v1299 = vsub.s32 %v1296, %v1298
        %v1300 = vrot.slane %v1286, %v1299
        %v1301 = vcombine.high %v1277, 0.0
        %v1302 = vcombine.high %v1284, 0.0
        %v1303 = vcombine.high %v1293, 0.0
        %v1304 = vcombine.high %v1300, 0.0
        %v1305 = vcombine.low %v630, %v1228
        %v1306 = vcombine.high %v630, %v1228
        %v1308 = vunpack.c.l.s4 1983009808
        %v1309 = vunpack.c.0.s8 %v1308
        %v1310 = vlaneseq
        %v1311 = vshrl.u32 %v1310, 7
        %v1312 = vsub.s32 %v1309, %v1311
        %v1313 = vrot.slane %v1305, %v1312
        %v1315 = vunpack.c.l.s4 1983009808
        %v1316 = vunpack.c.0.s8 %v1315
        %v1317 = vlaneseq
        %v1318 = vshrl.u32 %v1317, 7
        %v1319 = vsub.s32 %v1316, %v1318
        %v1320 = vrot.slane %v1306, %v1319
        %v1321 = vcombine.low %v1222, %v1234
        %v1322 = vcombine.high %v1222, %v1234
        %v1324 = vunpack.c.l.s4 1983009808
        %v1325 = vunpack.c.0.s8 %v1324
        %v1326 = vlaneseq
        %v1327 = vshrl.u32 %v1326, 7
        %v1328 = vsub.s32 %v1325, %v1327
        %v1329 = vrot.slane %v1321, %v1328
        %v1331 = vunpack.c.l.s4 1983009808
        %v1332 = vunpack.c.0.s8 %v1331
        %v1333 = vlaneseq
        %v1334 = vshrl.u32 %v1333, 7
        %v1335 = vsub.s32 %v1332, %v1334
        %v1336 = vrot.slane %v1322, %v1335
        %v1337 = vcombine.low %v1313, %v1329
        %v1338 = vcombine.high %v1313, %v1329
        %v1340 = vunpack.c.l.s4 1934713408
        %v1341 = vunpack.c.0.s8 %v1340
        %v1342 = vlaneseq
        %v1343 = vshrl.u32 %v1342, 7
        %v1344 = vsub.s32 %v1341, %v1343
        %v1345 = vrot.slane %v1337, %v1344
        %v1347 = vunpack.c.l.s4 1934713408
        %v1348 = vunpack.c.0.s8 %v1347
        %v1349 = vlaneseq
        %v1350 = vshrl.u32 %v1349, 7
        %v1351 = vsub.s32 %v1348, %v1350
        %v1352 = vrot.slane %v1338, %v1351
        %v1353 = vcombine.low %v1320, %v1336
        %v1354 = vcombine.high %v1320, %v1336
        %v1356 = vunpack.c.l.s4 1934713408
        %v1357 = vunpack.c.0.s8 %v1356
        %v1358 = vlaneseq
        %v1359 = vshrl.u32 %v1358, 7
        %v1360 = vsub.s32 %v1357, %v1359
        %v1361 = vrot.slane %v1353, %v1360
        %v1363 = vunpack.c.l.s4 1934713408
        %v1364 = vunpack.c.0.s8 %v1363
        %v1365 = vlaneseq
        %v1366 = vshrl.u32 %v1365, 7
        %v1367 = vsub.s32 %v1364, %v1366
        %v1368 = vrot.slane %v1354, %v1367
        %v1369 = vcombine.high %v1345, 0.0
        %v1370 = vcombine.high %v1352, 0.0
        %v1371 = vcombine.high %v1361, 0.0
        %v1372 = vcombine.high %v1368, 0.0
        %v1373 = vcombine.low %v1277, %v1284
        %v1375 = vunpack.c.l.s4 1983009808
        %v1376 = vunpack.c.0.s8 %v1375
        %v1377 = vlaneseq
        %v1378 = vshrl.u32 %v1377, 7
        %v1379 = vsub.s32 %v1376, %v1378
        %v1380 = vrot.slane %v1373, %v1379
        %v1381 = vcombine.low %v1301, %v1302
        %v1383 = vunpack.c.l.s4 1983009808
        %v1384 = vunpack.c.0.s8 %v1383
        %v1385 = vlaneseq
        %v1386 = vshrl.u32 %v1385, 7
        %v1387 = vsub.s32 %v1384, %v1386
        %v1388 = vrot.slane %v1381, %v1387
        %v1389 = vcombine.low %v1293, %v1300
        %v1391 = vunpack.c.l.s4 1983009808
        %v1392 = vunpack.c.0.s8 %v1391
        %v1393 = vlaneseq
        %v1394 = vshrl.u32 %v1393, 7
        %v1395 = vsub.s32 %v1392, %v1394
        %v1396 = vrot.slane %v1389, %v1395
        %v1397 = vcombine.low %v1303, %v1304
        %v1399 = vunpack.c.l.s4 1983009808
        %v1400 = vunpack.c.0.s8 %v1399
        %v1401 = vlaneseq
        %v1402 = vshrl.u32 %v1401, 7
        %v1403 = vsub.s32 %v1400, %v1402
        %v1404 = vrot.slane %v1397, %v1403
        %v1405 = vcombine.low %v1380, %v1388
        %v1406 = vcombine.high %v1380, %v1388
        %v1408 = vunpack.c.l.s4 1934713408
        %v1409 = vunpack.c.0.s8 %v1408
        %v1410 = vlaneseq
        %v1411 = vshrl.u32 %v1410, 7
        %v1412 = vsub.s32 %v1409, %v1411
        %v1413 = vrot.slane %v1405, %v1412
        %v1415 = vunpack.c.l.s4 1934713408
        %v1416 = vunpack.c.0.s8 %v1415
        %v1417 = vlaneseq
        %v1418 = vshrl.u32 %v1417, 7
        %v1419 = vsub.s32 %v1416, %v1418
        %v1420 = vrot.slane %v1406, %v1419
        %v1421 = vcombine.low %v1396, %v1404
        %v1422 = vcombine.high %v1396, %v1404
        %v1424 = vunpack.c.l.s4 1934713408
        %v1425 = vunpack.c.0.s8 %v1424
        %v1426 = vlaneseq
        %v1427 = vshrl.u32 %v1426, 7
        %v1428 = vsub.s32 %v1425, %v1427
        %v1429 = vrot.slane %v1421, %v1428
        %v1431 = vunpack.c.l.s4 1934713408
        %v1432 = vunpack.c.0.s8 %v1431
        %v1433 = vlaneseq
        %v1434 = vshrl.u32 %v1433, 7
        %v1435 = vsub.s32 %v1432, %v1434
        %v1436 = vrot.slane %v1422, %v1435
        %v1437 = vcombine.low %v1413, %v1429
        %v1438 = vcombine.high %v1413, %v1429
        %v1439 = vcombine.low %v1420, %v1436
        %v1440 = vcombine.high %v1420, %v1436
        %v1441 = vcombine.low %v1345, %v1352
        %v1443 = vunpack.c.l.s4 1983009808
        %v1444 = vunpack.c.0.s8 %v1443
        %v1445 = vlaneseq
        %v1446 = vshrl.u32 %v1445, 7
        %v1447 = vsub.s32 %v1444, %v1446
        %v1448 = vrot.slane %v1441, %v1447
        %v1449 = vcombine.low %v1369, %v1370
        %v1451 = vunpack.c.l.s4 1983009808
        %v1452 = vunpack.c.0.s8 %v1451
        %v1453 = vlaneseq
        %v1454 = vshrl.u32 %v1453, 7
        %v1455 = vsub.s32 %v1452, %v1454
        %v1456 = vrot.slane %v1449, %v1455
        %v1457 = vcombine.low %v1361, %v1368
        %v1459 = vunpack.c.l.s4 1983009808
        %v1460 = vunpack.c.0.s8 %v1459
        %v1461 = vlaneseq
        %v1462 = vshrl.u32 %v1461, 7
        %v1463 = vsub.s32 %v1460, %v1462
        %v1464 = vrot.slane %v1457, %v1463
        %v1465 = vcombine.low %v1371, %v1372
        %v1467 = vunpack.c.l.s4 1983009808
        %v1468 = vunpack.c.0.s8 %v1467
        %v1469 = vlaneseq
        %v1470 = vshrl.u32 %v1469, 7
        %v1471 = vsub.s32 %v1468, %v1470
        %v1472 = vrot.slane %v1465, %v1471
        %v1473 = vcombine.low %v1448, %v1456
        %v1474 = vcombine.high %v1448, %v1456
        %v1476 = vunpack.c.l.s4 1934713408
        %v1477 = vunpack.c.0.s8 %v1476
        %v1478 = vlaneseq
        %v1479 = vshrl.u32 %v1478, 7
        %v1480 = vsub.s32 %v1477, %v1479
        %v1481 = vrot.slane %v1473, %v1480
        %v1483 = vunpack.c.l.s4 1934713408
        %v1484 = vunpack.c.0.s8 %v1483
        %v1485 = vlaneseq
        %v1486 = vshrl.u32 %v1485, 7
        %v1487 = vsub.s32 %v1484, %v1486
        %v1488 = vrot.slane %v1474, %v1487
        %v1489 = vcombine.low %v1464, %v1472
        %v1490 = vcombine.high %v1464, %v1472
        %v1492 = vunpack.c.l.s4 1934713408
        %v1493 = vunpack.c.0.s8 %v1492
        %v1494 = vlaneseq
        %v1495 = vshrl.u32 %v1494, 7
        %v1496 = vsub.s32 %v1493, %v1495
        %v1497 = vrot.slane %v1489, %v1496
        %v1499 = vunpack.c.l.s4 1934713408
        %v1500 = vunpack.c.0.s8 %v1499
        %v1501 = vlaneseq
        %v1502 = vshrl.u32 %v1501, 7
        %v1503 = vsub.s32 %v1500, %v1502
        %v1504 = vrot.slane %v1490, %v1503
        %v1505 = vcombine.low %v1481, %v1497
        %v1506 = vcombine.high %v1481, %v1497
        %v1507 = vcombine.low %v1488, %v1504
        %v1508 = vcombine.high %v1488, %v1504
        %v1509 = vmul.f32 %v853, %v853
        %v1510 = vmul.f32 %v921, %v921
        %v1511 = vmul.f32 %v854, %v854
        %v1512 = vmul.f32 %v922, %v922
        %v1513 = vmul.f32 %v855, %v855
        %v1514 = vmul.f32 %v923, %v923
        %v1515 = vmul.f32 %v856, %v856
        %v1516 = vmul.f32 %v924, %v924
        %vm1517 = vcmask 261120
        %v1518 = vsel %vm1517, %v1509, 0.0
        %1519 = vadd.xlane.f32.xlu0 %v1518
        %v1520 = vpop.xlane.xlu0 %1519
        %v1521 = vsel %vm1517, %v1510, 0.0
        %1522 = vadd.xlane.f32.xlu0 %v1521
        %v1523 = vpop.xlane.xlu0 %1522
        %v1524 = vsel %vm1517, %v1511, 0.0
        %1525 = vadd.xlane.f32.xlu0 %v1524
        %v1526 = vpop.xlane.xlu0 %1525
        %v1527 = vsel %vm1517, %v1512, 0.0
        %1528 = vadd.xlane.f32.xlu0 %v1527
        %v1529 = vpop.xlane.xlu0 %1528
        %v1530 = vsel %vm1517, %v1513, 0.0
        %1531 = vadd.xlane.f32.xlu0 %v1530
        %v1532 = vpop.xlane.xlu0 %1531
        %v1533 = vsel %vm1517, %v1514, 0.0
        %1534 = vadd.xlane.f32.xlu0 %v1533
        %v1535 = vpop.xlane.xlu0 %1534
        %v1536 = vsel %vm1517, %v1515, 0.0
        %1537 = vadd.xlane.f32.xlu0 %v1536
        %v1538 = vpop.xlane.xlu0 %1537
        %v1539 = vsel %vm1517, %v1516, 0.0
        %1540 = vadd.xlane.f32.xlu0 %v1539
        %v1541 = vpop.xlane.xlu0 %1540
        %v1542 = vrcp.pop 32.0
        %v1543 = vmul.f32 %v1520, %v1542
        %v1544 = vmul.f32 %v1523, %v1542
        %v1545 = vmul.f32 %v1526, %v1542
        %v1546 = vmul.f32 %v1529, %v1542
        %v1547 = vmul.f32 %v1532, %v1542
        %v1548 = vmul.f32 %v1535, %v1542
        %v1549 = vmul.f32 %v1538, %v1542
        %v1550 = vmul.f32 %v1541, %v1542
        %v1551 = vadd.f32 %v1543, 1e-06
        %v1552 = vadd.f32 %v1544, 1e-06
        %v1553 = vadd.f32 %v1545, 1e-06
        %v1554 = vadd.f32 %v1546, 1e-06
        %v1555 = vadd.f32 %v1547, 1e-06
        %v1556 = vadd.f32 %v1548, 1e-06
        %v1557 = vadd.f32 %v1549, 1e-06
        %v1558 = vadd.f32 %v1550, 1e-06
        %v1559 = vrsqrt.pop %v1551
        %v1560 = vrsqrt.pop %v1552
        %v1561 = vrsqrt.pop %v1553
        %v1562 = vrsqrt.pop %v1554
        %v1563 = vrsqrt.pop %v1555
        %v1564 = vrsqrt.pop %v1556
        %v1565 = vrsqrt.pop %v1557
        %v1566 = vrsqrt.pop %v1558
        %v1567 = vmul.f32 %v853, %v1559
        %v1568 = vmul.f32 %v921, %v1560
        %v1569 = vmul.f32 %v854, %v1561
        %v1570 = vmul.f32 %v922, %v1562
        %v1571 = vmul.f32 %v855, %v1563
        %v1572 = vmul.f32 %v923, %v1564
        %v1573 = vmul.f32 %v856, %v1565
        %v1574 = vmul.f32 %v924, %v1566
        %v1575 = vlaneseq
        %v1576 = vshrl.u32 %v1575, 7
        %v1577 = vsub.s32 0, %v1576
        %v1578 = vrot.slane %v349, %v1577
        %v1579 = vmul.f32 %v1567, %v1578
        %v1580 = vmul.f32 %v1568, %v1578
        %v1581 = vmul.f32 %v1569, %v1578
        %v1582 = vmul.f32 %v1570, %v1578
        %v1583 = vmul.f32 %v1571, %v1578
        %v1584 = vmul.f32 %v1572, %v1578
        %v1585 = vmul.f32 %v1573, %v1578
        %v1586 = vmul.f32 %v1574, %v1578
        %v1587 = vmul.f32 %v1145, %v1145
        %v1588 = vmul.f32 %v1213, %v1213
        %v1589 = vmul.f32 %v1146, %v1146
        %v1590 = vmul.f32 %v1214, %v1214
        %v1591 = vmul.f32 %v1147, %v1147
        %v1592 = vmul.f32 %v1215, %v1215
        %v1593 = vmul.f32 %v1148, %v1148
        %v1594 = vmul.f32 %v1216, %v1216
        %v1595 = vsel %vm1517, %v1587, 0.0
        %1596 = vadd.xlane.f32.xlu0 %v1595
        %v1597 = vpop.xlane.xlu0 %1596
        %v1598 = vsel %vm1517, %v1588, 0.0
        %1599 = vadd.xlane.f32.xlu0 %v1598
        %v1600 = vpop.xlane.xlu0 %1599
        %v1601 = vsel %vm1517, %v1589, 0.0
        %1602 = vadd.xlane.f32.xlu0 %v1601
        %v1603 = vpop.xlane.xlu0 %1602
        %v1604 = vsel %vm1517, %v1590, 0.0
        %1605 = vadd.xlane.f32.xlu0 %v1604
        %v1606 = vpop.xlane.xlu0 %1605
        %v1607 = vsel %vm1517, %v1591, 0.0
        %1608 = vadd.xlane.f32.xlu0 %v1607
        %v1609 = vpop.xlane.xlu0 %1608
        %v1610 = vsel %vm1517, %v1592, 0.0
        %1611 = vadd.xlane.f32.xlu0 %v1610
        %v1612 = vpop.xlane.xlu0 %1611
        %v1613 = vsel %vm1517, %v1593, 0.0
        %1614 = vadd.xlane.f32.xlu0 %v1613
        %v1615 = vpop.xlane.xlu0 %1614
        %v1616 = vsel %vm1517, %v1594, 0.0
        %1617 = vadd.xlane.f32.xlu0 %v1616
        %v1618 = vpop.xlane.xlu0 %1617
        %v1619 = vmul.f32 %v1597, %v1542
        %v1620 = vmul.f32 %v1600, %v1542
        %v1621 = vmul.f32 %v1603, %v1542
        %v1622 = vmul.f32 %v1606, %v1542
        %v1623 = vmul.f32 %v1609, %v1542
        %v1624 = vmul.f32 %v1612, %v1542
        %v1625 = vmul.f32 %v1615, %v1542
        %v1626 = vmul.f32 %v1618, %v1542
        %v1627 = vadd.f32 %v1619, 1e-06
        %v1628 = vadd.f32 %v1620, 1e-06
        %v1629 = vadd.f32 %v1621, 1e-06
        %v1630 = vadd.f32 %v1622, 1e-06
        %v1631 = vadd.f32 %v1623, 1e-06
        %v1632 = vadd.f32 %v1624, 1e-06
        %v1633 = vadd.f32 %v1625, 1e-06
        %v1634 = vadd.f32 %v1626, 1e-06
        %v1635 = vrsqrt.pop %v1627
        %v1636 = vrsqrt.pop %v1628
        %v1637 = vrsqrt.pop %v1629
        %v1638 = vrsqrt.pop %v1630
        %v1639 = vrsqrt.pop %v1631
        %v1640 = vrsqrt.pop %v1632
        %v1641 = vrsqrt.pop %v1633
        %v1642 = vrsqrt.pop %v1634
        %v1643 = vmul.f32 %v1145, %v1635
        %v1644 = vmul.f32 %v1213, %v1636
        %v1645 = vmul.f32 %v1146, %v1637
        %v1646 = vmul.f32 %v1214, %v1638
        %v1647 = vmul.f32 %v1147, %v1639
        %v1648 = vmul.f32 %v1215, %v1640
        %v1649 = vmul.f32 %v1148, %v1641
        %v1650 = vmul.f32 %v1216, %v1642
        %v1651 = vlaneseq
        %v1652 = vshrl.u32 %v1651, 7
        %v1653 = vsub.s32 0, %v1652
        %v1654 = vrot.slane %v350, %v1653
        %v1655 = vmul.f32 %v1643, %v1654
        %v1656 = vmul.f32 %v1644, %v1654
        %v1657 = vmul.f32 %v1645, %v1654
        %v1658 = vmul.f32 %v1646, %v1654
        %v1659 = vmul.f32 %v1647, %v1654
        %v1660 = vmul.f32 %v1648, %v1654
        %v1661 = vmul.f32 %v1649, %v1654
        %v1662 = vmul.f32 %v1650, %v1654
        %v1663 = vpack.c.bf16 %v1580, %v1579
        %v1664 = vpack.c.bf16 %v1582, %v1581
        %v1665 = vpack.c.bf16 %v1584, %v1583
        %v1666 = vpack.c.bf16 %v1586, %v1585
        %v1667 = vpack.c.bf16 %v1656, %v1655
        %v1668 = vpack.c.bf16 %v1658, %v1657
        %v1669 = vpack.c.bf16 %v1660, %v1659
        %v1670 = vpack.c.bf16 %v1662, %v1661
        %v1672 = vsel %vm1517, %v1663, 0
        %v1675 = vsel %vm1517, %v1667, 0
        %1677 = vmatprep.subr.bf16.mxu0 0
        %1678 = vmatpush1.bf16.xpose.msra.mxu0 0
        %1679 = vmatprep.subr.bf16.mxu0 0
        %1680 = vmatpush1.bf16.xpose.msra.mxu0 0
        %1681 = vmatprep.subr.bf16.mxu0 0
        %1682 = vmatpush1.bf16.xpose.msra.mxu0 0
        %1683 = vmatprep.subr.bf16.mxu0 0
        %1684 = vmatpush1.bf16.xpose.msra.mxu0 0
        %1685 = vmatprep.subr.bf16.mxu0 0
        %1686 = vmatpush1.bf16.xpose.msra.mxu0 0
        %1687 = vmatprep.subr.bf16.mxu0 0
        %1688 = vmatpush1.bf16.xpose.msra.mxu0 0
        %1689 = vmatprep.subr.bf16.mxu0 0
        %1690 = vmatpush1.bf16.xpose.msra.mxu0 0
        %1691 = vmatprep.subr.bf16.mxu0 0
        %1692 = vmatpush1.bf16.xpose.msra.mxu0 %v1675
        %1693 = vmatprep.subr.bf16.mxu0 0
        %1694 = vmatpush2.bf16.xpose.msra.mxu0 0
        %1695 = vmatprep.subr.bf16.mxu0 0
        %1696 = vmatpush2.bf16.xpose.msra.mxu0 0
        %1697 = vmatprep.subr.bf16.mxu0 0
        %1698 = vmatpush2.bf16.xpose.msra.mxu0 0
        %1699 = vmatprep.subr.bf16.mxu0 0
        %1700 = vmatpush2.bf16.xpose.msra.mxu0 0
        %1701 = vmatprep.subr.bf16.mxu0 0
        %1702 = vmatpush2.bf16.xpose.msra.mxu0 0
        %1703 = vmatprep.subr.bf16.mxu0 0
        %1704 = vmatpush2.bf16.xpose.msra.mxu0 0
        %1705 = vmatprep.subr.bf16.mxu0 0
        %1706 = vmatpush2.bf16.xpose.msra.mxu0 0
        %1707 = vmatprep.subr.bf16.mxu0 0
        %1708 = vmatpush2.bf16.xpose.msra.mxu0 0
        %1709 = vmatprep.mubr.bf16.mxu0 0
        %1710 = vmatmul.mubr.bf16.gmra.mxu0 %v1672
        %v1711 = vpop.f32.mrf.mxu0
        %v1712 = vadd.f32 0.0, %v1711
        %v1713 = vpop.f32.mrf.mxu0
        %v1714 = vpop.f32.mrf.mxu0
        %v1715 = vadd.f32 0.0, %v1714
        %v1716 = vpop.f32.mrf.mxu0
        %1717 = vdwg.mxu0
        %v1719 = vsel %vm1517, %v1664, 0
        %v1722 = vsel %vm1517, %v1668, 0
        %1724 = vmatprep.subr.bf16.mxu0 0
        %1725 = vmatpush1.bf16.xpose.msra.mxu0 0
        %1726 = vmatprep.subr.bf16.mxu0 0
        %1727 = vmatpush1.bf16.xpose.msra.mxu0 0
        %1728 = vmatprep.subr.bf16.mxu0 0
        %1729 = vmatpush1.bf16.xpose.msra.mxu0 0
        %1730 = vmatprep.subr.bf16.mxu0 0
        %1731 = vmatpush1.bf16.xpose.msra.mxu0 0
        %1732 = vmatprep.subr.bf16.mxu0 0
        %1733 = vmatpush1.bf16.xpose.msra.mxu0 0
        %1734 = vmatprep.subr.bf16.mxu0 0
        %1735 = vmatpush1.bf16.xpose.msra.mxu0 0
        %1736 = vmatprep.subr.bf16.mxu0 0
        %1737 = vmatpush1.bf16.xpose.msra.mxu0 0
        %1738 = vmatprep.subr.bf16.mxu0 0
        %1739 = vmatpush1.bf16.xpose.msra.mxu0 %v1722
        %1740 = vmatprep.subr.bf16.mxu0 0
        %1741 = vmatpush2.bf16.xpose.msra.mxu0 0
        %1742 = vmatprep.subr.bf16.mxu0 0
        %1743 = vmatpush2.bf16.xpose.msra.mxu0 0
        %1744 = vmatprep.subr.bf16.mxu0 0
        %1745 = vmatpush2.bf16.xpose.msra.mxu0 0
        %1746 = vmatprep.subr.bf16.mxu0 0
        %1747 = vmatpush2.bf16.xpose.msra.mxu0 0
        %1748 = vmatprep.subr.bf16.mxu0 0
        %1749 = vmatpush2.bf16.xpose.msra.mxu0 0
        %1750 = vmatprep.subr.bf16.mxu0 0
        %1751 = vmatpush2.bf16.xpose.msra.mxu0 0
        %1752 = vmatprep.subr.bf16.mxu0 0
        %1753 = vmatpush2.bf16.xpose.msra.mxu0 0
        %1754 = vmatprep.subr.bf16.mxu0 0
        %1755 = vmatpush2.bf16.xpose.msra.mxu0 0
        %1756 = vmatprep.mubr.bf16.mxu0 0
        %1757 = vmatmul.mubr.bf16.gmra.mxu0 %v1719
        %v1758 = vpop.f32.mrf.mxu0
        %v1759 = vadd.f32 0.0, %v1758
        %v1760 = vpop.f32.mrf.mxu0
        %v1761 = vpop.f32.mrf.mxu0
        %v1762 = vadd.f32 0.0, %v1761
        %v1763 = vpop.f32.mrf.mxu0
        %1764 = vdwg.mxu0
        %v1766 = vsel %vm1517, %v1665, 0
        %v1769 = vsel %vm1517, %v1669, 0
        %1771 = vmatprep.subr.bf16.mxu0 0
        %1772 = vmatpush1.bf16.xpose.msra.mxu0 0
        %1773 = vmatprep.subr.bf16.mxu0 0
        %1774 = vmatpush1.bf16.xpose.msra.mxu0 0
        %1775 = vmatprep.subr.bf16.mxu0 0
        %1776 = vmatpush1.bf16.xpose.msra.mxu0 0
        %1777 = vmatprep.subr.bf16.mxu0 0
        %1778 = vmatpush1.bf16.xpose.msra.mxu0 0
        %1779 = vmatprep.subr.bf16.mxu0 0
        %1780 = vmatpush1.bf16.xpose.msra.mxu0 0
        %1781 = vmatprep.subr.bf16.mxu0 0
        %1782 = vmatpush1.bf16.xpose.msra.mxu0 0
        %1783 = vmatprep.subr.bf16.mxu0 0
        %1784 = vmatpush1.bf16.xpose.msra.mxu0 0
        %1785 = vmatprep.subr.bf16.mxu0 0
        %1786 = vmatpush1.bf16.xpose.msra.mxu0 %v1769
        %1787 = vmatprep.subr.bf16.mxu0 0
        %1788 = vmatpush2.bf16.xpose.msra.mxu0 0
        %1789 = vmatprep.subr.bf16.mxu0 0
        %1790 = vmatpush2.bf16.xpose.msra.mxu0 0
        %1791 = vmatprep.subr.bf16.mxu0 0
        %1792 = vmatpush2.bf16.xpose.msra.mxu0 0
        %1793 = vmatprep.subr.bf16.mxu0 0
        %1794 = vmatpush2.bf16.xpose.msra.mxu0 0
        %1795 = vmatprep.subr.bf16.mxu0 0
        %1796 = vmatpush2.bf16.xpose.msra.mxu0 0
        %1797 = vmatprep.subr.bf16.mxu0 0
        %1798 = vmatpush2.bf16.xpose.msra.mxu0 0
        %1799 = vmatprep.subr.bf16.mxu0 0
        %1800 = vmatpush2.bf16.xpose.msra.mxu0 0
        %1801 = vmatprep.subr.bf16.mxu0 0
        %1802 = vmatpush2.bf16.xpose.msra.mxu0 0
        %1803 = vmatprep.mubr.bf16.mxu0 0
        %1804 = vmatmul.mubr.bf16.gmra.mxu0 %v1766
        %v1805 = vpop.f32.mrf.mxu0
        %v1806 = vadd.f32 0.0, %v1805
        %v1807 = vpop.f32.mrf.mxu0
        %v1808 = vpop.f32.mrf.mxu0
        %v1809 = vadd.f32 0.0, %v1808
        %v1810 = vpop.f32.mrf.mxu0
        %1811 = vdwg.mxu0
        %v1813 = vsel %vm1517, %v1666, 0
        %v1816 = vsel %vm1517, %v1670, 0
        %1818 = vmatprep.subr.bf16.mxu0 0
        %1819 = vmatpush1.bf16.xpose.msra.mxu0 0
        %1820 = vmatprep.subr.bf16.mxu0 0
        %1821 = vmatpush1.bf16.xpose.msra.mxu0 0
        %1822 = vmatprep.subr.bf16.mxu0 0
        %1823 = vmatpush1.bf16.xpose.msra.mxu0 0
        %1824 = vmatprep.subr.bf16.mxu0 0
        %1825 = vmatpush1.bf16.xpose.msra.mxu0 0
        %1826 = vmatprep.subr.bf16.mxu0 0
        %1827 = vmatpush1.bf16.xpose.msra.mxu0 0
        %1828 = vmatprep.subr.bf16.mxu0 0
        %1829 = vmatpush1.bf16.xpose.msra.mxu0 0
        %1830 = vmatprep.subr.bf16.mxu0 0
        %1831 = vmatpush1.bf16.xpose.msra.mxu0 0
        %1832 = vmatprep.subr.bf16.mxu0 0
        %1833 = vmatpush1.bf16.xpose.msra.mxu0 %v1816
        %1834 = vmatprep.subr.bf16.mxu0 0
        %1835 = vmatpush2.bf16.xpose.msra.mxu0 0
        %1836 = vmatprep.subr.bf16.mxu0 0
        %1837 = vmatpush2.bf16.xpose.msra.mxu0 0
        %1838 = vmatprep.subr.bf16.mxu0 0
        %1839 = vmatpush2.bf16.xpose.msra.mxu0 0
        %1840 = vmatprep.subr.bf16.mxu0 0
        %1841 = vmatpush2.bf16.xpose.msra.mxu0 0
        %1842 = vmatprep.subr.bf16.mxu0 0
        %1843 = vmatpush2.bf16.xpose.msra.mxu0 0
        %1844 = vmatprep.subr.bf16.mxu0 0
        %1845 = vmatpush2.bf16.xpose.msra.mxu0 0
        %1846 = vmatprep.subr.bf16.mxu0 0
        %1847 = vmatpush2.bf16.xpose.msra.mxu0 0
        %1848 = vmatprep.subr.bf16.mxu0 0
        %1849 = vmatpush2.bf16.xpose.msra.mxu0 0
        %1850 = vmatprep.mubr.bf16.mxu0 0
        %1851 = vmatmul.mubr.bf16.gmra.mxu0 %v1813
        %v1852 = vpop.f32.mrf.mxu0
        %v1853 = vadd.f32 0.0, %v1852
        %v1854 = vpop.f32.mrf.mxu0
        %v1855 = vpop.f32.mrf.mxu0
        %v1856 = vadd.f32 0.0, %v1855
        %v1857 = vpop.f32.mrf.mxu0
        %1858 = vdwg.mxu0
        %v1859 = vmul.f32 %v1712, 0.17677669
        %v1860 = vmul.f32 %v1715, 0.17677669
        %v1861 = vmul.f32 %v1759, 0.17677669
        %v1862 = vmul.f32 %v1762, 0.17677669
        %v1863 = vmul.f32 %v1806, 0.17677669
        %v1864 = vmul.f32 %v1809, 0.17677669
        %v1865 = vmul.f32 %v1853, 0.17677669
        %v1866 = vmul.f32 %v1856, 0.17677669
        %vm1867 = vcmask 130048
        %v1868 = vsel %vm1867, %v1859, -inf
        %1869 = vmax.xlane.f32.xlu0 %v1868
        %v1870 = vpop.xlane.xlu0 %1869
        %v1871 = vsel %vm1867, %v1860, -inf
        %1872 = vmax.xlane.f32.xlu0 %v1871
        %v1873 = vpop.xlane.xlu0 %1872
        %v1874 = vsel %vm1867, %v1861, -inf
        %1875 = vmax.xlane.f32.xlu0 %v1874
        %v1876 = vpop.xlane.xlu0 %1875
        %v1877 = vsel %vm1867, %v1862, -inf
        %1878 = vmax.xlane.f32.xlu0 %v1877
        %v1879 = vpop.xlane.xlu0 %1878
        %v1880 = vsel %vm1867, %v1863, -inf
        %1881 = vmax.xlane.f32.xlu0 %v1880
        %v1882 = vpop.xlane.xlu0 %1881
        %v1883 = vsel %vm1867, %v1864, -inf
        %1884 = vmax.xlane.f32.xlu0 %v1883
        %v1885 = vpop.xlane.xlu0 %1884
        %v1886 = vsel %vm1867, %v1865, -inf
        %1887 = vmax.xlane.f32.xlu0 %v1886
        %v1888 = vpop.xlane.xlu0 %1887
        %v1889 = vsel %vm1867, %v1866, -inf
        %1890 = vmax.xlane.f32.xlu0 %v1889
        %v1891 = vpop.xlane.xlu0 %1890
        %v1892 = vsub.f32 %v1859, %v1870
        %v1893 = vsub.f32 %v1860, %v1873
        %v1894 = vsub.f32 %v1861, %v1876
        %v1895 = vsub.f32 %v1862, %v1879
        %v1896 = vsub.f32 %v1863, %v1882
        %v1897 = vsub.f32 %v1864, %v1885
        %v1898 = vsub.f32 %v1865, %v1888
        %v1899 = vsub.f32 %v1866, %v1891
        %v1900 = vmul.f32 %v1892, 1.442695
        %v1901 = vpow.pop %v1900
        %v1902 = vmul.f32 %v1893, 1.442695
        %v1903 = vpow.pop %v1902
        %v1904 = vmul.f32 %v1894, 1.442695
        %v1905 = vpow.pop %v1904
        %v1906 = vmul.f32 %v1895, 1.442695
        %v1907 = vpow.pop %v1906
        %v1908 = vmul.f32 %v1896, 1.442695
        %v1909 = vpow.pop %v1908
        %v1910 = vmul.f32 %v1897, 1.442695
        %v1911 = vpow.pop %v1910
        %v1912 = vmul.f32 %v1898, 1.442695
        %v1913 = vpow.pop %v1912
        %v1914 = vmul.f32 %v1899, 1.442695
        %v1915 = vpow.pop %v1914
        %v1916 = vsel %vm1867, %v1901, 0.0
        %1917 = vadd.xlane.f32.xlu0 %v1916
        %v1918 = vpop.xlane.xlu0 %1917
        %v1919 = vsel %vm1867, %v1903, 0.0
        %1920 = vadd.xlane.f32.xlu0 %v1919
        %v1921 = vpop.xlane.xlu0 %1920
        %v1922 = vsel %vm1867, %v1905, 0.0
        %1923 = vadd.xlane.f32.xlu0 %v1922
        %v1924 = vpop.xlane.xlu0 %1923
        %v1925 = vsel %vm1867, %v1907, 0.0
        %1926 = vadd.xlane.f32.xlu0 %v1925
        %v1927 = vpop.xlane.xlu0 %1926
        %v1928 = vsel %vm1867, %v1909, 0.0
        %1929 = vadd.xlane.f32.xlu0 %v1928
        %v1930 = vpop.xlane.xlu0 %1929
        %v1931 = vsel %vm1867, %v1911, 0.0
        %1932 = vadd.xlane.f32.xlu0 %v1931
        %v1933 = vpop.xlane.xlu0 %1932
        %v1934 = vsel %vm1867, %v1913, 0.0
        %1935 = vadd.xlane.f32.xlu0 %v1934
        %v1936 = vpop.xlane.xlu0 %1935
        %v1937 = vsel %vm1867, %v1915, 0.0
        %1938 = vadd.xlane.f32.xlu0 %v1937
        %v1939 = vpop.xlane.xlu0 %1938
        %v1940 = vpack.c.bf16 %v1903, %v1901
        %v1941 = vpack.c.bf16 %v1907, %v1905
        %v1942 = vpack.c.bf16 %v1911, %v1909
        %v1943 = vpack.c.bf16 %v1915, %v1913
        %v1944 = vpack.c.bf16 %v1505, %v1437
        %v1945 = vpack.c.bf16 %v1506, %v1438
        %v1946 = vpack.c.bf16 %v1507, %v1439
        %v1947 = vpack.c.bf16 %v1508, %v1440
        %v1949 = vsel %vm1867, %v1940, 0
        %1951 = vmatprep.subr.bf16.mxu0 0
        %1952 = vmatpush1.bf16.msra.mxu0 0
        %1953 = vmatprep.subr.bf16.mxu0 0
        %1954 = vmatpush1.bf16.msra.mxu0 0
        %1955 = vmatprep.subr.bf16.mxu0 0
        %1956 = vmatpush1.bf16.msra.mxu0 0
        %1957 = vmatprep.subr.bf16.mxu0 0
        %1958 = vmatpush1.bf16.msra.mxu0 0
        %1959 = vmatprep.subr.bf16.mxu0 0
        %1960 = vmatpush1.bf16.msra.mxu0 0
        %1961 = vmatprep.subr.bf16.mxu0 0
        %1962 = vmatpush1.bf16.msra.mxu0 0
        %1963 = vmatprep.subr.bf16.mxu0 0
        %1964 = vmatpush1.bf16.msra.mxu0 0
        %1965 = vmatprep.subr.bf16.mxu0 0
        %1966 = vmatpush1.bf16.msra.mxu0 %v1944
        %1967 = vmatprep.subr.bf16.mxu0 0
        %1968 = vmatpush2.bf16.msra.mxu0 0
        %1969 = vmatprep.subr.bf16.mxu0 0
        %1970 = vmatpush2.bf16.msra.mxu0 0
        %1971 = vmatprep.subr.bf16.mxu0 0
        %1972 = vmatpush2.bf16.msra.mxu0 0
        %1973 = vmatprep.subr.bf16.mxu0 0
        %1974 = vmatpush2.bf16.msra.mxu0 0
        %1975 = vmatprep.subr.bf16.mxu0 0
        %1976 = vmatpush2.bf16.msra.mxu0 0
        %1977 = vmatprep.subr.bf16.mxu0 0
        %1978 = vmatpush2.bf16.msra.mxu0 0
        %1979 = vmatprep.subr.bf16.mxu0 0
        %1980 = vmatpush2.bf16.msra.mxu0 0
        %1981 = vmatprep.subr.bf16.mxu0 0
        %1982 = vmatpush2.bf16.msra.mxu0 0
        %1983 = vmatprep.mubr.bf16.mxu0 0
        %1984 = vmatmul.mubr.bf16.gmra.mxu0 %v1949
        %v1985 = vpop.f32.mrf.mxu0
        %v1986 = vadd.f32 0.0, %v1985
        %v1987 = vpop.f32.mrf.mxu0
        %v1988 = vpop.f32.mrf.mxu0
        %v1989 = vadd.f32 0.0, %v1988
        %v1990 = vpop.f32.mrf.mxu0
        %1991 = vdwg.mxu0
        %v1993 = vsel %vm1867, %v1941, 0
        %1995 = vmatprep.subr.bf16.mxu0 0
        %1996 = vmatpush1.bf16.msra.mxu0 0
        %1997 = vmatprep.subr.bf16.mxu0 0
        %1998 = vmatpush1.bf16.msra.mxu0 0
        %1999 = vmatprep.subr.bf16.mxu0 0
        %2000 = vmatpush1.bf16.msra.mxu0 0
        %2001 = vmatprep.subr.bf16.mxu0 0
        %2002 = vmatpush1.bf16.msra.mxu0 0
        %2003 = vmatprep.subr.bf16.mxu0 0
        %2004 = vmatpush1.bf16.msra.mxu0 0
        %2005 = vmatprep.subr.bf16.mxu0 0
        %2006 = vmatpush1.bf16.msra.mxu0 0
        %2007 = vmatprep.subr.bf16.mxu0 0
        %2008 = vmatpush1.bf16.msra.mxu0 0
        %2009 = vmatprep.subr.bf16.mxu0 0
        %2010 = vmatpush1.bf16.msra.mxu0 %v1945
        %2011 = vmatprep.subr.bf16.mxu0 0
        %2012 = vmatpush2.bf16.msra.mxu0 0
        %2013 = vmatprep.subr.bf16.mxu0 0
        %2014 = vmatpush2.bf16.msra.mxu0 0
        %2015 = vmatprep.subr.bf16.mxu0 0
        %2016 = vmatpush2.bf16.msra.mxu0 0
        %2017 = vmatprep.subr.bf16.mxu0 0
        %2018 = vmatpush2.bf16.msra.mxu0 0
        %2019 = vmatprep.subr.bf16.mxu0 0
        %2020 = vmatpush2.bf16.msra.mxu0 0
        %2021 = vmatprep.subr.bf16.mxu0 0
        %2022 = vmatpush2.bf16.msra.mxu0 0
        %2023 = vmatprep.subr.bf16.mxu0 0
        %2024 = vmatpush2.bf16.msra.mxu0 0
        %2025 = vmatprep.subr.bf16.mxu0 0
        %2026 = vmatpush2.bf16.msra.mxu0 0
        %2027 = vmatprep.mubr.bf16.mxu0 0
        %2028 = vmatmul.mubr.bf16.gmra.mxu0 %v1993
        %v2029 = vpop.f32.mrf.mxu0
        %v2030 = vadd.f32 0.0, %v2029
        %v2031 = vpop.f32.mrf.mxu0
        %v2032 = vpop.f32.mrf.mxu0
        %v2033 = vadd.f32 0.0, %v2032
        %v2034 = vpop.f32.mrf.mxu0
        %2035 = vdwg.mxu0
        %v2037 = vsel %vm1867, %v1942, 0
        %2039 = vmatprep.subr.bf16.mxu0 0
        %2040 = vmatpush1.bf16.msra.mxu0 0
        %2041 = vmatprep.subr.bf16.mxu0 0
        %2042 = vmatpush1.bf16.msra.mxu0 0
        %2043 = vmatprep.subr.bf16.mxu0 0
        %2044 = vmatpush1.bf16.msra.mxu0 0
        %2045 = vmatprep.subr.bf16.mxu0 0
        %2046 = vmatpush1.bf16.msra.mxu0 0
        %2047 = vmatprep.subr.bf16.mxu0 0
        %2048 = vmatpush1.bf16.msra.mxu0 0
        %2049 = vmatprep.subr.bf16.mxu0 0
        %2050 = vmatpush1.bf16.msra.mxu0 0
        %2051 = vmatprep.subr.bf16.mxu0 0
        %2052 = vmatpush1.bf16.msra.mxu0 0
        %2053 = vmatprep.subr.bf16.mxu0 0
        %2054 = vmatpush1.bf16.msra.mxu0 %v1946
        %2055 = vmatprep.subr.bf16.mxu0 0
        %2056 = vmatpush2.bf16.msra.mxu0 0
        %2057 = vmatprep.subr.bf16.mxu0 0
        %2058 = vmatpush2.bf16.msra.mxu0 0
        %2059 = vmatprep.subr.bf16.mxu0 0
        %2060 = vmatpush2.bf16.msra.mxu0 0
        %2061 = vmatprep.subr.bf16.mxu0 0
        %2062 = vmatpush2.bf16.msra.mxu0 0
        %2063 = vmatprep.subr.bf16.mxu0 0
        %2064 = vmatpush2.bf16.msra.mxu0 0
        %2065 = vmatprep.subr.bf16.mxu0 0
        %2066 = vmatpush2.bf16.msra.mxu0 0
        %2067 = vmatprep.subr.bf16.mxu0 0
        %2068 = vmatpush2.bf16.msra.mxu0 0
        %2069 = vmatprep.subr.bf16.mxu0 0
        %2070 = vmatpush2.bf16.msra.mxu0 0
        %2071 = vmatprep.mubr.bf16.mxu0 0
        %2072 = vmatmul.mubr.bf16.gmra.mxu0 %v2037
        %v2073 = vpop.f32.mrf.mxu0
        %v2074 = vadd.f32 0.0, %v2073
        %v2075 = vpop.f32.mrf.mxu0
        %v2076 = vpop.f32.mrf.mxu0
        %v2077 = vadd.f32 0.0, %v2076
        %v2078 = vpop.f32.mrf.mxu0
        %2079 = vdwg.mxu0
        %v2081 = vsel %vm1867, %v1943, 0
        %2083 = vmatprep.subr.bf16.mxu0 0
        %2084 = vmatpush1.bf16.msra.mxu0 0
        %2085 = vmatprep.subr.bf16.mxu0 0
        %2086 = vmatpush1.bf16.msra.mxu0 0
        %2087 = vmatprep.subr.bf16.mxu0 0
        %2088 = vmatpush1.bf16.msra.mxu0 0
        %2089 = vmatprep.subr.bf16.mxu0 0
        %2090 = vmatpush1.bf16.msra.mxu0 0
        %2091 = vmatprep.subr.bf16.mxu0 0
        %2092 = vmatpush1.bf16.msra.mxu0 0
        %2093 = vmatprep.subr.bf16.mxu0 0
        %2094 = vmatpush1.bf16.msra.mxu0 0
        %2095 = vmatprep.subr.bf16.mxu0 0
        %2096 = vmatpush1.bf16.msra.mxu0 0
        %2097 = vmatprep.subr.bf16.mxu0 0
        %2098 = vmatpush1.bf16.msra.mxu0 %v1947
        %2099 = vmatprep.subr.bf16.mxu0 0
        %2100 = vmatpush2.bf16.msra.mxu0 0
        %2101 = vmatprep.subr.bf16.mxu0 0
        %2102 = vmatpush2.bf16.msra.mxu0 0
        %2103 = vmatprep.subr.bf16.mxu0 0
        %2104 = vmatpush2.bf16.msra.mxu0 0
        %2105 = vmatprep.subr.bf16.mxu0 0
        %2106 = vmatpush2.bf16.msra.mxu0 0
        %2107 = vmatprep.subr.bf16.mxu0 0
        %2108 = vmatpush2.bf16.msra.mxu0 0
        %2109 = vmatprep.subr.bf16.mxu0 0
        %2110 = vmatpush2.bf16.msra.mxu0 0
        %2111 = vmatprep.subr.bf16.mxu0 0
        %2112 = vmatpush2.bf16.msra.mxu0 0
        %2113 = vmatprep.subr.bf16.mxu0 0
        %2114 = vmatpush2.bf16.msra.mxu0 0
        %2115 = vmatprep.mubr.bf16.mxu0 0
        %2116 = vmatmul.mubr.bf16.gmra.mxu0 %v2081
        %v2117 = vpop.f32.mrf.mxu0
        %v2118 = vadd.f32 0.0, %v2117
        %v2119 = vpop.f32.mrf.mxu0
        %v2120 = vpop.f32.mrf.mxu0
        %v2121 = vadd.f32 0.0, %v2120
        %v2122 = vpop.f32.mrf.mxu0
        %2123 = vdwg.mxu0
        %v2124 = vrcp.pop %v1918
        %v2125 = vrcp.pop %v1921
        %v2126 = vrcp.pop %v1924
        %v2127 = vrcp.pop %v1927
        %v2128 = vrcp.pop %v1930
        %v2129 = vrcp.pop %v1933
        %v2130 = vrcp.pop %v1936
        %v2131 = vrcp.pop %v1939
        %v2132 = vmul.f32 %v1986, %v2124
        %v2133 = vmul.f32 %v1989, %v2125
        %v2134 = vmul.f32 %v2030, %v2126
        %v2135 = vmul.f32 %v2033, %v2127
        %v2136 = vmul.f32 %v2074, %v2128
        %v2137 = vmul.f32 %v2077, %v2129
        %v2138 = vmul.f32 %v2118, %v2130
        %v2139 = vmul.f32 %v2121, %v2131
        %v2140 = vcombine.low %v2132, %v2136
        %v2141 = vcombine.high %v2132, %v2136
        %v2143 = vunpack.c.l.s4 1983009808
        %v2144 = vunpack.c.0.s8 %v2143
        %v2145 = vlaneseq
        %v2146 = vshrl.u32 %v2145, 7
        %v2147 = vsub.s32 %v2144, %v2146
        %v2148 = vrot.slane %v2140, %v2147
        %v2150 = vunpack.c.l.s4 1983009808
        %v2151 = vunpack.c.0.s8 %v2150
        %v2152 = vlaneseq
        %v2153 = vshrl.u32 %v2152, 7
        %v2154 = vsub.s32 %v2151, %v2153
        %v2155 = vrot.slane %v2141, %v2154
        %v2156 = vcombine.low %v2134, %v2138
        %v2157 = vcombine.high %v2134, %v2138
        %v2159 = vunpack.c.l.s4 1983009808
        %v2160 = vunpack.c.0.s8 %v2159
        %v2161 = vlaneseq
        %v2162 = vshrl.u32 %v2161, 7
        %v2163 = vsub.s32 %v2160, %v2162
        %v2164 = vrot.slane %v2156, %v2163
        %v2166 = vunpack.c.l.s4 1983009808
        %v2167 = vunpack.c.0.s8 %v2166
        %v2168 = vlaneseq
        %v2169 = vshrl.u32 %v2168, 7
        %v2170 = vsub.s32 %v2167, %v2169
        %v2171 = vrot.slane %v2157, %v2170
        %v2172 = vcombine.low %v2148, %v2164
        %v2173 = vcombine.high %v2148, %v2164
        %v2175 = vunpack.c.l.s4 1934713408
        %v2176 = vunpack.c.0.s8 %v2175
        %v2177 = vlaneseq
        %v2178 = vshrl.u32 %v2177, 7
        %v2179 = vsub.s32 %v2176, %v2178
        %v2180 = vrot.slane %v2172, %v2179
        %v2182 = vunpack.c.l.s4 1934713408
        %v2183 = vunpack.c.0.s8 %v2182
        %v2184 = vlaneseq
        %v2185 = vshrl.u32 %v2184, 7
        %v2186 = vsub.s32 %v2183, %v2185
        %v2187 = vrot.slane %v2173, %v2186
        %v2188 = vcombine.low %v2155, %v2171
        %v2189 = vcombine.high %v2155, %v2171
        %v2191 = vunpack.c.l.s4 1934713408
        %v2192 = vunpack.c.0.s8 %v2191
        %v2193 = vlaneseq
        %v2194 = vshrl.u32 %v2193, 7
        %v2195 = vsub.s32 %v2192, %v2194
        %v2196 = vrot.slane %v2188, %v2195
        %v2198 = vunpack.c.l.s4 1934713408
        %v2199 = vunpack.c.0.s8 %v2198
        %v2200 = vlaneseq
        %v2201 = vshrl.u32 %v2200, 7
        %v2202 = vsub.s32 %v2199, %v2201
        %v2203 = vrot.slane %v2189, %v2202
        %v2204 = vcombine.high %v2180, 0.0
        %v2205 = vcombine.high %v2187, 0.0
        %v2206 = vcombine.high %v2196, 0.0
        %v2207 = vcombine.high %v2203, 0.0
        %v2208 = vcombine.low %v2133, %v2137
        %v2209 = vcombine.high %v2133, %v2137
        %v2211 = vunpack.c.l.s4 1983009808
        %v2212 = vunpack.c.0.s8 %v2211
        %v2213 = vlaneseq
        %v2214 = vshrl.u32 %v2213, 7
        %v2215 = vsub.s32 %v2212, %v2214
        %v2216 = vrot.slane %v2208, %v2215
        %v2218 = vunpack.c.l.s4 1983009808
        %v2219 = vunpack.c.0.s8 %v2218
        %v2220 = vlaneseq
        %v2221 = vshrl.u32 %v2220, 7
        %v2222 = vsub.s32 %v2219, %v2221
        %v2223 = vrot.slane %v2209, %v2222
        %v2224 = vcombine.low %v2135, %v2139
        %v2225 = vcombine.high %v2135, %v2139
        %v2227 = vunpack.c.l.s4 1983009808
        %v2228 = vunpack.c.0.s8 %v2227
        %v2229 = vlaneseq
        %v2230 = vshrl.u32 %v2229, 7
        %v2231 = vsub.s32 %v2228, %v2230
        %v2232 = vrot.slane %v2224, %v2231
        %v2234 = vunpack.c.l.s4 1983009808
        %v2235 = vunpack.c.0.s8 %v2234
        %v2236 = vlaneseq
        %v2237 = vshrl.u32 %v2236, 7
        %v2238 = vsub.s32 %v2235, %v2237
        %v2239 = vrot.slane %v2225, %v2238
        %v2240 = vcombine.low %v2216, %v2232
        %v2241 = vcombine.high %v2216, %v2232
        %v2243 = vunpack.c.l.s4 1934713408
        %v2244 = vunpack.c.0.s8 %v2243
        %v2245 = vlaneseq
        %v2246 = vshrl.u32 %v2245, 7
        %v2247 = vsub.s32 %v2244, %v2246
        %v2248 = vrot.slane %v2240, %v2247
        %v2250 = vunpack.c.l.s4 1934713408
        %v2251 = vunpack.c.0.s8 %v2250
        %v2252 = vlaneseq
        %v2253 = vshrl.u32 %v2252, 7
        %v2254 = vsub.s32 %v2251, %v2253
        %v2255 = vrot.slane %v2241, %v2254
        %v2256 = vcombine.low %v2223, %v2239
        %v2257 = vcombine.high %v2223, %v2239
        %v2259 = vunpack.c.l.s4 1934713408
        %v2260 = vunpack.c.0.s8 %v2259
        %v2261 = vlaneseq
        %v2262 = vshrl.u32 %v2261, 7
        %v2263 = vsub.s32 %v2260, %v2262
        %v2264 = vrot.slane %v2256, %v2263
        %v2266 = vunpack.c.l.s4 1934713408
        %v2267 = vunpack.c.0.s8 %v2266
        %v2268 = vlaneseq
        %v2269 = vshrl.u32 %v2268, 7
        %v2270 = vsub.s32 %v2267, %v2269
        %v2271 = vrot.slane %v2257, %v2270
        %v2272 = vcombine.high %v2248, 0.0
        %v2273 = vcombine.high %v2255, 0.0
        %v2274 = vcombine.high %v2264, 0.0
        %v2275 = vcombine.high %v2271, 0.0
        %v2276 = vcombine.low %v2180, %v2187
        %v2278 = vunpack.c.l.s4 1983009808
        %v2279 = vunpack.c.0.s8 %v2278
        %v2280 = vlaneseq
        %v2281 = vshrl.u32 %v2280, 7
        %v2282 = vsub.s32 %v2279, %v2281
        %v2283 = vrot.slane %v2276, %v2282
        %v2284 = vcombine.low %v2204, %v2205
        %v2286 = vunpack.c.l.s4 1983009808
        %v2287 = vunpack.c.0.s8 %v2286
        %v2288 = vlaneseq
        %v2289 = vshrl.u32 %v2288, 7
        %v2290 = vsub.s32 %v2287, %v2289
        %v2291 = vrot.slane %v2284, %v2290
        %v2292 = vcombine.low %v2196, %v2203
        %v2294 = vunpack.c.l.s4 1983009808
        %v2295 = vunpack.c.0.s8 %v2294
        %v2296 = vlaneseq
        %v2297 = vshrl.u32 %v2296, 7
        %v2298 = vsub.s32 %v2295, %v2297
        %v2299 = vrot.slane %v2292, %v2298
        %v2300 = vcombine.low %v2206, %v2207
        %v2302 = vunpack.c.l.s4 1983009808
        %v2303 = vunpack.c.0.s8 %v2302
        %v2304 = vlaneseq
        %v2305 = vshrl.u32 %v2304, 7
        %v2306 = vsub.s32 %v2303, %v2305
        %v2307 = vrot.slane %v2300, %v2306
        %v2308 = vcombine.low %v2283, %v2291
        %v2309 = vcombine.high %v2283, %v2291
        %v2311 = vunpack.c.l.s4 1934713408
        %v2312 = vunpack.c.0.s8 %v2311
        %v2313 = vlaneseq
        %v2314 = vshrl.u32 %v2313, 7
        %v2315 = vsub.s32 %v2312, %v2314
        %v2316 = vrot.slane %v2308, %v2315
        %v2318 = vunpack.c.l.s4 1934713408
        %v2319 = vunpack.c.0.s8 %v2318
        %v2320 = vlaneseq
        %v2321 = vshrl.u32 %v2320, 7
        %v2322 = vsub.s32 %v2319, %v2321
        %v2323 = vrot.slane %v2309, %v2322
        %v2324 = vcombine.low %v2299, %v2307
        %v2325 = vcombine.high %v2299, %v2307
        %v2327 = vunpack.c.l.s4 1934713408
        %v2328 = vunpack.c.0.s8 %v2327
        %v2329 = vlaneseq
        %v2330 = vshrl.u32 %v2329, 7
        %v2331 = vsub.s32 %v2328, %v2330
        %v2332 = vrot.slane %v2324, %v2331
        %v2334 = vunpack.c.l.s4 1934713408
        %v2335 = vunpack.c.0.s8 %v2334
        %v2336 = vlaneseq
        %v2337 = vshrl.u32 %v2336, 7
        %v2338 = vsub.s32 %v2335, %v2337
        %v2339 = vrot.slane %v2325, %v2338
        %v2340 = vcombine.low %v2316, %v2332
        %v2341 = vcombine.high %v2316, %v2332
        %v2342 = vcombine.low %v2323, %v2339
        %v2343 = vcombine.high %v2323, %v2339
        %v2344 = vcombine.low %v2248, %v2255
        %v2346 = vunpack.c.l.s4 1983009808
        %v2347 = vunpack.c.0.s8 %v2346
        %v2348 = vlaneseq
        %v2349 = vshrl.u32 %v2348, 7
        %v2350 = vsub.s32 %v2347, %v2349
        %v2351 = vrot.slane %v2344, %v2350
        %v2352 = vcombine.low %v2272, %v2273
        %v2354 = vunpack.c.l.s4 1983009808
        %v2355 = vunpack.c.0.s8 %v2354
        %v2356 = vlaneseq
        %v2357 = vshrl.u32 %v2356, 7
        %v2358 = vsub.s32 %v2355, %v2357
        %v2359 = vrot.slane %v2352, %v2358
        %v2360 = vcombine.low %v2264, %v2271
        %v2362 = vunpack.c.l.s4 1983009808
        %v2363 = vunpack.c.0.s8 %v2362
        %v2364 = vlaneseq
        %v2365 = vshrl.u32 %v2364, 7
        %v2366 = vsub.s32 %v2363, %v2365
        %v2367 = vrot.slane %v2360, %v2366
        %v2368 = vcombine.low %v2274, %v2275
        %v2370 = vunpack.c.l.s4 1983009808
        %v2371 = vunpack.c.0.s8 %v2370
        %v2372 = vlaneseq
        %v2373 = vshrl.u32 %v2372, 7
        %v2374 = vsub.s32 %v2371, %v2373
        %v2375 = vrot.slane %v2368, %v2374
        %v2376 = vcombine.low %v2351, %v2359
        %v2377 = vcombine.high %v2351, %v2359
        %v2379 = vunpack.c.l.s4 1934713408
        %v2380 = vunpack.c.0.s8 %v2379
        %v2381 = vlaneseq
        %v2382 = vshrl.u32 %v2381, 7
        %v2383 = vsub.s32 %v2380, %v2382
        %v2384 = vrot.slane %v2376, %v2383
        %v2386 = vunpack.c.l.s4 1934713408
        %v2387 = vunpack.c.0.s8 %v2386
        %v2388 = vlaneseq
        %v2389 = vshrl.u32 %v2388, 7
        %v2390 = vsub.s32 %v2387, %v2389
        %v2391 = vrot.slane %v2377, %v2390
        %v2392 = vcombine.low %v2367, %v2375
        %v2393 = vcombine.high %v2367, %v2375
        %v2395 = vunpack.c.l.s4 1934713408
        %v2396 = vunpack.c.0.s8 %v2395
        %v2397 = vlaneseq
        %v2398 = vshrl.u32 %v2397, 7
        %v2399 = vsub.s32 %v2396, %v2398
        %v2400 = vrot.slane %v2392, %v2399
        %v2402 = vunpack.c.l.s4 1934713408
        %v2403 = vunpack.c.0.s8 %v2402
        %v2404 = vlaneseq
        %v2405 = vshrl.u32 %v2404, 7
        %v2406 = vsub.s32 %v2403, %v2405
        %v2407 = vrot.slane %v2393, %v2406
        %v2408 = vcombine.low %v2384, %v2400
        %v2409 = vcombine.high %v2384, %v2400
        %v2410 = vcombine.low %v2391, %v2407
        %v2411 = vcombine.high %v2391, %v2407
        %2414 = vrot.lane.b32.xlu0 %v2341, 32
        %v2415 = vpop.permute.xlu0 %2414
        %2416 = vrot.lane.b32.xlu0 %v2409, 32
        %v2417 = vpop.permute.xlu0 %2416
        %2422 = vrot.lane.b32.xlu0 %v2342, 64
        %v2423 = vpop.permute.xlu0 %2422
        %2424 = vrot.lane.b32.xlu0 %v2410, 64
        %v2425 = vpop.permute.xlu0 %2424
        %2430 = vrot.lane.b32.xlu0 %v2343, 96
        %v2431 = vpop.permute.xlu0 %2430
        %2432 = vrot.lane.b32.xlu0 %v2411, 96
        %v2433 = vpop.permute.xlu0 %2432
        %v2436 = vsel %vm1517, %v2340, %v2415
        %v2437 = vsel %vm1517, %v2408, %v2417
        %vm2438 = vcmask 523264
        %v2439 = vsel %vm2438, %v2436, %v2423
        %v2440 = vsel %vm2438, %v2437, %v2425
        %vm2441 = vcmask 785408
        %v2442 = vsel %vm2441, %v2439, %v2431
        %v2443 = vsel %vm2441, %v2440, %v2433
        %v2444 = vpack.c.bf16 %v2443, %v2442
        %v2445 = vld [vmem:[#allocation7] sm:$0xf]
        %v2446 = vld [vmem:[#allocation7 + $0x4] sm:$0xf]
        %v2447 = vld [vmem:[#allocation7 + $0x8] sm:$0xf]
        %v2448 = vld [vmem:[#allocation7 + $0xc] sm:$0xf]
        %v2449 = vld [vmem:[#allocation7 + $0x10] sm:$0xf]
        %v2450 = vld [vmem:[#allocation7 + $0x14] sm:$0xf]
        %v2451 = vld [vmem:[#allocation7 + $0x18] sm:$0xf]
        %v2452 = vld [vmem:[#allocation7 + $0x1c] sm:$0xf]
        %v2453 = vld [vmem:[#allocation7 + $0x20] sm:$0xf]
        %v2454 = vld [vmem:[#allocation7 + $0x24] sm:$0xf]
        %v2455 = vld [vmem:[#allocation7 + $0x28] sm:$0xf]
        %v2456 = vld [vmem:[#allocation7 + $0x2c] sm:$0xf]
        %v2457 = vld [vmem:[#allocation7 + $0x30] sm:$0xf]
        %v2458 = vld [vmem:[#allocation7 + $0x34] sm:$0xf]
        %v2459 = vld [vmem:[#allocation7 + $0x38] sm:$0xf]
        %v2460 = vld [vmem:[#allocation7 + $0x3c] sm:$0xf]
        %v2477 = vunpack.c.l.b16 %v2445
        %v2478 = vunpack.c.l.b16 %v2446
        %v2479 = vunpack.c.l.b16 %v2447
        %v2480 = vunpack.c.l.b16 %v2448
        %v2481 = vunpack.c.l.b16 %v2449
        %v2482 = vunpack.c.l.b16 %v2450
        %v2483 = vunpack.c.l.b16 %v2451
        %v2484 = vunpack.c.l.b16 %v2452
        %v2485 = vunpack.c.l.b16 %v2453
        %v2486 = vunpack.c.l.b16 %v2454
        %v2487 = vunpack.c.l.b16 %v2455
        %v2488 = vunpack.c.l.b16 %v2456
        %v2489 = vunpack.c.l.b16 %v2457
        %v2490 = vunpack.c.l.b16 %v2458
        %v2491 = vunpack.c.l.b16 %v2459
        %v2492 = vunpack.c.l.b16 %v2460
        %v2493 = vpack.c.b16 %v2478, %v2477
        %v2494 = vpack.c.b16 %v2480, %v2479
        %v2495 = vpack.c.b16 %v2482, %v2481
        %v2496 = vpack.c.b16 %v2484, %v2483
        %v2497 = vpack.c.b16 %v2486, %v2485
        %v2498 = vpack.c.b16 %v2488, %v2487
        %v2499 = vpack.c.b16 %v2490, %v2489
        %v2500 = vpack.c.b16 %v2492, %v2491
        %2509 = vmatprep.subr.bf16.mxu0 0
        %2510 = vmatpush1.bf16.msra.mxu0 %v2500
        %2511 = vmatprep.subr.bf16.mxu0 0
        %2512 = vmatpush1.bf16.msra.mxu0 %v2499
        %2513 = vmatprep.subr.bf16.mxu0 0
        %2514 = vmatpush1.bf16.msra.mxu0 %v2498
        %2515 = vmatprep.subr.bf16.mxu0 0
        %2516 = vmatpush1.bf16.msra.mxu0 %v2497
        %2517 = vmatprep.subr.bf16.mxu0 0
        %2518 = vmatpush1.bf16.msra.mxu0 %v2496
        %2519 = vmatprep.subr.bf16.mxu0 0
        %2520 = vmatpush1.bf16.msra.mxu0 %v2495
        %2521 = vmatprep.subr.bf16.mxu0 0
        %2522 = vmatpush1.bf16.msra.mxu0 %v2494
        %2523 = vmatprep.subr.bf16.mxu0 0
        %2524 = vmatpush1.bf16.msra.mxu0 %v2493
        %2525 = vmatprep.subr.bf16.mxu0 0
        %2526 = vmatpush2.bf16.msra.mxu0 0
        %2527 = vmatprep.subr.bf16.mxu0 0
        %2528 = vmatpush2.bf16.msra.mxu0 0
        %2529 = vmatprep.subr.bf16.mxu0 0
        %2530 = vmatpush2.bf16.msra.mxu0 0
        %2531 = vmatprep.subr.bf16.mxu0 0
        %2532 = vmatpush2.bf16.msra.mxu0 0
        %2533 = vmatprep.subr.bf16.mxu0 0
        %2534 = vmatpush2.bf16.msra.mxu0 0
        %2535 = vmatprep.subr.bf16.mxu0 0
        %2536 = vmatpush2.bf16.msra.mxu0 0
        %2537 = vmatprep.subr.bf16.mxu0 0
        %2538 = vmatpush2.bf16.msra.mxu0 0
        %2539 = vmatprep.subr.bf16.mxu0 0
        %2540 = vmatpush2.bf16.msra.mxu0 0
        %2541 = vmatprep.mubr.bf16.mxu0 0
        %2542 = vmatmul.mubr.bf16.gmra.mxu0 %v2444
        %v2543 = vpop.f32.mrf.mxu0
        %v2544 = vadd.f32 0.0, %v2543
        %v2545 = vpop.f32.mrf.mxu0
        %v2546 = vpop.f32.mrf.mxu0
        %v2547 = vadd.f32 0.0, %v2546
        %v2548 = vpop.f32.mrf.mxu0
        %2549 = vdwg.mxu0
        %v2550 = vadd.f32 %v342, %v2544
        %v2551 = vadd.f32 %v343, %v2547
        %2552 = vadd.xlane.f32.xlu0 %v2550
        %v2553 = vpop.xlane.xlu0 %2552
        %2554 = vadd.xlane.f32.xlu0 %v2551
        %v2555 = vpop.xlane.xlu0 %2554
        %v2556 = vmul.f32 %v2553, %v357
        %v2557 = vmul.f32 %v2555, %v357
        %v2558 = vsub.f32 %v2550, %v2556
        %v2559 = vsub.f32 %v2551, %v2557
        %v2560 = vmul.f32 %v2558, %v2558
        %v2561 = vmul.f32 %v2559, %v2559
        %2562 = vadd.xlane.f32.xlu0 %v2560
        %v2563 = vpop.xlane.xlu0 %2562
        %2564 = vadd.xlane.f32.xlu0 %v2561
        %v2565 = vpop.xlane.xlu0 %2564
        %v2566 = vmul.f32 %v2563, %v357
        %v2567 = vmul.f32 %v2565, %v357
        %v2568 = vadd.f32 %v2566, 1e-05
        %v2569 = vadd.f32 %v2567, 1e-05
        %v2570 = vrsqrt.pop %v2568
        %v2571 = vrsqrt.pop %v2569
        %v2572 = vmul.f32 %v2558, %v2570
        %v2573 = vmul.f32 %v2559, %v2571
        %v2574 = vlaneseq
        %v2575 = vshrl.u32 %v2574, 7
        %v2576 = vsub.s32 0, %v2575
        %v2577 = vrot.slane %v346, %v2576
        %v2578 = vmul.f32 %v2572, %v2577
        %v2579 = vmul.f32 %v2573, %v2577
        %v2580 = vlaneseq
        %v2581 = vshrl.u32 %v2580, 7
        %v2582 = vsub.s32 0, %v2581
        %v2583 = vrot.slane %v347, %v2582
        %v2584 = vadd.f32 %v2578, %v2583
        %v2585 = vadd.f32 %v2579, %v2583
        %v2586 = vpack.c.bf16 %v2585, %v2584
        %v2587 = vld [vmem:[#allocation8] sm:$0xff]
        %v2588 = vld [vmem:[#allocation8 + $0x8] sm:$0xff]
        %v2589 = vld [vmem:[#allocation8 + $0x10] sm:$0xff]
        %v2590 = vld [vmem:[#allocation8 + $0x18] sm:$0xff]
        %v2591 = vld [vmem:[#allocation8 + $0x20] sm:$0xff]
        %v2592 = vld [vmem:[#allocation8 + $0x28] sm:$0xff]
        %v2593 = vld [vmem:[#allocation8 + $0x30] sm:$0xff]
        %v2594 = vld [vmem:[#allocation8 + $0x38] sm:$0xff]
        %v2595 = vld [vmem:[#allocation8 + $0x40] sm:$0xff]
        %v2596 = vld [vmem:[#allocation8 + $0x48] sm:$0xff]
        %v2597 = vld [vmem:[#allocation8 + $0x50] sm:$0xff]
        %v2598 = vld [vmem:[#allocation8 + $0x58] sm:$0xff]
        %v2599 = vld [vmem:[#allocation8 + $0x60] sm:$0xff]
        %v2600 = vld [vmem:[#allocation8 + $0x68] sm:$0xff]
        %v2601 = vld [vmem:[#allocation8 + $0x70] sm:$0xff]
        %v2602 = vld [vmem:[#allocation8 + $0x78] sm:$0xff]
        %v2603 = vld [vmem:[#allocation8 + $0x80] sm:$0xff]
        %v2604 = vld [vmem:[#allocation8 + $0x88] sm:$0xff]
        %v2605 = vld [vmem:[#allocation8 + $0x90] sm:$0xff]
        %v2606 = vld [vmem:[#allocation8 + $0x98] sm:$0xff]
        %v2607 = vld [vmem:[#allocation8 + $0xa0] sm:$0xff]
        %v2608 = vld [vmem:[#allocation8 + $0xa8] sm:$0xff]
        %v2609 = vld [vmem:[#allocation8 + $0xb0] sm:$0xff]
        %v2610 = vld [vmem:[#allocation8 + $0xb8] sm:$0xff]
        %v2611 = vld [vmem:[#allocation8 + $0xc0] sm:$0xff]
        %v2612 = vld [vmem:[#allocation8 + $0xc8] sm:$0xff]
        %v2613 = vld [vmem:[#allocation8 + $0xd0] sm:$0xff]
        %v2614 = vld [vmem:[#allocation8 + $0xd8] sm:$0xff]
        %v2615 = vld [vmem:[#allocation8 + $0xe0] sm:$0xff]
        %v2616 = vld [vmem:[#allocation8 + $0xe8] sm:$0xff]
        %v2617 = vld [vmem:[#allocation8 + $0xf0] sm:$0xff]
        %v2618 = vld [vmem:[#allocation8 + $0xf8] sm:$0xff]
        %v2620 = vlaneseq
        %v2621 = vshrl.u32 %v2620, 7
        %v2622 = vsub.s32 0, %v2621
        %v2623 = vrot.slane %v352, %v2622
        %v2624 = vlaneseq
        %v2625 = vshrl.u32 %v2624, 7
        %v2626 = vsub.s32 1, %v2625
        %v2627 = vrot.slane %v352, %v2626
        %v2628 = vlaneseq
        %v2629 = vshrl.u32 %v2628, 7
        %v2630 = vsub.s32 2, %v2629
        %v2631 = vrot.slane %v352, %v2630
        %v2632 = vlaneseq
        %v2633 = vshrl.u32 %v2632, 7
        %v2634 = vsub.s32 3, %v2633
        %v2635 = vrot.slane %v352, %v2634
        %v2672 = vunpack.c.l.b16 %v2587
        %v2673 = vunpack.c.h.b16 %v2587
        %v2674 = vunpack.c.l.b16 %v2588
        %v2675 = vunpack.c.h.b16 %v2588
        %v2676 = vunpack.c.l.b16 %v2589
        %v2677 = vunpack.c.h.b16 %v2589
        %v2678 = vunpack.c.l.b16 %v2590
        %v2679 = vunpack.c.h.b16 %v2590
        %v2680 = vunpack.c.l.b16 %v2591
        %v2681 = vunpack.c.h.b16 %v2591
        %v2682 = vunpack.c.l.b16 %v2592
        %v2683 = vunpack.c.h.b16 %v2592
        %v2684 = vunpack.c.l.b16 %v2593
        %v2685 = vunpack.c.h.b16 %v2593
        %v2686 = vunpack.c.l.b16 %v2594
        %v2687 = vunpack.c.h.b16 %v2594
        %v2688 = vunpack.c.l.b16 %v2595
        %v2689 = vunpack.c.h.b16 %v2595
        %v2690 = vunpack.c.l.b16 %v2596
        %v2691 = vunpack.c.h.b16 %v2596
        %v2692 = vunpack.c.l.b16 %v2597
        %v2693 = vunpack.c.h.b16 %v2597
        %v2694 = vunpack.c.l.b16 %v2598
        %v2695 = vunpack.c.h.b16 %v2598
        %v2696 = vunpack.c.l.b16 %v2599
        %v2697 = vunpack.c.h.b16 %v2599
        %v2698 = vunpack.c.l.b16 %v2600
        %v2699 = vunpack.c.h.b16 %v2600
        %v2700 = vunpack.c.l.b16 %v2601
        %v2701 = vunpack.c.h.b16 %v2601
        %v2702 = vunpack.c.l.b16 %v2602
        %v2703 = vunpack.c.h.b16 %v2602
        %v2704 = vunpack.c.l.b16 %v2603
        %v2705 = vunpack.c.h.b16 %v2603
        %v2706 = vunpack.c.l.b16 %v2604
        %v2707 = vunpack.c.h.b16 %v2604
        %v2708 = vunpack.c.l.b16 %v2605
        %v2709 = vunpack.c.h.b16 %v2605
        %v2710 = vunpack.c.l.b16 %v2606
        %v2711 = vunpack.c.h.b16 %v2606
        %v2712 = vunpack.c.l.b16 %v2607
        %v2713 = vunpack.c.h.b16 %v2607
        %v2714 = vunpack.c.l.b16 %v2608
        %v2715 = vunpack.c.h.b16 %v2608
        %v2716 = vunpack.c.l.b16 %v2609
        %v2717 = vunpack.c.h.b16 %v2609
        %v2718 = vunpack.c.l.b16 %v2610
        %v2719 = vunpack.c.h.b16 %v2610
        %v2720 = vunpack.c.l.b16 %v2611
        %v2721 = vunpack.c.h.b16 %v2611
        %v2722 = vunpack.c.l.b16 %v2612
        %v2723 = vunpack.c.h.b16 %v2612
        %v2724 = vunpack.c.l.b16 %v2613
        %v2725 = vunpack.c.h.b16 %v2613
        %v2726 = vunpack.c.l.b16 %v2614
        %v2727 = vunpack.c.h.b16 %v2614
        %v2728 = vunpack.c.l.b16 %v2615
        %v2729 = vunpack.c.h.b16 %v2615
        %v2730 = vunpack.c.l.b16 %v2616
        %v2731 = vunpack.c.h.b16 %v2616
        %v2732 = vunpack.c.l.b16 %v2617
        %v2733 = vunpack.c.h.b16 %v2617
        %v2734 = vunpack.c.l.b16 %v2618
        %v2735 = vunpack.c.h.b16 %v2618
        %v2736 = vpack.c.b16 %v2676, %v2672
        %v2737 = vpack.c.b16 %v2677, %v2673
        %v2738 = vpack.c.b16 %v2678, %v2674
        %v2739 = vpack.c.b16 %v2679, %v2675
        %v2740 = vpack.c.b16 %v2684, %v2680
        %v2741 = vpack.c.b16 %v2685, %v2681
        %v2742 = vpack.c.b16 %v2686, %v2682
        %v2743 = vpack.c.b16 %v2687, %v2683
        %v2744 = vpack.c.b16 %v2692, %v2688
        %v2745 = vpack.c.b16 %v2693, %v2689
        %v2746 = vpack.c.b16 %v2694, %v2690
        %v2747 = vpack.c.b16 %v2695, %v2691
        %v2748 = vpack.c.b16 %v2700, %v2696
        %v2749 = vpack.c.b16 %v2701, %v2697
        %v2750 = vpack.c.b16 %v2702, %v2698
        %v2751 = vpack.c.b16 %v2703, %v2699
        %v2752 = vpack.c.b16 %v2708, %v2704
        %v2753 = vpack.c.b16 %v2709, %v2705
        %v2754 = vpack.c.b16 %v2710, %v2706
        %v2755 = vpack.c.b16 %v2711, %v2707
        %v2756 = vpack.c.b16 %v2716, %v2712
        %v2757 = vpack.c.b16 %v2717, %v2713
        %v2758 = vpack.c.b16 %v2718, %v2714
        %v2759 = vpack.c.b16 %v2719, %v2715
        %v2760 = vpack.c.b16 %v2724, %v2720
        %v2761 = vpack.c.b16 %v2725, %v2721
        %v2762 = vpack.c.b16 %v2726, %v2722
        %v2763 = vpack.c.b16 %v2727, %v2723
        %v2764 = vpack.c.b16 %v2732, %v2728
        %v2765 = vpack.c.b16 %v2733, %v2729
        %v2766 = vpack.c.b16 %v2734, %v2730
        %v2767 = vpack.c.b16 %v2735, %v2731
        %2800 = vmatprep.subr.bf16.mxu0 %v2765
        %2801 = vmatpush1.bf16.msra.mxu0 %v2764
        %2802 = vmatprep.subr.bf16.mxu0 %v2761
        %2803 = vmatpush1.bf16.msra.mxu0 %v2760
        %2804 = vmatprep.subr.bf16.mxu0 %v2757
        %2805 = vmatpush1.bf16.msra.mxu0 %v2756
        %2806 = vmatprep.subr.bf16.mxu0 %v2753
        %2807 = vmatpush1.bf16.msra.mxu0 %v2752
        %2808 = vmatprep.subr.bf16.mxu0 %v2749
        %2809 = vmatpush1.bf16.msra.mxu0 %v2748
        %2810 = vmatprep.subr.bf16.mxu0 %v2745
        %2811 = vmatpush1.bf16.msra.mxu0 %v2744
        %2812 = vmatprep.subr.bf16.mxu0 %v2741
        %2813 = vmatpush1.bf16.msra.mxu0 %v2740
        %2814 = vmatprep.subr.bf16.mxu0 %v2737
        %2815 = vmatpush1.bf16.msra.mxu0 %v2736
        %2816 = vmatprep.subr.bf16.mxu0 0
        %2817 = vmatpush2.bf16.msra.mxu0 0
        %2818 = vmatprep.subr.bf16.mxu0 0
        %2819 = vmatpush2.bf16.msra.mxu0 0
        %2820 = vmatprep.subr.bf16.mxu0 0
        %2821 = vmatpush2.bf16.msra.mxu0 0
        %2822 = vmatprep.subr.bf16.mxu0 0
        %2823 = vmatpush2.bf16.msra.mxu0 0
        %2824 = vmatprep.subr.bf16.mxu0 0
        %2825 = vmatpush2.bf16.msra.mxu0 0
        %2826 = vmatprep.subr.bf16.mxu0 0
        %2827 = vmatpush2.bf16.msra.mxu0 0
        %2828 = vmatprep.subr.bf16.mxu0 0
        %2829 = vmatpush2.bf16.msra.mxu0 0
        %2830 = vmatprep.subr.bf16.mxu0 0
        %2831 = vmatpush2.bf16.msra.mxu0 0
        %2832 = vmatprep.mubr.bf16.mxu0 0
        %2833 = vmatmul.mubr.bf16.gmra.mxu0 %v2586
        %v2834 = vpop.f32.mrf.mxu0
        %v2835 = vadd.f32 %v2623, %v2834
        %v2836 = vpop.f32.mrf.mxu0
        %v2837 = vadd.f32 %v2627, %v2836
        %v2838 = vpop.f32.mrf.mxu0
        %v2839 = vadd.f32 %v2623, %v2838
        %v2840 = vpop.f32.mrf.mxu0
        %v2841 = vadd.f32 %v2627, %v2840
        %2842 = vdwg.mxu0
        %2843 = vmatprep.subr.bf16.mxu0 %v2767
        %2844 = vmatpush1.bf16.msra.mxu0 %v2766
        %2845 = vmatprep.subr.bf16.mxu0 %v2763
        %2846 = vmatpush1.bf16.msra.mxu0 %v2762
        %2847 = vmatprep.subr.bf16.mxu0 %v2759
        %2848 = vmatpush1.bf16.msra.mxu0 %v2758
        %2849 = vmatprep.subr.bf16.mxu0 %v2755
        %2850 = vmatpush1.bf16.msra.mxu0 %v2754
        %2851 = vmatprep.subr.bf16.mxu0 %v2751
        %2852 = vmatpush1.bf16.msra.mxu0 %v2750
        %2853 = vmatprep.subr.bf16.mxu0 %v2747
        %2854 = vmatpush1.bf16.msra.mxu0 %v2746
        %2855 = vmatprep.subr.bf16.mxu0 %v2743
        %2856 = vmatpush1.bf16.msra.mxu0 %v2742
        %2857 = vmatprep.subr.bf16.mxu0 %v2739
        %2858 = vmatpush1.bf16.msra.mxu0 %v2738
        %2859 = vmatprep.subr.bf16.mxu0 0
        %2860 = vmatpush2.bf16.msra.mxu0 0
        %2861 = vmatprep.subr.bf16.mxu0 0
        %2862 = vmatpush2.bf16.msra.mxu0 0
        %2863 = vmatprep.subr.bf16.mxu0 0
        %2864 = vmatpush2.bf16.msra.mxu0 0
        %2865 = vmatprep.subr.bf16.mxu0 0
        %2866 = vmatpush2.bf16.msra.mxu0 0
        %2867 = vmatprep.subr.bf16.mxu0 0
        %2868 = vmatpush2.bf16.msra.mxu0 0
        %2869 = vmatprep.subr.bf16.mxu0 0
        %2870 = vmatpush2.bf16.msra.mxu0 0
        %2871 = vmatprep.subr.bf16.mxu0 0
        %2872 = vmatpush2.bf16.msra.mxu0 0
        %2873 = vmatprep.subr.bf16.mxu0 0
        %2874 = vmatpush2.bf16.msra.mxu0 0
        %2875 = vmatprep.mubr.bf16.mxu0 0
        %2876 = vmatmul.mubr.bf16.gmra.mxu0 %v2586
        %v2877 = vpop.f32.mrf.mxu0
        %v2878 = vadd.f32 %v2631, %v2877
        %v2879 = vpop.f32.mrf.mxu0
        %v2880 = vadd.f32 %v2635, %v2879
        %v2881 = vpop.f32.mrf.mxu0
        %v2882 = vadd.f32 %v2631, %v2881
        %v2883 = vpop.f32.mrf.mxu0
        %v2884 = vadd.f32 %v2635, %v2883
        %2885 = vdwg.mxu0
        %v2886 = vmul.f32 %v2835, %v2835
        %v2887 = vmul.f32 %v2837, %v2837
        %v2888 = vmul.f32 %v2878, %v2878
        %v2889 = vmul.f32 %v2880, %v2880
        %v2890 = vmul.f32 %v2839, %v2839
        %v2891 = vmul.f32 %v2841, %v2841
        %v2892 = vmul.f32 %v2882, %v2882
        %v2893 = vmul.f32 %v2884, %v2884
        %v2894 = vmul.f32 %v2835, %v2886
        %v2895 = vmul.f32 %v2837, %v2887
        %v2896 = vmul.f32 %v2878, %v2888
        %v2897 = vmul.f32 %v2880, %v2889
        %v2898 = vmul.f32 %v2839, %v2890
        %v2899 = vmul.f32 %v2841, %v2891
        %v2900 = vmul.f32 %v2882, %v2892
        %v2901 = vmul.f32 %v2884, %v2893
        %v2902 = vmul.f32 %v2894, 0.044715
        %v2903 = vmul.f32 %v2895, 0.044715
        %v2904 = vmul.f32 %v2896, 0.044715
        %v2905 = vmul.f32 %v2897, 0.044715
        %v2906 = vmul.f32 %v2898, 0.044715
        %v2907 = vmul.f32 %v2899, 0.044715
        %v2908 = vmul.f32 %v2900, 0.044715
        %v2909 = vmul.f32 %v2901, 0.044715
        %v2910 = vadd.f32 %v2835, %v2902
        %v2911 = vadd.f32 %v2837, %v2903
        %v2912 = vadd.f32 %v2878, %v2904
        %v2913 = vadd.f32 %v2880, %v2905
        %v2914 = vadd.f32 %v2839, %v2906
        %v2915 = vadd.f32 %v2841, %v2907
        %v2916 = vadd.f32 %v2882, %v2908
        %v2917 = vadd.f32 %v2884, %v2909
        %v2918 = vmul.f32 %v2910, 0.7978846
        %v2919 = vmul.f32 %v2911, 0.7978846
        %v2920 = vmul.f32 %v2912, 0.7978846
        %v2921 = vmul.f32 %v2913, 0.7978846
        %v2922 = vmul.f32 %v2914, 0.7978846
        %v2923 = vmul.f32 %v2915, 0.7978846
        %v2924 = vmul.f32 %v2916, 0.7978846
        %v2925 = vmul.f32 %v2917, 0.7978846
        %v2926 = vtanh.pop %v2918
        %v2927 = vtanh.pop %v2919
        %v2928 = vtanh.pop %v2920
        %v2929 = vtanh.pop %v2921
        %v2930 = vtanh.pop %v2922
        %v2931 = vtanh.pop %v2923
        %v2932 = vtanh.pop %v2924
        %v2933 = vtanh.pop %v2925
        %v2934 = vadd.f32 %v2926, 1.0
        %v2935 = vadd.f32 %v2927, 1.0
        %v2936 = vadd.f32 %v2928, 1.0
        %v2937 = vadd.f32 %v2929, 1.0
        %v2938 = vadd.f32 %v2930, 1.0
        %v2939 = vadd.f32 %v2931, 1.0
        %v2940 = vadd.f32 %v2932, 1.0
        %v2941 = vadd.f32 %v2933, 1.0
        %v2942 = vmul.f32 %v2934, 0.5
        %v2943 = vmul.f32 %v2935, 0.5
        %v2944 = vmul.f32 %v2936, 0.5
        %v2945 = vmul.f32 %v2937, 0.5
        %v2946 = vmul.f32 %v2938, 0.5
        %v2947 = vmul.f32 %v2939, 0.5
        %v2948 = vmul.f32 %v2940, 0.5
        %v2949 = vmul.f32 %v2941, 0.5
        %v2950 = vmul.f32 %v2835, %v2942
        %v2951 = vmul.f32 %v2837, %v2943
        %v2952 = vmul.f32 %v2878, %v2944
        %v2953 = vmul.f32 %v2880, %v2945
        %v2954 = vmul.f32 %v2839, %v2946
        %v2955 = vmul.f32 %v2841, %v2947
        %v2956 = vmul.f32 %v2882, %v2948
        %v2957 = vmul.f32 %v2884, %v2949
        %v2958 = vpack.c.bf16 %v2954, %v2950
        %v2959 = vpack.c.bf16 %v2955, %v2951
        %v2960 = vpack.c.bf16 %v2956, %v2952
        %v2961 = vpack.c.bf16 %v2957, %v2953
        %v2962 = vld [vmem:[#allocation10] sm:$0xf]
        %v2963 = vld [vmem:[#allocation10 + $0x4] sm:$0xf]
        %v2964 = vld [vmem:[#allocation10 + $0x8] sm:$0xf]
        %v2965 = vld [vmem:[#allocation10 + $0xc] sm:$0xf]
        %v2966 = vld [vmem:[#allocation10 + $0x10] sm:$0xf]
        %v2967 = vld [vmem:[#allocation10 + $0x14] sm:$0xf]
        %v2968 = vld [vmem:[#allocation10 + $0x18] sm:$0xf]
        %v2969 = vld [vmem:[#allocation10 + $0x1c] sm:$0xf]
        %v2970 = vld [vmem:[#allocation10 + $0x20] sm:$0xf]
        %v2971 = vld [vmem:[#allocation10 + $0x24] sm:$0xf]
        %v2972 = vld [vmem:[#allocation10 + $0x28] sm:$0xf]
        %v2973 = vld [vmem:[#allocation10 + $0x2c] sm:$0xf]
        %v2974 = vld [vmem:[#allocation10 + $0x30] sm:$0xf]
        %v2975 = vld [vmem:[#allocation10 + $0x34] sm:$0xf]
        %v2976 = vld [vmem:[#allocation10 + $0x38] sm:$0xf]
        %v2977 = vld [vmem:[#allocation10 + $0x3c] sm:$0xf]
        %v2978 = vld [vmem:[#allocation10 + $0x40] sm:$0xf]
        %v2979 = vld [vmem:[#allocation10 + $0x44] sm:$0xf]
        %v2980 = vld [vmem:[#allocation10 + $0x48] sm:$0xf]
        %v2981 = vld [vmem:[#allocation10 + $0x4c] sm:$0xf]
        %v2982 = vld [vmem:[#allocation10 + $0x50] sm:$0xf]
        %v2983 = vld [vmem:[#allocation10 + $0x54] sm:$0xf]
        %v2984 = vld [vmem:[#allocation10 + $0x58] sm:$0xf]
        %v2985 = vld [vmem:[#allocation10 + $0x5c] sm:$0xf]
        %v2986 = vld [vmem:[#allocation10 + $0x60] sm:$0xf]
        %v2987 = vld [vmem:[#allocation10 + $0x64] sm:$0xf]
        %v2988 = vld [vmem:[#allocation10 + $0x68] sm:$0xf]
        %v2989 = vld [vmem:[#allocation10 + $0x6c] sm:$0xf]
        %v2990 = vld [vmem:[#allocation10 + $0x70] sm:$0xf]
        %v2991 = vld [vmem:[#allocation10 + $0x74] sm:$0xf]
        %v2992 = vld [vmem:[#allocation10 + $0x78] sm:$0xf]
        %v2993 = vld [vmem:[#allocation10 + $0x7c] sm:$0xf]
        %v2994 = vld [vmem:[#allocation10 + $0x80] sm:$0xf]
        %v2995 = vld [vmem:[#allocation10 + $0x84] sm:$0xf]
        %v2996 = vld [vmem:[#allocation10 + $0x88] sm:$0xf]
        %v2997 = vld [vmem:[#allocation10 + $0x8c] sm:$0xf]
        %v2998 = vld [vmem:[#allocation10 + $0x90] sm:$0xf]
        %v2999 = vld [vmem:[#allocation10 + $0x94] sm:$0xf]
        %v3000 = vld [vmem:[#allocation10 + $0x98] sm:$0xf]
        %v3001 = vld [vmem:[#allocation10 + $0x9c] sm:$0xf]
        %v3002 = vld [vmem:[#allocation10 + $0xa0] sm:$0xf]
        %v3003 = vld [vmem:[#allocation10 + $0xa4] sm:$0xf]
        %v3004 = vld [vmem:[#allocation10 + $0xa8] sm:$0xf]
        %v3005 = vld [vmem:[#allocation10 + $0xac] sm:$0xf]
        %v3006 = vld [vmem:[#allocation10 + $0xb0] sm:$0xf]
        %v3007 = vld [vmem:[#allocation10 + $0xb4] sm:$0xf]
        %v3008 = vld [vmem:[#allocation10 + $0xb8] sm:$0xf]
        %v3009 = vld [vmem:[#allocation10 + $0xbc] sm:$0xf]
        %v3010 = vld [vmem:[#allocation10 + $0xc0] sm:$0xf]
        %v3011 = vld [vmem:[#allocation10 + $0xc4] sm:$0xf]
        %v3012 = vld [vmem:[#allocation10 + $0xc8] sm:$0xf]
        %v3013 = vld [vmem:[#allocation10 + $0xcc] sm:$0xf]
        %v3014 = vld [vmem:[#allocation10 + $0xd0] sm:$0xf]
        %v3015 = vld [vmem:[#allocation10 + $0xd4] sm:$0xf]
        %v3016 = vld [vmem:[#allocation10 + $0xd8] sm:$0xf]
        %v3017 = vld [vmem:[#allocation10 + $0xdc] sm:$0xf]
        %v3018 = vld [vmem:[#allocation10 + $0xe0] sm:$0xf]
        %v3019 = vld [vmem:[#allocation10 + $0xe4] sm:$0xf]
        %v3020 = vld [vmem:[#allocation10 + $0xe8] sm:$0xf]
        %v3021 = vld [vmem:[#allocation10 + $0xec] sm:$0xf]
        %v3022 = vld [vmem:[#allocation10 + $0xf0] sm:$0xf]
        %v3023 = vld [vmem:[#allocation10 + $0xf4] sm:$0xf]
        %v3024 = vld [vmem:[#allocation10 + $0xf8] sm:$0xf]
        %v3025 = vld [vmem:[#allocation10 + $0xfc] sm:$0xf]
        %v3026 = vlaneseq
        %v3027 = vshrl.u32 %v3026, 7
        %v3028 = vsub.s32 0, %v3027
        %v3029 = vrot.slane %v348, %v3028
        %v3094 = vunpack.c.l.b16 %v2962
        %v3095 = vunpack.c.l.b16 %v2963
        %v3096 = vunpack.c.l.b16 %v2964
        %v3097 = vunpack.c.l.b16 %v2965
        %v3098 = vunpack.c.l.b16 %v2966
        %v3099 = vunpack.c.l.b16 %v2967
        %v3100 = vunpack.c.l.b16 %v2968
        %v3101 = vunpack.c.l.b16 %v2969
        %v3102 = vunpack.c.l.b16 %v2970
        %v3103 = vunpack.c.l.b16 %v2971
        %v3104 = vunpack.c.l.b16 %v2972
        %v3105 = vunpack.c.l.b16 %v2973
        %v3106 = vunpack.c.l.b16 %v2974
        %v3107 = vunpack.c.l.b16 %v2975
        %v3108 = vunpack.c.l.b16 %v2976
        %v3109 = vunpack.c.l.b16 %v2977
        %v3110 = vunpack.c.l.b16 %v2978
        %v3111 = vunpack.c.l.b16 %v2979
        %v3112 = vunpack.c.l.b16 %v2980
        %v3113 = vunpack.c.l.b16 %v2981
        %v3114 = vunpack.c.l.b16 %v2982
        %v3115 = vunpack.c.l.b16 %v2983
        %v3116 = vunpack.c.l.b16 %v2984
        %v3117 = vunpack.c.l.b16 %v2985
        %v3118 = vunpack.c.l.b16 %v2986
        %v3119 = vunpack.c.l.b16 %v2987
        %v3120 = vunpack.c.l.b16 %v2988
        %v3121 = vunpack.c.l.b16 %v2989
        %v3122 = vunpack.c.l.b16 %v2990
        %v3123 = vunpack.c.l.b16 %v2991
        %v3124 = vunpack.c.l.b16 %v2992
        %v3125 = vunpack.c.l.b16 %v2993
        %v3126 = vunpack.c.l.b16 %v2994
        %v3127 = vunpack.c.l.b16 %v2995
        %v3128 = vunpack.c.l.b16 %v2996
        %v3129 = vunpack.c.l.b16 %v2997
        %v3130 = vunpack.c.l.b16 %v2998
        %v3131 = vunpack.c.l.b16 %v2999
        %v3132 = vunpack.c.l.b16 %v3000
        %v3133 = vunpack.c.l.b16 %v3001
        %v3134 = vunpack.c.l.b16 %v3002
        %v3135 = vunpack.c.l.b16 %v3003
        %v3136 = vunpack.c.l.b16 %v3004
        %v3137 = vunpack.c.l.b16 %v3005
        %v3138 = vunpack.c.l.b16 %v3006
        %v3139 = vunpack.c.l.b16 %v3007
        %v3140 = vunpack.c.l.b16 %v3008
        %v3141 = vunpack.c.l.b16 %v3009
        %v3142 = vunpack.c.l.b16 %v3010
        %v3143 = vunpack.c.l.b16 %v3011
        %v3144 = vunpack.c.l.b16 %v3012
        %v3145 = vunpack.c.l.b16 %v3013
        %v3146 = vunpack.c.l.b16 %v3014
        %v3147 = vunpack.c.l.b16 %v3015
        %v3148 = vunpack.c.l.b16 %v3016
        %v3149 = vunpack.c.l.b16 %v3017
        %v3150 = vunpack.c.l.b16 %v3018
        %v3151 = vunpack.c.l.b16 %v3019
        %v3152 = vunpack.c.l.b16 %v3020
        %v3153 = vunpack.c.l.b16 %v3021
        %v3154 = vunpack.c.l.b16 %v3022
        %v3155 = vunpack.c.l.b16 %v3023
        %v3156 = vunpack.c.l.b16 %v3024
        %v3157 = vunpack.c.l.b16 %v3025
        %v3158 = vpack.c.b16 %v3095, %v3094
        %v3159 = vpack.c.b16 %v3097, %v3096
        %v3160 = vpack.c.b16 %v3099, %v3098
        %v3161 = vpack.c.b16 %v3101, %v3100
        %v3162 = vpack.c.b16 %v3103, %v3102
        %v3163 = vpack.c.b16 %v3105, %v3104
        %v3164 = vpack.c.b16 %v3107, %v3106
        %v3165 = vpack.c.b16 %v3109, %v3108
        %v3166 = vpack.c.b16 %v3111, %v3110
        %v3167 = vpack.c.b16 %v3113, %v3112
        %v3168 = vpack.c.b16 %v3115, %v3114
        %v3169 = vpack.c.b16 %v3117, %v3116
        %v3170 = vpack.c.b16 %v3119, %v3118
        %v3171 = vpack.c.b16 %v3121, %v3120
        %v3172 = vpack.c.b16 %v3123, %v3122
        %v3173 = vpack.c.b16 %v3125, %v3124
        %v3174 = vpack.c.b16 %v3127, %v3126
        %v3175 = vpack.c.b16 %v3129, %v3128
        %v3176 = vpack.c.b16 %v3131, %v3130
        %v3177 = vpack.c.b16 %v3133, %v3132
        %v3178 = vpack.c.b16 %v3135, %v3134
        %v3179 = vpack.c.b16 %v3137, %v3136
        %v3180 = vpack.c.b16 %v3139, %v3138
        %v3181 = vpack.c.b16 %v3141, %v3140
        %v3182 = vpack.c.b16 %v3143, %v3142
        %v3183 = vpack.c.b16 %v3145, %v3144
        %v3184 = vpack.c.b16 %v3147, %v3146
        %v3185 = vpack.c.b16 %v3149, %v3148
        %v3186 = vpack.c.b16 %v3151, %v3150
        %v3187 = vpack.c.b16 %v3153, %v3152
        %v3188 = vpack.c.b16 %v3155, %v3154
        %v3189 = vpack.c.b16 %v3157, %v3156
        %3222 = vmatprep.subr.bf16.mxu0 0
        %3223 = vmatpush1.bf16.msra.mxu0 %v3165
        %3224 = vmatprep.subr.bf16.mxu0 0
        %3225 = vmatpush1.bf16.msra.mxu0 %v3164
        %3226 = vmatprep.subr.bf16.mxu0 0
        %3227 = vmatpush1.bf16.msra.mxu0 %v3163
        %3228 = vmatprep.subr.bf16.mxu0 0
        %3229 = vmatpush1.bf16.msra.mxu0 %v3162
        %3230 = vmatprep.subr.bf16.mxu0 0
        %3231 = vmatpush1.bf16.msra.mxu0 %v3161
        %3232 = vmatprep.subr.bf16.mxu0 0
        %3233 = vmatpush1.bf16.msra.mxu0 %v3160
        %3234 = vmatprep.subr.bf16.mxu0 0
        %3235 = vmatpush1.bf16.msra.mxu0 %v3159
        %3236 = vmatprep.subr.bf16.mxu0 0
        %3237 = vmatpush1.bf16.msra.mxu0 %v3158
        %3238 = vmatprep.subr.bf16.mxu0 0
        %3239 = vmatpush2.bf16.msra.mxu0 %v3173
        %3240 = vmatprep.subr.bf16.mxu0 0
        %3241 = vmatpush2.bf16.msra.mxu0 %v3172
        %3242 = vmatprep.subr.bf16.mxu0 0
        %3243 = vmatpush2.bf16.msra.mxu0 %v3171
        %3244 = vmatprep.subr.bf16.mxu0 0
        %3245 = vmatpush2.bf16.msra.mxu0 %v3170
        %3246 = vmatprep.subr.bf16.mxu0 0
        %3247 = vmatpush2.bf16.msra.mxu0 %v3169
        %3248 = vmatprep.subr.bf16.mxu0 0
        %3249 = vmatpush2.bf16.msra.mxu0 %v3168
        %3250 = vmatprep.subr.bf16.mxu0 0
        %3251 = vmatpush2.bf16.msra.mxu0 %v3167
        %3252 = vmatprep.subr.bf16.mxu0 0
        %3253 = vmatpush2.bf16.msra.mxu0 %v3166
        %3254 = vmatprep.mubr.bf16.mxu0 %v2959
        %3255 = vmatmul.mubr.bf16.gmra.mxu0 %v2958
        %v3256 = vpop.f32.mrf.mxu0
        %v3257 = vadd.f32 %v3029, %v3256
        %v3258 = vpop.f32.mrf.mxu0
        %v3259 = vpop.f32.mrf.mxu0
        %v3260 = vadd.f32 %v3029, %v3259
        %v3261 = vpop.f32.mrf.mxu0
        %3262 = vdwg.mxu0
        %3263 = vmatprep.subr.bf16.mxu0 0
        %3264 = vmatpush1.bf16.msra.mxu0 %v3181
        %3265 = vmatprep.subr.bf16.mxu0 0
        %3266 = vmatpush1.bf16.msra.mxu0 %v3180
        %3267 = vmatprep.subr.bf16.mxu0 0
        %3268 = vmatpush1.bf16.msra.mxu0 %v3179
        %3269 = vmatprep.subr.bf16.mxu0 0
        %3270 = vmatpush1.bf16.msra.mxu0 %v3178
        %3271 = vmatprep.subr.bf16.mxu0 0
        %3272 = vmatpush1.bf16.msra.mxu0 %v3177
        %3273 = vmatprep.subr.bf16.mxu0 0
        %3274 = vmatpush1.bf16.msra.mxu0 %v3176
        %3275 = vmatprep.subr.bf16.mxu0 0
        %3276 = vmatpush1.bf16.msra.mxu0 %v3175
        %3277 = vmatprep.subr.bf16.mxu0 0
        %3278 = vmatpush1.bf16.msra.mxu0 %v3174
        %3279 = vmatprep.subr.bf16.mxu0 0
        %3280 = vmatpush2.bf16.msra.mxu0 %v3189
        %3281 = vmatprep.subr.bf16.mxu0 0
        %3282 = vmatpush2.bf16.msra.mxu0 %v3188
        %3283 = vmatprep.subr.bf16.mxu0 0
        %3284 = vmatpush2.bf16.msra.mxu0 %v3187
        %3285 = vmatprep.subr.bf16.mxu0 0
        %3286 = vmatpush2.bf16.msra.mxu0 %v3186
        %3287 = vmatprep.subr.bf16.mxu0 0
        %3288 = vmatpush2.bf16.msra.mxu0 %v3185
        %3289 = vmatprep.subr.bf16.mxu0 0
        %3290 = vmatpush2.bf16.msra.mxu0 %v3184
        %3291 = vmatprep.subr.bf16.mxu0 0
        %3292 = vmatpush2.bf16.msra.mxu0 %v3183
        %3293 = vmatprep.subr.bf16.mxu0 0
        %3294 = vmatpush2.bf16.msra.mxu0 %v3182
        %3295 = vmatprep.mubr.bf16.mxu0 %v2961
        %3296 = vmatmul.mubr.bf16.gmra.mxu0 %v2960
        %v3297 = vpop.f32.mrf.mxu0
        %v3298 = vadd.f32 %v3257, %v3297
        %v3299 = vpop.f32.mrf.mxu0
        %v3300 = vpop.f32.mrf.mxu0
        %v3301 = vadd.f32 %v3260, %v3300
        %v3302 = vpop.f32.mrf.mxu0
        %3303 = vdwg.mxu0
        %v3304 = vadd.f32 %v2550, %v3298
        %v3305 = vadd.f32 %v2551, %v3301
        %3306 = vst [vmem:[%s340] sm:$0xff] %v3304
        %3307 = vst [vmem:[%s340 + $0x8] sm:$0xff] %v3305
        %s3308 = sand.u32 %s165, 1
        %s3309 = scalar_lea.sflag [#allocation4], %s3308
        %s3310 = sand.u32 %s165, 1
        %s3311 = smul.addr %s3310, 16
        %s3312 = scalar_lea.vmem [#allocation13], %s3311
        // Predicated region
        $region69: #{tpu_custom_call.1} parent=43 // pred_check
          %p3313 = pneg %p175
        $region70: #{tpu_custom_call.1} parent=43 // pred_check_branch
          %3315 = sbr.rel (%p3313) target = $region72
        $region71: #{tpu_custom_call.1} parent=43 // pred_region
          %s3317 = ssub.s32 256, 256
          %3318 = vsyncadd %s3309, %s3317
          %s3319 = smul.addr %s26, 2
          %s3320 = smul.addr %s3319, 128
          %s3321 = scalar_lea.hbm %s6, %s3320
          %s3322 = sshll.u32 %s3312, 4
          %s3323 = int_to_ptr.vmem [resolvable:$true] %s3322
          %3328 = dma.vmem_to_hbm [thread:$0]  %s3323, 256, %s3321, %s3309, 128, 128, 8
        $region72: #{tpu_custom_call.1} parent=43 // pred_fallthru
          _
      $region44: #{tpu_custom_call.1} parent=5 // pred_fallthru
        _
      %p3329 = scmp.le.s32.totalorder 2, %s21
      // Predicated region
      $region73: #{tpu_custom_call.1} parent=5 // pred_check
        %p3330 = pneg %p3329
      $region74: #{tpu_custom_call.1} parent=5 // pred_check_branch
        %3332 = sbr.rel (%p3330) target = $region76
      $region75: #{tpu_custom_call.1} parent=5 // pred_region
        %s3333 = ssub.s32 %s21, 2
        // Predicated region
        $region77: #{tpu_custom_call.1} parent=75 // pred_check
          %p3334 = pneg %p181
        $region78: #{tpu_custom_call.1} parent=75 // pred_check_branch
          %3336 = sbr.rel (%p3334) target = $region80
        $region79: #{tpu_custom_call.1} parent=75 // pred_region
          %s3337 = sand.u32 %s166, 1
          %s3338 = scalar_lea.sflag [#allocation4], %s3337
          %s3339 = sand.u32 %s166, 1
          %s3340 = smul.addr %s3339, 16
          %s3341 = scalar_lea.vmem [#allocation13], %s3340
          %3342 = dma.done %s3338, 256
        $region80: #{tpu_custom_call.1} parent=75 // pred_fallthru
          _
      $region76: #{tpu_custom_call.1} parent=5 // pred_fallthru
        _
    $region6: #{tpu_custom_call.1} parent=1 // loop_footer
      %s25 = sadd.s32 1, %s21
    $region7: #{tpu_custom_call.1} parent=1 // loop_footer_branch
      %20 = sbr.rel target = $region3
    $region8: #{tpu_custom_call.1} parent=1 // loop_exit
      _
    %3343 = vsyncpa [#allocation3], 1
    %s3344 = scalar_lea.sflag [#allocation3], 1
    %3345 = vsyncpa %s3344, 1
    %3346 = vsyncpa [#allocation6], 1
    %3347 = vsyncpa [#allocation9], 1
    %3348 = vsyncpa [#allocation12], 1
    %3349 = vsyncpa [#allocation4], 1
    %s3350 = scalar_lea.sflag [#allocation4], 1
    %3351 = vsyncpa %s3350, 1

</llo_original>
